<compile_context>
chip_gen: v7x
topology: tpu7x:2x2x1
jax: 0.10.0
libtpu: 0.0.40
codegen_flags: <defaults>
</compile_context>

<pallas_src>
import numpy as np
import jax
import jax.numpy as jnp
from jax.experimental import pallas as pl
from jax.experimental.pallas import tpu as pltpu


# ----------------------------- static geometry ------------------------------
def _layer_geometry(H, W, in_channels, channels, kernel_sizes, strides, paddings):
    """Per-layer geometry of the equivalent stride-1 'direct' convolutions."""
    geoms = []
    hi, wi, ci, src_stride = H, W, in_channels, W
    for oc, k, s, p in zip(channels, kernel_sizes, strides, paddings):
        q = k - 1 - p                         # pad of the equivalent direct conv
        assert q >= 0, "padding > kernel_size - 1 not supported"
        hd, wd = (hi - 1) * s + 1, (wi - 1) * s + 1     # zero-dilated size
        hp, wp = hd + 2 * q, wd + 2 * q                 # padded size
        oh, ow = hp - k + 1, wp - k + 1                 # == (hi-1)*s + k - 2p (output_padding=0)
        geoms.append(dict(k=k, s=s, q=q, cin=ci, cout=oc, hi=hi, wi=wi,
                          src_stride=src_stride, hp=hp, wp=wp, oh=oh, ow=ow,
                          act="leaky_relu"))
        hi, wi, ci, src_stride = oh, ow, oc, wp
    # final Conv2d(channels[-1] -> 3, kernel=3, padding=1) + Tanh
    k, p = 3, 1
    hp, wp = hi + 2 * p, wi + 2 * p
    geoms.append(dict(k=k, s=1, q=p, cin=ci, cout=3, hi=hi, wi=wi,
                      src_stride=src_stride, hp=hp, wp=wp,
                      oh=hp - k + 1, ow=wp - k + 1, act="tanh"))
    return geoms


def _scatter_matrix(g, dtype):
    """0/1 matrix S so that `pad = src_slab @ S` performs zero-dilation (stride>1),
    zero-padding and the wide-slab re-striding in one MXU matmul.  Junk wrap columns
    of the source hit all-zero rows of S.  Built host-side from static geometry."""
    src_len = g["hi"] * g["src_stride"]
    dst_len = g["hp"] * g["wp"] + g["k"] - 1            # + slack for the last tap shift
    S = np.zeros((src_len, dst_len), np.float32)
    ys, xs = np.meshgrid(np.arange(g["hi"]), np.arange(g["wi"]), indexing="ij")
    src_idx = (ys * g["src_stride"] + xs).ravel()
    dst_idx = ((g["q"] + g["s"] * ys) * g["wp"] + g["q"] + g["s"] * xs).ravel()
    S[src_idx, dst_idx] = 1.0
    return jnp.asarray(S, dtype=dtype)


# --------------------------------- kernel -----------------------------------
def _make_fused_kernel(geoms, batch, compute_dtype, out_dtype):
    L = len(geoms)

    def kernel(*refs):
        x_ref = refs[0]                        # (B*cin0, H*W), compute dtype
        o_ref = refs[1 + 3 * L]                # (B*3, OH*Wp), f32
        slab_ref = refs[2 + 3 * L]             # VMEM (max k*k*B*cin, max OH*Wp)

        src = x_ref[...]                       # channel-major, batch folded on sublanes
        for l, g in enumerate(geoms):
            s_ref, w_ref, b_ref = refs[1 + 3 * l], refs[2 + 3 * l], refs[3 + 3 * l]
            k, wp = g["k"], g["wp"]
            bc = batch * g["cin"]
            mw = g["oh"] * wp                  # "wide" width: ow valid + (wp-ow) junk per row

            # (1) zero-dilate + pad + re-stride: ONE matmul vs the 0/1 scatter matrix.
            pad = jnp.dot(src, s_ref[...], preferred_element_type=jnp.float32)
            pad = pad.astype(compute_dtype)    # exact: S entries are 0/1

            # (2) stack the k*k tap-shifted views along the contraction axis
            #     (lane-dense block stores into the reused VMEM staging slab).
            for t in range(k * k):
                off = (t // k) * wp + (t % k)
                slab_ref[t * bc:(t + 1) * bc, :mw] = pad[:, off:off + mw]

            # (3) single fused conv matmul: K = k*k*B*cin, f32 accumulation on the MXU.
            acc = jnp.dot(w_ref[...], slab_ref[0:k * k * bc, 0:mw],
                          preferred_element_type=jnp.float32)
            acc = acc + b_ref[...]             # f32 bias-add on the VPU
            if g["act"] == "leaky_relu":
                acc = jnp.where(acc > 0, acc, 0.01 * acc)   # nn.LeakyReLU default slope
            else:
                acc = jnp.tanh(acc)
            src = acc if l == L - 1 else acc.astype(compute_dtype)

        o_ref[...] = src.astype(out_dtype)     # single lane-dense store (B*3, OH*Wp)

    return kernel


# --------------------------------- wrapper ----------------------------------
def deconv2d_model_forward(x_nchw, params, strides, paddings,
                           compute_dtype=jnp.bfloat16):
    """Forward pass of DeConv2dModel.  Input / output are NCHW like PyTorch."""
    B, Cin, H, W = x_nchw.shape
    channels = [w.shape[1] for (w, _) in params["deconv"]]
    kernel_sizes = [w.shape[2] for (w, _) in params["deconv"]]
    if paddings is None:
        paddings = [0] * len(channels)
    strides, paddings = list(strides), list(paddings)
    assert len(channels) == len(kernel_sizes) == len(strides) == len(paddings)
    geoms = _layer_geometry(H, W, Cin, channels, kernel_sizes, strides, paddings)
    L = len(geoms)
    gf = geoms[-1]
    oh, ow, wpf, cf = gf["oh"], gf["ow"], gf["wp"], gf["cout"]

    # Flat channel-major input; batch folded into the sublane axis.
    inputs = [x_nchw.reshape(B * Cin, H * W).astype(compute_dtype)]
    for l, g in enumerate(geoms):
        k, cout, cin = g["k"], g["cout"], g["cin"]
        if l < L - 1:                          # ConvTranspose2d -> direct-conv weight
            w, b = params["deconv"][l]         # (cin, cout, k, k)
            w_dir = jnp.transpose(w[:, :, ::-1, ::-1], (1, 0, 2, 3))
        else:                                  # final Conv2d(cin -> 3)
            w, b = params["final"]             # (3, cin, k, k)
            w_dir = w
        # Tap-major weight, block-diagonal over the folded batch:
        #   W_big[b*cout+co, t*B*cin + b'*cin + c] = w_dir[co, c, i_t, j_t] * (b == b')
        w_taps = jnp.transpose(w_dir, (2, 3, 0, 1)).reshape(k * k, cout, cin)
        w_big = jnp.einsum("toc,bd->botdc", w_taps,
                           jnp.eye(B, dtype=w_taps.dtype)
                           ).reshape(B * cout, k * k * B * cin)
        b_big = jnp.tile(b, (B,)).reshape(B * cout, 1).astype(jnp.float32)
        inputs += [_scatter_matrix(g, compute_dtype),
                   w_big.astype(compute_dtype), b_big]

    slab_rows = max(g["k"] * g["k"] * B * g["cin"] for g in geoms)   # single reused slab
    slab_cols = max(g["oh"] * g["wp"] for g in geoms)

    out = pl.pallas_call(
        _make_fused_kernel(geoms, B, compute_dtype, jnp.float32),
        out_shape=jax.ShapeDtypeStruct((B * cf, oh * wpf), jnp.float32),
        grid=(1,),
        in_specs=[pl.BlockSpec(a.shape, lambda i: (0, 0)) for a in inputs],
        out_specs=pl.BlockSpec((B * cf, oh * wpf), lambda i: (0, 0)),
        scratch_shapes=[pltpu.VMEM((slab_rows, slab_cols), compute_dtype)],
        compiler_params=pltpu.CompilerParams(dimension_semantics=("arbitrary",)),
    )(*inputs)
    # Wide slab -> NCHW: drop the (wp-ow) wrap columns (cheap XLA slice).
    return out.reshape(B, cf, oh, wpf)[:, :, :, :ow]


# ------------------------------ parameter init ------------------------------
def init_deconv2d_params(key, in_channels, channels, kernel_sizes):
    """Deterministic parameter init (PyTorch-like uniform bounds)."""
    params = {"deconv": [], "final": None}
    ics = [in_channels] + list(channels[:-1])
    for ic, oc, k in zip(ics, channels, kernel_sizes):
        key, kw_, kb_ = jax.random.split(key, 3)
        bound = 1.0 / jnp.sqrt(float(ic * k * k))
        w = jax.random.uniform(kw_, (ic, oc, k, k), jnp.float32, -bound, bound)
        b = jax.random.uniform(kb_, (oc,), jnp.float32, -bound, bound)
        params["deconv"].append((w, b))
    key, kw_, kb_ = jax.random.split(key, 3)
    bound = 1.0 / jnp.sqrt(float(channels[-1] * 3 * 3))
    wf = jax.random.uniform(kw_, (3, channels[-1], 3, 3), jnp.float32, -bound, bound)
    bf = jax.random.uniform(kb_, (3,), jnp.float32, -bound, bound)
    params["final"] = (wf, bf)
    return params


# ----------------------------- pure-JAX reference ---------------------------
def _ref_forward(x_nchw, params, strides, paddings):
    x = jnp.transpose(x_nchw, (0, 2, 3, 1))
    dn = ("NHWC", "HWIO", "NHWC")
    for (w, b), s, p in zip(params["deconv"], strides, paddings):
        k = w.shape[2]
        w_hwio = jnp.transpose(w[:, :, ::-1, ::-1], (2, 3, 0, 1))
        y = jax.lax.conv_general_dilated(
            x, w_hwio, window_strides=(1, 1),
            padding=[(k - 1 - p, k - 1 - p)] * 2,
            lhs_dilation=(s, s), dimension_numbers=dn,
        ) + b[None, None, None, :]
        x = jnp.where(y > 0, y, 0.01 * y)
    wf, bf = params["final"]
    y = jax.lax.conv_general_dilated(
        x, jnp.transpose(wf, (2, 3, 1, 0)), window_strides=(1, 1),
        padding=[(1, 1), (1, 1)], dimension_numbers=dn,
    ) + bf[None, None, None, :]
    x = jnp.tanh(y)
    return jnp.transpose(x, (0, 3, 1, 2))


if __name__ == "__main__":
    # Module config: DeConv2dModel(in_channels=4, channels=[8, 8],
    #   kernel_sizes=[3, 3], strides=[2, 1], paddings=None, norm_type='none',
    #   dropout=0.0, use_maxpool=False)
    in_channels, channels, kernel_sizes = 4, [8, 8], [3, 3]
    strides, paddings = (2, 1), (0, 0)

    key = jax.random.PRNGKey(0)
    key, kx = jax.random.split(key)
    x = jax.random.normal(kx, (2, in_channels, 8, 8), jnp.float32)   # NCHW

    params = init_deconv2d_params(key, in_channels, channels, kernel_sizes)
    fwd = jax.jit(deconv2d_model_forward, static_argnums=(2, 3, 4))

    ref = jax.block_until_ready(_ref_forward(x, params, strides, paddings))

    # Exact-structure check: f32 MXU operands must match XLA at tight tolerance.
    out_f32 = jax.block_until_ready(fwd(x, params, strides, paddings, jnp.float32))
    assert out_f32.shape == (2, 3, 19, 19), out_f32.shape
    assert jnp.allclose(out_f32, ref, rtol=1e-4, atol=1e-4), "f32 mismatch vs reference"

    # Production path: bf16 MXU operands with f32 accumulation (bf16-rounding tolerance).
    out_bf16 = jax.block_until_ready(fwd(x, params, strides, paddings, jnp.bfloat16))
    assert out_bf16.shape == (2, 3, 19, 19), out_bf16.shape
    assert jnp.allclose(out_bf16, ref, rtol=5e-2, atol=5e-2), "bf16 mismatch vs reference"

    print("KERNEL_OK")
</pallas_src>

<mosaic_0001>
module attributes {stable_mosaic.version = 11 : i64} {
  func.func @kernel(%arg0: i32, %arg1: memref<8x64xf32, #tpu.memory_space<vmem>>, %arg2: memref<64x363xf32, #tpu.memory_space<vmem>>, %arg3: memref<16x72xf32, #tpu.memory_space<vmem>>, %arg4: memref<16x1xf32, #tpu.memory_space<vmem>>, %arg5: memref<323x443xf32, #tpu.memory_space<vmem>>, %arg6: memref<16x144xf32, #tpu.memory_space<vmem>>, %arg7: memref<16x1xf32, #tpu.memory_space<vmem>>, %arg8: memref<399x443xf32, #tpu.memory_space<vmem>>, %arg9: memref<6x144xf32, #tpu.memory_space<vmem>>, %arg10: memref<6x1xf32, #tpu.memory_space<vmem>>, %arg11: memref<6x399xf32, #tpu.memory_space<vmem>>, %arg12: memref<144x399xf32, #tpu.memory_space<vmem>>) attributes {dimension_semantics = [#tpu.dimension_semantics<arbitrary>], iteration_bounds = array<i64: 1>, scalar_prefetch = 0 : i64, scratch_operands = 1 : i64, tpu.core_type = #tpu.core_type<tc>, window_params = [{pipeline_mode = #tpu.pipeline_mode<synchronous>, transform_indices = @transform_0, window_bounds = array<i64: 8, 64>}, {pipeline_mode = #tpu.pipeline_mode<synchronous>, transform_indices = @transform_1, window_bounds = array<i64: 64, 363>}, {pipeline_mode = #tpu.pipeline_mode<synchronous>, transform_indices = @transform_2, window_bounds = array<i64: 16, 72>}, {pipeline_mode = #tpu.pipeline_mode<synchronous>, transform_indices = @transform_3, window_bounds = array<i64: 16, 1>}, {pipeline_mode = #tpu.pipeline_mode<synchronous>, transform_indices = @transform_4, window_bounds = array<i64: 323, 443>}, {pipeline_mode = #tpu.pipeline_mode<synchronous>, transform_indices = @transform_5, window_bounds = array<i64: 16, 144>}, {pipeline_mode = #tpu.pipeline_mode<synchronous>, transform_indices = @transform_6, window_bounds = array<i64: 16, 1>}, {pipeline_mode = #tpu.pipeline_mode<synchronous>, transform_indices = @transform_7, window_bounds = array<i64: 399, 443>}, {pipeline_mode = #tpu.pipeline_mode<synchronous>, transform_indices = @transform_8, window_bounds = array<i64: 6, 144>}, {pipeline_mode = #tpu.pipeline_mode<synchronous>, transform_indices = @transform_9, window_bounds = array<i64: 6, 1>}, {pipeline_mode = #tpu.pipeline_mode<synchronous>, transform_indices = @transform_10, window_bounds = array<i64: 6, 399>}]} {
    %c0 = arith.constant 0 : index
    %c0_0 = arith.constant 0 : index
    %0 = vector.load %arg1[%c0, %c0_0] : memref<8x64xf32, #tpu.memory_space<vmem>>, vector<8x64xf32>
    %c0_1 = arith.constant 0 : index
    %c0_2 = arith.constant 0 : index
    %1 = vector.load %arg2[%c0_1, %c0_2] : memref<64x363xf32, #tpu.memory_space<vmem>>, vector<64x363xf32>
    %cst = arith.constant dense<0.000000e+00> : vector<8x363xf32>
    %2 = tpu.matmul %0, %1, %cst {dimension_numbers = #tpu.dot_dimension_numbers<[1], [0], [0], [1], [0, 0, 1, 1], [], []>} : vector<8x64xf32>, vector<64x363xf32>, vector<8x363xf32> -> vector<8x363xf32>
    %3 = vector.extract_strided_slice %2 {offsets = [0, 0], sizes = [8, 323], strides = [1, 1]} : vector<8x363xf32> to vector<8x323xf32>
    %c0_3 = arith.constant 0 : index
    %c0_4 = arith.constant 0 : index
    %4 = vector.load %arg12[%c0_3, %c0_4] : memref<144x399xf32, #tpu.memory_space<vmem>>, vector<8x323xf32>
    tpu.vector_store %arg12[%c0_3, %c0_4], %3 {strides = array<i32>} : memref<144x399xf32, #tpu.memory_space<vmem>>, vector<8x323xf32>,
    %5 = vector.extract_strided_slice %2 {offsets = [0, 1], sizes = [8, 323], strides = [1, 1]} : vector<8x363xf32> to vector<8x323xf32>
    %c8 = arith.constant 8 : index
    %c0_5 = arith.constant 0 : index
    %6 = vector.load %arg12[%c8, %c0_5] : memref<144x399xf32, #tpu.memory_space<vmem>>, vector<8x323xf32>
    tpu.vector_store %arg12[%c8, %c0_5], %5 {strides = array<i32>} : memref<144x399xf32, #tpu.memory_space<vmem>>, vector<8x323xf32>,
    %7 = vector.extract_strided_slice %2 {offsets = [0, 2], sizes = [8, 323], strides = [1, 1]} : vector<8x363xf32> to vector<8x323xf32>
    %c16 = arith.constant 16 : index
    %c0_6 = arith.constant 0 : index
    %8 = vector.load %arg12[%c16, %c0_6] : memref<144x399xf32, #tpu.memory_space<vmem>>, vector<8x323xf32>
    tpu.vector_store %arg12[%c16, %c0_6], %7 {strides = array<i32>} : memref<144x399xf32, #tpu.memory_space<vmem>>, vector<8x323xf32>,
    %9 = vector.extract_strided_slice %2 {offsets = [0, 19], sizes = [8, 323], strides = [1, 1]} : vector<8x363xf32> to vector<8x323xf32>
    %c24 = arith.constant 24 : index
    %c0_7 = arith.constant 0 : index
    %10 = vector.load %arg12[%c24, %c0_7] : memref<144x399xf32, #tpu.memory_space<vmem>>, vector<8x323xf32>
    tpu.vector_store %arg12[%c24, %c0_7], %9 {strides = array<i32>} : memref<144x399xf32, #tpu.memory_space<vmem>>, vector<8x323xf32>,
    %11 = vector.extract_strided_slice %2 {offsets = [0, 20], sizes = [8, 323], strides = [1, 1]} : vector<8x363xf32> to vector<8x323xf32>
    %c32 = arith.constant 32 : index
    %c0_8 = arith.constant 0 : index
    %12 = vector.load %arg12[%c32, %c0_8] : memref<144x399xf32, #tpu.memory_space<vmem>>, vector<8x323xf32>
    tpu.vector_store %arg12[%c32, %c0_8], %11 {strides = array<i32>} : memref<144x399xf32, #tpu.memory_space<vmem>>, vector<8x323xf32>,
    %13 = vector.extract_strided_slice %2 {offsets = [0, 21], sizes = [8, 323], strides = [1, 1]} : vector<8x363xf32> to vector<8x323xf32>
    %c40 = arith.constant 40 : index
    %c0_9 = arith.constant 0 : index
    %14 = vector.load %arg12[%c40, %c0_9] : memref<144x399xf32, #tpu.memory_space<vmem>>, vector<8x323xf32>
    tpu.vector_store %arg12[%c40, %c0_9], %13 {strides = array<i32>} : memref<144x399xf32, #tpu.memory_space<vmem>>, vector<8x323xf32>,
    %15 = vector.extract_strided_slice %2 {offsets = [0, 38], sizes = [8, 323], strides = [1, 1]} : vector<8x363xf32> to vector<8x323xf32>
    %c48 = arith.constant 48 : index
    %c0_10 = arith.constant 0 : index
    %16 = vector.load %arg12[%c48, %c0_10] : memref<144x399xf32, #tpu.memory_space<vmem>>, vector<8x323xf32>
    tpu.vector_store %arg12[%c48, %c0_10], %15 {strides = array<i32>} : memref<144x399xf32, #tpu.memory_space<vmem>>, vector<8x323xf32>,
    %17 = vector.extract_strided_slice %2 {offsets = [0, 39], sizes = [8, 323], strides = [1, 1]} : vector<8x363xf32> to vector<8x323xf32>
    %c56 = arith.constant 56 : index
    %c0_11 = arith.constant 0 : index
    %18 = vector.load %arg12[%c56, %c0_11] : memref<144x399xf32, #tpu.memory_space<vmem>>, vector<8x323xf32>
    tpu.vector_store %arg12[%c56, %c0_11], %17 {strides = array<i32>} : memref<144x399xf32, #tpu.memory_space<vmem>>, vector<8x323xf32>,
    %19 = vector.extract_strided_slice %2 {offsets = [0, 40], sizes = [8, 323], strides = [1, 1]} : vector<8x363xf32> to vector<8x323xf32>
    %c64 = arith.constant 64 : index
    %c0_12 = arith.constant 0 : index
    %20 = vector.load %arg12[%c64, %c0_12] : memref<144x399xf32, #tpu.memory_space<vmem>>, vector<8x323xf32>
    tpu.vector_store %arg12[%c64, %c0_12], %19 {strides = array<i32>} : memref<144x399xf32, #tpu.memory_space<vmem>>, vector<8x323xf32>,
    %c0_13 = arith.constant 0 : index
    %c0_14 = arith.constant 0 : index
    %21 = vector.load %arg3[%c0_13, %c0_14] : memref<16x72xf32, #tpu.memory_space<vmem>>, vector<16x72xf32>
    %c0_15 = arith.constant 0 : index
    %c0_16 = arith.constant 0 : index
    %22 = vector.load %arg12[%c0_15, %c0_16] : memref<144x399xf32, #tpu.memory_space<vmem>>, vector<72x323xf32>
    %cst_17 = arith.constant dense<0.000000e+00> : vector<16x323xf32>
    %23 = tpu.matmul %21, %22, %cst_17 {dimension_numbers = #tpu.dot_dimension_numbers<[1], [0], [0], [1], [0, 0, 1, 1], [], []>} : vector<16x72xf32>, vector<72x323xf32>, vector<16x323xf32> -> vector<16x323xf32>
    %c0_18 = arith.constant 0 : index
    %c0_19 = arith.constant 0 : index
    %24 = vector.load %arg4[%c0_18, %c0_19] : memref<16x1xf32, #tpu.memory_space<vmem>>, vector<16x1xf32>
    %25 = vector.broadcast %24 : vector<16x1xf32> to vector<16x323xf32>
    %26 = arith.addf %23, %25 : vector<16x323xf32>
    %cst_20 = arith.constant 0.000000e+00 : f32
    %27 = vector.broadcast %cst_20 : f32 to vector<16x323xf32>
    %28 = arith.cmpf ogt, %26, %27 : vector<16x323xf32>
    %cst_21 = arith.constant 0.00999999977 : f32
    %29 = vector.broadcast %cst_21 : f32 to vector<16x323xf32>
    %30 = arith.mulf %29, %26 : vector<16x323xf32>
    %31 = arith.select %28, %26, %30 : vector<16x323xi1>, vector<16x323xf32>
    %c0_22 = arith.constant 0 : index
    %c0_23 = arith.constant 0 : index
    %32 = vector.load %arg5[%c0_22, %c0_23] : memref<323x443xf32, #tpu.memory_space<vmem>>, vector<323x443xf32>
    %cst_24 = arith.constant dense<0.000000e+00> : vector<16x443xf32>
    %33 = tpu.matmul %31, %32, %cst_24 {dimension_numbers = #tpu.dot_dimension_numbers<[1], [0], [0], [1], [0, 0, 1, 1], [], []>} : vector<16x323xf32>, vector<323x443xf32>, vector<16x443xf32> -> vector<16x443xf32>
    %34 = vector.extract_strided_slice %33 {offsets = [0, 0], sizes = [16, 399], strides = [1, 1]} : vector<16x443xf32> to vector<16x399xf32>
    %c0_25 = arith.constant 0 : index
    %c0_26 = arith.constant 0 : index
    %35 = vector.load %arg12[%c0_25, %c0_26] : memref<144x399xf32, #tpu.memory_space<vmem>>, vector<16x399xf32>
    tpu.vector_store %arg12[%c0_25, %c0_26], %34 {strides = array<i32>} : memref<144x399xf32, #tpu.memory_space<vmem>>, vector<16x399xf32>,
    %36 = vector.extract_strided_slice %33 {offsets = [0, 1], sizes = [16, 399], strides = [1, 1]} : vector<16x443xf32> to vector<16x399xf32>
    %c16_27 = arith.constant 16 : index
    %c0_28 = arith.constant 0 : index
    %37 = vector.load %arg12[%c16_27, %c0_28] : memref<144x399xf32, #tpu.memory_space<vmem>>, vector<16x399xf32>
    tpu.vector_store %arg12[%c16_27, %c0_28], %36 {strides = array<i32>} : memref<144x399xf32, #tpu.memory_space<vmem>>, vector<16x399xf32>,
    %38 = vector.extract_strided_slice %33 {offsets = [0, 2], sizes = [16, 399], strides = [1, 1]} : vector<16x443xf32> to vector<16x399xf32>
    %c32_29 = arith.constant 32 : index
    %c0_30 = arith.constant 0 : index
    %39 = vector.load %arg12[%c32_29, %c0_30] : memref<144x399xf32, #tpu.memory_space<vmem>>, vector<16x399xf32>
    tpu.vector_store %arg12[%c32_29, %c0_30], %38 {strides = array<i32>} : memref<144x399xf32, #tpu.memory_space<vmem>>, vector<16x399xf32>,
    %40 = vector.extract_strided_slice %33 {offsets = [0, 21], sizes = [16, 399], strides = [1, 1]} : vector<16x443xf32> to vector<16x399xf32>
    %c48_31 = arith.constant 48 : index
    %c0_32 = arith.constant 0 : index
    %41 = vector.load %arg12[%c48_31, %c0_32] : memref<144x399xf32, #tpu.memory_space<vmem>>, vector<16x399xf32>
    tpu.vector_store %arg12[%c48_31, %c0_32], %40 {strides = array<i32>} : memref<144x399xf32, #tpu.memory_space<vmem>>, vector<16x399xf32>,
    %42 = vector.extract_strided_slice %33 {offsets = [0, 22], sizes = [16, 399], strides = [1, 1]} : vector<16x443xf32> to vector<16x399xf32>
    %c64_33 = arith.constant 64 : index
    %c0_34 = arith.constant 0 : index
    %43 = vector.load %arg12[%c64_33, %c0_34] : memref<144x399xf32, #tpu.memory_space<vmem>>, vector<16x399xf32>
    tpu.vector_store %arg12[%c64_33, %c0_34], %42 {strides = array<i32>} : memref<144x399xf32, #tpu.memory_space<vmem>>, vector<16x399xf32>,
    %44 = vector.extract_strided_slice %33 {offsets = [0, 23], sizes = [16, 399], strides = [1, 1]} : vector<16x443xf32> to vector<16x399xf32>
    %c80 = arith.constant 80 : index
    %c0_35 = arith.constant 0 : index
    %45 = vector.load %arg12[%c80, %c0_35] : memref<144x399xf32, #tpu.memory_space<vmem>>, vector<16x399xf32>
    tpu.vector_store %arg12[%c80, %c0_35], %44 {strides = array<i32>} : memref<144x399xf32, #tpu.memory_space<vmem>>, vector<16x399xf32>,
    %46 = vector.extract_strided_slice %33 {offsets = [0, 42], sizes = [16, 399], strides = [1, 1]} : vector<16x443xf32> to vector<16x399xf32>
    %c96 = arith.constant 96 : index
    %c0_36 = arith.constant 0 : index
    %47 = vector.load %arg12[%c96, %c0_36] : memref<144x399xf32, #tpu.memory_space<vmem>>, vector<16x399xf32>
    tpu.vector_store %arg12[%c96, %c0_36], %46 {strides = array<i32>} : memref<144x399xf32, #tpu.memory_space<vmem>>, vector<16x399xf32>,
    %48 = vector.extract_strided_slice %33 {offsets = [0, 43], sizes = [16, 399], strides = [1, 1]} : vector<16x443xf32> to vector<16x399xf32>
    %c112 = arith.constant 112 : index
    %c0_37 = arith.constant 0 : index
    %49 = vector.load %arg12[%c112, %c0_37] : memref<144x399xf32, #tpu.memory_space<vmem>>, vector<16x399xf32>
    tpu.vector_store %arg12[%c112, %c0_37], %48 {strides = array<i32>} : memref<144x399xf32, #tpu.memory_space<vmem>>, vector<16x399xf32>,
    %50 = vector.extract_strided_slice %33 {offsets = [0, 44], sizes = [16, 399], strides = [1, 1]} : vector<16x443xf32> to vector<16x399xf32>
    %c128 = arith.constant 128 : index
    %c0_38 = arith.constant 0 : index
    %51 = vector.load %arg12[%c128, %c0_38] : memref<144x399xf32, #tpu.memory_space<vmem>>, vector<16x399xf32>
    tpu.vector_store %arg12[%c128, %c0_38], %50 {strides = array<i32>} : memref<144x399xf32, #tpu.memory_space<vmem>>, vector<16x399xf32>,
    %c0_39 = arith.constant 0 : index
    %c0_40 = arith.constant 0 : index
    %52 = vector.load %arg6[%c0_39, %c0_40] : memref<16x144xf32, #tpu.memory_space<vmem>>, vector<16x144xf32>
    %c0_41 = arith.constant 0 : index
    %c0_42 = arith.constant 0 : index
    %53 = vector.load %arg12[%c0_41, %c0_42] : memref<144x399xf32, #tpu.memory_space<vmem>>, vector<144x399xf32>
    %cst_43 = arith.constant dense<0.000000e+00> : vector<16x399xf32>
    %54 = tpu.matmul %52, %53, %cst_43 {dimension_numbers = #tpu.dot_dimension_numbers<[1], [0], [0], [1], [0, 0, 1, 1], [], []>} : vector<16x144xf32>, vector<144x399xf32>, vector<16x399xf32> -> vector<16x399xf32>
    %c0_44 = arith.constant 0 : index
    %c0_45 = arith.constant 0 : index
    %55 = vector.load %arg7[%c0_44, %c0_45] : memref<16x1xf32, #tpu.memory_space<vmem>>, vector<16x1xf32>
    %56 = vector.broadcast %55 : vector<16x1xf32> to vector<16x399xf32>
    %57 = arith.addf %54, %56 : vector<16x399xf32>
    %cst_46 = arith.constant 0.000000e+00 : f32
    %58 = vector.broadcast %cst_46 : f32 to vector<16x399xf32>
    %59 = arith.cmpf ogt, %57, %58 : vector<16x399xf32>
    %cst_47 = arith.constant 0.00999999977 : f32
    %60 = vector.broadcast %cst_47 : f32 to vector<16x399xf32>
    %61 = arith.mulf %60, %57 : vector<16x399xf32>
    %62 = arith.select %59, %57, %61 : vector<16x399xi1>, vector<16x399xf32>
    %c0_48 = arith.constant 0 : index
    %c0_49 = arith.constant 0 : index
    %63 = vector.load %arg8[%c0_48, %c0_49] : memref<399x443xf32, #tpu.memory_space<vmem>>, vector<399x443xf32>
    %cst_50 = arith.constant dense<0.000000e+00> : vector<16x443xf32>
    %64 = tpu.matmul %62, %63, %cst_50 {dimension_numbers = #tpu.dot_dimension_numbers<[1], [0], [0], [1], [0, 0, 1, 1], [], []>} : vector<16x399xf32>, vector<399x443xf32>, vector<16x443xf32> -> vector<16x443xf32>
    %65 = vector.extract_strided_slice %64 {offsets = [0, 0], sizes = [16, 399], strides = [1, 1]} : vector<16x443xf32> to vector<16x399xf32>
    %c0_51 = arith.constant 0 : index
    %c0_52 = arith.constant 0 : index
    %66 = vector.load %arg12[%c0_51, %c0_52] : memref<144x399xf32, #tpu.memory_space<vmem>>, vector<16x399xf32>
    tpu.vector_store %arg12[%c0_51, %c0_52], %65 {strides = array<i32>} : memref<144x399xf32, #tpu.memory_space<vmem>>, vector<16x399xf32>,
    %67 = vector.extract_strided_slice %64 {offsets = [0, 1], sizes = [16, 399], strides = [1, 1]} : vector<16x443xf32> to vector<16x399xf32>
    %c16_53 = arith.constant 16 : index
    %c0_54 = arith.constant 0 : index
    %68 = vector.load %arg12[%c16_53, %c0_54] : memref<144x399xf32, #tpu.memory_space<vmem>>, vector<16x399xf32>
    tpu.vector_store %arg12[%c16_53, %c0_54], %67 {strides = array<i32>} : memref<144x399xf32, #tpu.memory_space<vmem>>, vector<16x399xf32>,
    %69 = vector.extract_strided_slice %64 {offsets = [0, 2], sizes = [16, 399], strides = [1, 1]} : vector<16x443xf32> to vector<16x399xf32>
    %c32_55 = arith.constant 32 : index
    %c0_56 = arith.constant 0 : index
    %70 = vector.load %arg12[%c32_55, %c0_56] : memref<144x399xf32, #tpu.memory_space<vmem>>, vector<16x399xf32>
    tpu.vector_store %arg12[%c32_55, %c0_56], %69 {strides = array<i32>} : memref<144x399xf32, #tpu.memory_space<vmem>>, vector<16x399xf32>,
    %71 = vector.extract_strided_slice %64 {offsets = [0, 21], sizes = [16, 399], strides = [1, 1]} : vector<16x443xf32> to vector<16x399xf32>
    %c48_57 = arith.constant 48 : index
    %c0_58 = arith.constant 0 : index
    %72 = vector.load %arg12[%c48_57, %c0_58] : memref<144x399xf32, #tpu.memory_space<vmem>>, vector<16x399xf32>
    tpu.vector_store %arg12[%c48_57, %c0_58], %71 {strides = array<i32>} : memref<144x399xf32, #tpu.memory_space<vmem>>, vector<16x399xf32>,
    %73 = vector.extract_strided_slice %64 {offsets = [0, 22], sizes = [16, 399], strides = [1, 1]} : vector<16x443xf32> to vector<16x399xf32>
    %c64_59 = arith.constant 64 : index
    %c0_60 = arith.constant 0 : index
    %74 = vector.load %arg12[%c64_59, %c0_60] : memref<144x399xf32, #tpu.memory_space<vmem>>, vector<16x399xf32>
    tpu.vector_store %arg12[%c64_59, %c0_60], %73 {strides = array<i32>} : memref<144x399xf32, #tpu.memory_space<vmem>>, vector<16x399xf32>,
    %75 = vector.extract_strided_slice %64 {offsets = [0, 23], sizes = [16, 399], strides = [1, 1]} : vector<16x443xf32> to vector<16x399xf32>
    %c80_61 = arith.constant 80 : index
    %c0_62 = arith.constant 0 : index
    %76 = vector.load %arg12[%c80_61, %c0_62] : memref<144x399xf32, #tpu.memory_space<vmem>>, vector<16x399xf32>
    tpu.vector_store %arg12[%c80_61, %c0_62], %75 {strides = array<i32>} : memref<144x399xf32, #tpu.memory_space<vmem>>, vector<16x399xf32>,
    %77 = vector.extract_strided_slice %64 {offsets = [0, 42], sizes = [16, 399], strides = [1, 1]} : vector<16x443xf32> to vector<16x399xf32>
    %c96_63 = arith.constant 96 : index
    %c0_64 = arith.constant 0 : index
    %78 = vector.load %arg12[%c96_63, %c0_64] : memref<144x399xf32, #tpu.memory_space<vmem>>, vector<16x399xf32>
    tpu.vector_store %arg12[%c96_63, %c0_64], %77 {strides = array<i32>} : memref<144x399xf32, #tpu.memory_space<vmem>>, vector<16x399xf32>,
    %79 = vector.extract_strided_slice %64 {offsets = [0, 43], sizes = [16, 399], strides = [1, 1]} : vector<16x443xf32> to vector<16x399xf32>
    %c112_65 = arith.constant 112 : index
    %c0_66 = arith.constant 0 : index
    %80 = vector.load %arg12[%c112_65, %c0_66] : memref<144x399xf32, #tpu.memory_space<vmem>>, vector<16x399xf32>
    tpu.vector_store %arg12[%c112_65, %c0_66], %79 {strides = array<i32>} : memref<144x399xf32, #tpu.memory_space<vmem>>, vector<16x399xf32>,
    %81 = vector.extract_strided_slice %64 {offsets = [0, 44], sizes = [16, 399], strides = [1, 1]} : vector<16x443xf32> to vector<16x399xf32>
    %c128_67 = arith.constant 128 : index
    %c0_68 = arith.constant 0 : index
    %82 = vector.load %arg12[%c128_67, %c0_68] : memref<144x399xf32, #tpu.memory_space<vmem>>, vector<16x399xf32>
    tpu.vector_store %arg12[%c128_67, %c0_68], %81 {strides = array<i32>} : memref<144x399xf32, #tpu.memory_space<vmem>>, vector<16x399xf32>,
    %c0_69 = arith.constant 0 : index
    %c0_70 = arith.constant 0 : index
    %83 = vector.load %arg9[%c0_69, %c0_70] : memref<6x144xf32, #tpu.memory_space<vmem>>, vector<6x144xf32>
    %c0_71 = arith.constant 0 : index
    %c0_72 = arith.constant 0 : index
    %84 = vector.load %arg12[%c0_71, %c0_72] : memref<144x399xf32, #tpu.memory_space<vmem>>, vector<144x399xf32>
    %cst_73 = arith.constant dense<0.000000e+00> : vector<6x399xf32>
    %85 = tpu.matmul %83, %84, %cst_73 {dimension_numbers = #tpu.dot_dimension_numbers<[1], [0], [0], [1], [0, 0, 1, 1], [], []>} : vector<6x144xf32>, vector<144x399xf32>, vector<6x399xf32> -> vector<6x399xf32>
    %c0_74 = arith.constant 0 : index
    %c0_75 = arith.constant 0 : index
    %86 = vector.load %arg10[%c0_74, %c0_75] : memref<6x1xf32, #tpu.memory_space<vmem>>, vector<6x1xf32>
    %87 = vector.broadcast %86 : vector<6x1xf32> to vector<6x399xf32>
    %88 = arith.addf %85, %87 : vector<6x399xf32>
    %89 = math.tanh %88 : vector<6x399xf32>
    %c0_76 = arith.constant 0 : index
    %c0_77 = arith.constant 0 : index
    %90 = vector.load %arg11[%c0_76, %c0_77] : memref<6x399xf32, #tpu.memory_space<vmem>>, vector<6x399xf32>
    tpu.vector_store %arg11[%c0_76, %c0_77], %89 {strides = array<i32>} : memref<6x399xf32, #tpu.memory_space<vmem>>, vector<6x399xf32>,
    return
  }
  func.func @transform_0(%arg0: i32) -> (i32, i32) {
    %c0_i32 = arith.constant 0 : i32
    %c0_i32_0 = arith.constant 0 : i32
    %c0_i32_1 = arith.constant 0 : i32
    return %c0_i32, %c0_i32_0 : i32, i32
  }
  func.func @transform_1(%arg0: i32) -> (i32, i32) {
    %c0_i32 = arith.constant 0 : i32
    %c0_i32_0 = arith.constant 0 : i32
    %c0_i32_1 = arith.constant 0 : i32
    return %c0_i32, %c0_i32_0 : i32, i32
  }
  func.func @transform_2(%arg0: i32) -> (i32, i32) {
    %c0_i32 = arith.constant 0 : i32
    %c0_i32_0 = arith.constant 0 : i32
    %c0_i32_1 = arith.constant 0 : i32
    return %c0_i32, %c0_i32_0 : i32, i32
  }
  func.func @transform_3(%arg0: i32) -> (i32, i32) {
    %c0_i32 = arith.constant 0 : i32
    %c0_i32_0 = arith.constant 0 : i32
    %c0_i32_1 = arith.constant 0 : i32
    return %c0_i32, %c0_i32_0 : i32, i32
  }
  func.func @transform_4(%arg0: i32) -> (i32, i32) {
    %c0_i32 = arith.constant 0 : i32
    %c0_i32_0 = arith.constant 0 : i32
    %c0_i32_1 = arith.constant 0 : i32
    return %c0_i32, %c0_i32_0 : i32, i32
  }
  func.func @transform_5(%arg0: i32) -> (i32, i32) {
    %c0_i32 = arith.constant 0 : i32
    %c0_i32_0 = arith.constant 0 : i32
    %c0_i32_1 = arith.constant 0 : i32
    return %c0_i32, %c0_i32_0 : i32, i32
  }
  func.func @transform_6(%arg0: i32) -> (i32, i32) {
    %c0_i32 = arith.constant 0 : i32
    %c0_i32_0 = arith.constant 0 : i32
    %c0_i32_1 = arith.constant 0 : i32
    return %c0_i32, %c0_i32_0 : i32, i32
  }
  func.func @transform_7(%arg0: i32) -> (i32, i32) {
    %c0_i32 = arith.constant 0 : i32
    %c0_i32_0 = arith.constant 0 : i32
    %c0_i32_1 = arith.constant 0 : i32
    return %c0_i32, %c0_i32_0 : i32, i32
  }
  func.func @transform_8(%arg0: i32) -> (i32, i32) {
    %c0_i32 = arith.constant 0 : i32
    %c0_i32_0 = arith.constant 0 : i32
    %c0_i32_1 = arith.constant 0 : i32
    return %c0_i32, %c0_i32_0 : i32, i32
  }
  func.func @transform_9(%arg0: i32) -> (i32, i32) {
    %c0_i32 = arith.constant 0 : i32
    %c0_i32_0 = arith.constant 0 : i32
    %c0_i32_1 = arith.constant 0 : i32
    return %c0_i32, %c0_i32_0 : i32, i32
  }
  func.func @transform_10(%arg0: i32) -> (i32, i32) {
    %c0_i32 = arith.constant 0 : i32
    %c0_i32_0 = arith.constant 0 : i32
    %c0_i32_1 = arith.constant 0 : i32
    return %c0_i32, %c0_i32_0 : i32, i32
  }
}

</mosaic_0001>

<llo_original>
// kernel: tile.18
$region0: #{tile.18}
  #allocation0 [shape = 's32[1]{0}', space=sflag, size = 0x4, scoped, tag = 'scoped memory for tile.18']
  %s0 = inlined_call_operand.vmem [shape: f32[8], index: 0, kind: input, shape index: {}]
  %s1 = inlined_call_operand.vmem [shape: f32[2,8], index: 1, kind: output, shape index: {}]
  // Predicated region
  $region2: #{tile.18} parent=0 // pred_check
    _
  $region3: #{tile.18} parent=0 // pred_check_branch
    %3 = sbr.rel (0) target = $region5
  $region4: #{tile.18} parent=0 // pred_region
    _
  $region5: #{tile.18} parent=0 // pred_fallthru
    _
  %v4 = vld [vmem:[%s0] ss:$0 sm:$0xff]
  %5 = vst [vmem:[%s1] sm:$0x3] %v4

// kernel: tile.0
$region0: #{tile.0}
  %s0 = inlined_call_operand.vmem [shape: f32[2,8], index: 0, kind: input, shape index: {}]
  %s1 = inlined_call_operand.vmem [shape: f32[16,1], index: 1, kind: output, shape index: {}]
  $region1: #{tile.0} parent=0
    #allocation0 [shape = 'u8[4096]{0}', space=vmem, size = 0x1000, scoped, tag = 'scoped mem for input reshape']
    %s3 = sshllo.u32 0, 2
    %v4 = vld [vmem:[%s0] sm:%s3]
    %5 = vst [vmem:[#allocation0] sm:%s3] %v4
    %v6 = vld [vmem:[#allocation0] sm:$0x3]
    %vm7 = vcmask 7168
    %8 = vst.msk [vmem:[%s1] ss:$8 sm:$0x3] %vm7, %v6
    %v9 = vld [vmem:[#allocation0] sm:$0x3]
    %10 = vrot.lane.b32.xlu0 %v9, 127
    %v11 = vpop.permute.xlu0 %10
    %vm12 = vcmask 7168
    %s13 = scalar_lea.vmem %s1, 1
    %14 = vst.msk [vmem:[%s13] ss:$8 sm:$0x3] %vm12, %v11
    %v15 = vld [vmem:[#allocation0] sm:$0x3]
    %16 = vrot.lane.b32.xlu0 %v15, 126
    %v17 = vpop.permute.xlu0 %16
    %vm18 = vcmask 7168
    %s19 = scalar_lea.vmem %s1, 2
    %20 = vst.msk [vmem:[%s19] ss:$8 sm:$0x3] %vm18, %v17
    %v21 = vld [vmem:[#allocation0] sm:$0x3]
    %22 = vrot.lane.b32.xlu0 %v21, 125
    %v23 = vpop.permute.xlu0 %22
    %vm24 = vcmask 7168
    %s25 = scalar_lea.vmem %s1, 3
    %26 = vst.msk [vmem:[%s25] ss:$8 sm:$0x3] %vm24, %v23
    %v27 = vld [vmem:[#allocation0] sm:$0x3]
    %28 = vrot.lane.b32.xlu0 %v27, 124
    %v29 = vpop.permute.xlu0 %28
    %vm30 = vcmask 7168
    %s31 = scalar_lea.vmem %s1, 4
    %32 = vst.msk [vmem:[%s31] ss:$8 sm:$0x3] %vm30, %v29
    %v33 = vld [vmem:[#allocation0] sm:$0x3]
    %34 = vrot.lane.b32.xlu0 %v33, 123
    %v35 = vpop.permute.xlu0 %34
    %vm36 = vcmask 7168
    %s37 = scalar_lea.vmem %s1, 5
    %38 = vst.msk [vmem:[%s37] ss:$8 sm:$0x3] %vm36, %v35
    %v39 = vld [vmem:[#allocation0] sm:$0x3]
    %40 = vrot.lane.b32.xlu0 %v39, 122
    %v41 = vpop.permute.xlu0 %40
    %vm42 = vcmask 7168
    %s43 = scalar_lea.vmem %s1, 6
    %44 = vst.msk [vmem:[%s43] ss:$8 sm:$0x3] %vm42, %v41
    %v45 = vld [vmem:[#allocation0] sm:$0x3]
    %46 = vrot.lane.b32.xlu0 %v45, 121
    %v47 = vpop.permute.xlu0 %46
    %vm48 = vcmask 7168
    %s49 = scalar_lea.vmem %s1, 7
    %50 = vst.msk [vmem:[%s49] ss:$8 sm:$0x3] %vm48, %v47

// kernel: tile.28
$region0: #{tile.28}
  #allocation0 [shape = 's32[1]{0}', space=sflag, size = 0x4, scoped, tag = 'scoped memory for tile.28']
  %s0 = inlined_call_operand.vmem [shape: f32[3], index: 0, kind: input, shape index: {}]
  %s1 = inlined_call_operand.vmem [shape: f32[2,3], index: 1, kind: output, shape index: {}]
  // Predicated region
  $region2: #{tile.28} parent=0 // pred_check
    _
  $region3: #{tile.28} parent=0 // pred_check_branch
    %3 = sbr.rel (0) target = $region5
  $region4: #{tile.28} parent=0 // pred_region
    _
  $region5: #{tile.28} parent=0 // pred_fallthru
    _
  %v4 = vld [vmem:[%s0] ss:$0 sm:$0xff]
  %5 = vst [vmem:[%s1] sm:$0x3] %v4

// kernel: tile.2
$region0: #{tile.2}
  %s0 = inlined_call_operand.vmem [shape: f32[2,3], index: 0, kind: input, shape index: {}]
  %s1 = inlined_call_operand.vmem [shape: f32[6,1], index: 1, kind: output, shape index: {}]
  $region1: #{tile.2} parent=0
    #allocation0 [shape = 'u8[4096]{0}', space=vmem, size = 0x1000, scoped, tag = 'scoped mem for input reshape']
    %s3 = sshllo.u32 0, 2
    %v4 = vld [vmem:[%s0] sm:%s3]
    %5 = vst [vmem:[#allocation0] sm:%s3] %v4
    %v6 = vld [vmem:[#allocation0] sm:$0x3]
    %vm7 = vcmask 7168
    %8 = vst.msk [vmem:[%s1] ss:$3 sm:$0x3] %vm7, %v6
    %v9 = vld [vmem:[#allocation0] sm:$0x3]
    %10 = vrot.lane.b32.xlu0 %v9, 127
    %v11 = vpop.permute.xlu0 %10
    %vm12 = vcmask 7168
    %s13 = scalar_lea.vmem %s1, 1
    %14 = vst.msk [vmem:[%s13] ss:$3 sm:$0x3] %vm12, %v11
    %v15 = vld [vmem:[#allocation0] sm:$0x3]
    %16 = vrot.lane.b32.xlu0 %v15, 126
    %v17 = vpop.permute.xlu0 %16
    %vm18 = vcmask 7168
    %s19 = scalar_lea.vmem %s1, 2
    %20 = vst.msk [vmem:[%s19] ss:$3 sm:$0x3] %vm18, %v17

// kernel: deconv2d_model_forward.1
$region0: #{deconv2d_model_forward.1}
  #allocation0 [shape = 'u32[]', space=smem, size = 0x4, offset = 0x4, fixed_abs, tag = 'smem constant byte address 0x4 - core index']
  #allocation1 [shape = 'u32[144,128]{1,0:T(1,128)}', space=vmem, size = 0x12000, scoped, tag = 'internal scratch']
  #allocation2 [shape = 'f32[144,399]{1,0:T(8,128)}', space=vmem, size = 0x48000, scoped, tag = 'scratch operand']
  %s0 = inlined_call_operand.vmem [shape: f32[8,64], index: 0, kind: input, shape index: {}]
  %s1 = inlined_call_operand.vmem [shape: f32[64,363], index: 1, kind: input, shape index: {}]
  %s2 = inlined_call_operand.vmem [shape: f32[16,72], index: 2, kind: input, shape index: {}]
  %s3 = inlined_call_operand.vmem [shape: f32[16,1], index: 3, kind: input, shape index: {}]
  %s4 = inlined_call_operand.hbm [shape: f32[323,443], index: 4, kind: input, shape index: {}]
  %s5 = inlined_call_operand.vmem [shape: f32[16,144], index: 5, kind: input, shape index: {}]
  %s6 = inlined_call_operand.vmem [shape: f32[16,1], index: 6, kind: input, shape index: {}]
  %s7 = inlined_call_operand.vmem [shape: f32[399,443], index: 7, kind: input, shape index: {}]
  %s8 = inlined_call_operand.vmem [shape: f32[6,144], index: 8, kind: input, shape index: {}]
  %s9 = inlined_call_operand.vmem [shape: f32[6,1], index: 9, kind: input, shape index: {}]
  %s10 = inlined_call_operand.vmem [shape: f32[6,399], index: 10, kind: output, shape index: {}]
  %s11 = sld [smem:[#allocation0]]
  $region54: #{deconv2d_model_forward.1} parent=0
    _
  %s13 = ssub.s32 1, %s11
  %s14 = scalar_select 0, %s13, %s11
  $region1: #{deconv2d_model_forward.1} parent=0
    #allocation3 [shape = 'u8[671744]{0}', space=vmem, size = 0xa4000, scoped, tag = 'input window, operand 4, single buffered']
    #allocation4 [shape = 's32[1]{0}', space=sflag, size = 0x4, scoped, tag = 'scoped memory for deconv2d_model_forward.1']
    %15 = vsyncpa [#allocation4], 0
    // Predicated region
    $region2: #{deconv2d_model_forward.1} parent=1 // pred_check
      _
    $region3: #{deconv2d_model_forward.1} parent=1 // pred_check_branch
      %17 = sbr.rel (0) target = $region5
    $region4: #{deconv2d_model_forward.1} parent=1 // pred_region
      _
    $region5: #{deconv2d_model_forward.1} parent=1 // pred_fallthru
      _
    // Predicated region
    $region6: #{deconv2d_model_forward.1} parent=1 // pred_check
      _
    $region7: #{deconv2d_model_forward.1} parent=1 // pred_check_branch
      %19 = sbr.rel (0) target = $region9
    $region8: #{deconv2d_model_forward.1} parent=1 // pred_region
      _
    $region9: #{deconv2d_model_forward.1} parent=1 // pred_fallthru
      _
    // Predicated region
    $region10: #{deconv2d_model_forward.1} parent=1 // pred_check
      _
    $region11: #{deconv2d_model_forward.1} parent=1 // pred_check_branch
      %21 = sbr.rel (0) target = $region13
    $region12: #{deconv2d_model_forward.1} parent=1 // pred_region
      _
    $region13: #{deconv2d_model_forward.1} parent=1 // pred_fallthru
      _
    // Predicated region
    $region14: #{deconv2d_model_forward.1} parent=1 // pred_check
      _
    $region15: #{deconv2d_model_forward.1} parent=1 // pred_check_branch
      %23 = sbr.rel (0) target = $region17
    $region16: #{deconv2d_model_forward.1} parent=1 // pred_region
      _
    $region17: #{deconv2d_model_forward.1} parent=1 // pred_fallthru
      _
    // Predicated region
    $region18: #{deconv2d_model_forward.1} parent=1 // pred_check
      _
    $region19: #{deconv2d_model_forward.1} parent=1 // pred_check_branch
      %25 = sbr.rel (0) target = $region21
    $region20: #{deconv2d_model_forward.1} parent=1 // pred_region
      %s27 = ssub.s32 20992, 20992
      %28 = vsyncadd [#allocation4], %s27
      %s29 = sshll.u32 [#allocation3], 4
      %s30 = int_to_ptr.vmem [resolvable:$true] %s29
      %35 = dma.hbm_to_vmem [thread:$0]  %s4, 20992, %s30, [#allocation4], 512, 512, 32
    $region21: #{deconv2d_model_forward.1} parent=1 // pred_fallthru
      _
    // Predicated region
    $region22: #{deconv2d_model_forward.1} parent=1 // pred_check
      _
    $region23: #{deconv2d_model_forward.1} parent=1 // pred_check_branch
      %37 = sbr.rel (0) target = $region25
    $region24: #{deconv2d_model_forward.1} parent=1 // pred_region
      _
    $region25: #{deconv2d_model_forward.1} parent=1 // pred_fallthru
      _
    // Predicated region
    $region26: #{deconv2d_model_forward.1} parent=1 // pred_check
      _
    $region27: #{deconv2d_model_forward.1} parent=1 // pred_check_branch
      %39 = sbr.rel (0) target = $region29
    $region28: #{deconv2d_model_forward.1} parent=1 // pred_region
      _
    $region29: #{deconv2d_model_forward.1} parent=1 // pred_fallthru
      _
    // Predicated region
    $region30: #{deconv2d_model_forward.1} parent=1 // pred_check
      _
    $region31: #{deconv2d_model_forward.1} parent=1 // pred_check_branch
      %41 = sbr.rel (0) target = $region33
    $region32: #{deconv2d_model_forward.1} parent=1 // pred_region
      _
    $region33: #{deconv2d_model_forward.1} parent=1 // pred_fallthru
      _
    // Predicated region
    $region34: #{deconv2d_model_forward.1} parent=1 // pred_check
      _
    $region35: #{deconv2d_model_forward.1} parent=1 // pred_check_branch
      %43 = sbr.rel (0) target = $region37
    $region36: #{deconv2d_model_forward.1} parent=1 // pred_region
      _
    $region37: #{deconv2d_model_forward.1} parent=1 // pred_fallthru
      _
    // Predicated region
    $region38: #{deconv2d_model_forward.1} parent=1 // pred_check
      _
    $region39: #{deconv2d_model_forward.1} parent=1 // pred_check_branch
      %45 = sbr.rel (0) target = $region41
    $region40: #{deconv2d_model_forward.1} parent=1 // pred_region
      _
    $region41: #{deconv2d_model_forward.1} parent=1 // pred_fallthru
      _
    // Predicated region
    $region42: #{deconv2d_model_forward.1} parent=1 // pred_check
      _
    $region43: #{deconv2d_model_forward.1} parent=1 // pred_check_branch
      %47 = sbr.rel (0) target = $region45
    $region44: #{deconv2d_model_forward.1} parent=1 // pred_region
      %48 = dma.done [#allocation4], 20992
    $region45: #{deconv2d_model_forward.1} parent=1 // pred_fallthru
      _
    %v49 = vld [vmem:[%s0] sm:$0xff]
    %v50 = vld [vmem:[%s1] sm:$0xff]
    %v51 = vld [vmem:[%s1 + $0x8] sm:$0xff]
    %v52 = vld [vmem:[%s1 + $0x10] sm:$0xff]
    %v53 = vld [vmem:[%s1 + $0x18] sm:$0xff]
    %v54 = vld [vmem:[%s1 + $0x20] sm:$0xff]
    %v55 = vld [vmem:[%s1 + $0x28] sm:$0xff]
    %v56 = vld [vmem:[%s1 + $0x30] sm:$0xff]
    %v57 = vld [vmem:[%s1 + $0x38] sm:$0xff]
    %v58 = vld [vmem:[%s1 + $0x40] sm:$0xff]
    %v59 = vld [vmem:[%s1 + $0x48] sm:$0xff]
    %v60 = vld [vmem:[%s1 + $0x50] sm:$0xff]
    %v61 = vld [vmem:[%s1 + $0x58] sm:$0xff]
    %v62 = vld [vmem:[%s1 + $0x60] sm:$0xff]
    %v63 = vld [vmem:[%s1 + $0x68] sm:$0xff]
    %v64 = vld [vmem:[%s1 + $0x70] sm:$0xff]
    %v65 = vld [vmem:[%s1 + $0x78] sm:$0xff]
    %v66 = vld [vmem:[%s1 + $0x80] sm:$0xff]
    %v67 = vld [vmem:[%s1 + $0x88] sm:$0xff]
    %v68 = vld [vmem:[%s1 + $0x90] sm:$0xff]
    %v69 = vld [vmem:[%s1 + $0x98] sm:$0xff]
    %v70 = vld [vmem:[%s1 + $0xa0] sm:$0xff]
    %v71 = vld [vmem:[%s1 + $0xa8] sm:$0xff]
    %v72 = vld [vmem:[%s1 + $0xb0] sm:$0xff]
    %v73 = vld [vmem:[%s1 + $0xb8] sm:$0xff]
    %vm74 = vcmask 523264
    %v76 = vsel %vm74, %v49, 0
    %78 = vmatprep.subr.mxu0 %v51
    %79 = vmatpush1.msra.mxu0 %v50
    %80 = vmatprep.subr.mxu0 %v54
    %81 = vmatpush1.msra.mxu0 %v53
    %82 = vmatprep.subr.mxu0 %v57
    %83 = vmatpush1.msra.mxu0 %v56
    %84 = vmatprep.subr.mxu0 %v60
    %85 = vmatpush1.msra.mxu0 %v59
    %86 = vmatprep.subr.mxu0 %v63
    %87 = vmatpush1.msra.mxu0 %v62
    %88 = vmatprep.subr.mxu0 %v66
    %89 = vmatpush1.msra.mxu0 %v65
    %90 = vmatprep.subr.mxu0 %v69
    %91 = vmatpush1.msra.mxu0 %v68
    %92 = vmatprep.subr.mxu0 %v72
    %93 = vmatpush1.msra.mxu0 %v71
    %94 = vmatprep.subr.mxu0 0.0
    %95 = vmatpush1.msra.mxu0 0.0
    %96 = vmatprep.subr.mxu0 0.0
    %97 = vmatpush1.msra.mxu0 0.0
    %98 = vmatprep.subr.mxu0 0.0
    %99 = vmatpush1.msra.mxu0 0.0
    %100 = vmatprep.subr.mxu0 0.0
    %101 = vmatpush1.msra.mxu0 0.0
    %102 = vmatprep.subr.mxu0 0.0
    %103 = vmatpush1.msra.mxu0 0.0
    %104 = vmatprep.subr.mxu0 0.0
    %105 = vmatpush1.msra.mxu0 0.0
    %106 = vmatprep.subr.mxu0 0.0
    %107 = vmatpush1.msra.mxu0 0.0
    %108 = vmatprep.subr.mxu0 0.0
    %109 = vmatpush1.msra.mxu0 0.0
    %110 = vmatprep.subr.mxu0 0.0
    %111 = vmatpush1.msra.mxu0 0.0
    %112 = vmatprep.subr.mxu0 0.0
    %113 = vmatpush1.msra.mxu0 0.0
    %114 = vmatprep.subr.mxu0 0.0
    %115 = vmatpush1.msra.mxu0 0.0
    %116 = vmatprep.subr.mxu0 0.0
    %117 = vmatpush1.msra.mxu0 0.0
    %118 = vmatprep.subr.mxu0 0.0
    %119 = vmatpush1.msra.mxu0 0.0
    %120 = vmatprep.subr.mxu0 0.0
    %121 = vmatpush1.msra.mxu0 0.0
    %122 = vmatprep.subr.mxu0 0.0
    %123 = vmatpush1.msra.mxu0 0.0
    %124 = vmatprep.subr.mxu0 0.0
    %125 = vmatpush1.msra.mxu0 0.0
    %126 = vmatprep.subr.mxu0 0.0
    %127 = vmatpush1.msra.mxu0 0.0
    %128 = vmatprep.subr.mxu0 0.0
    %129 = vmatpush1.msra.mxu0 0.0
    %130 = vmatprep.subr.mxu0 0.0
    %131 = vmatpush1.msra.mxu0 0.0
    %132 = vmatprep.subr.mxu0 0.0
    %133 = vmatpush1.msra.mxu0 0.0
    %134 = vmatprep.subr.mxu0 0.0
    %135 = vmatpush1.msra.mxu0 0.0
    %136 = vmatprep.subr.mxu0 0.0
    %137 = vmatpush1.msra.mxu0 0.0
    %138 = vmatprep.subr.mxu0 0.0
    %139 = vmatpush1.msra.mxu0 0.0
    %140 = vmatprep.subr.mxu0 0.0
    %141 = vmatpush1.msra.mxu0 0.0
    %142 = vmatprep.mubr.f32.mxu0 0.0
    %143 = vmatmul.mubr.f32.gmra.mrb[0].mxu0 %v76
    %v144 = vpop.f32.mrb[0].mxu0
    %v145 = vadd.f32 0.0, %v144
    %v146 = vpop.f32.mrb[0].mxu0
    %v147 = vadd.f32 0.0, %v146
    %148 = vdwg.mxu0
    %149 = vmatprep.subr.mxu0 0.0
    %150 = vmatpush1.msra.mxu0 %v52
    %151 = vmatprep.subr.mxu0 0.0
    %152 = vmatpush1.msra.mxu0 %v55
    %153 = vmatprep.subr.mxu0 0.0
    %154 = vmatpush1.msra.mxu0 %v58
    %155 = vmatprep.subr.mxu0 0.0
    %156 = vmatpush1.msra.mxu0 %v61
    %157 = vmatprep.subr.mxu0 0.0
    %158 = vmatpush1.msra.mxu0 %v64
    %159 = vmatprep.subr.mxu0 0.0
    %160 = vmatpush1.msra.mxu0 %v67
    %161 = vmatprep.subr.mxu0 0.0
    %162 = vmatpush1.msra.mxu0 %v70
    %163 = vmatprep.subr.mxu0 0.0
    %164 = vmatpush1.msra.mxu0 %v73
    %165 = vmatprep.subr.mxu0 0.0
    %166 = vmatpush1.msra.mxu0 0.0
    %167 = vmatprep.subr.mxu0 0.0
    %168 = vmatpush1.msra.mxu0 0.0
    %169 = vmatprep.subr.mxu0 0.0
    %170 = vmatpush1.msra.mxu0 0.0
    %171 = vmatprep.subr.mxu0 0.0
    %172 = vmatpush1.msra.mxu0 0.0
    %173 = vmatprep.subr.mxu0 0.0
    %174 = vmatpush1.msra.mxu0 0.0
    %175 = vmatprep.subr.mxu0 0.0
    %176 = vmatpush1.msra.mxu0 0.0
    %177 = vmatprep.subr.mxu0 0.0
    %178 = vmatpush1.msra.mxu0 0.0
    %179 = vmatprep.subr.mxu0 0.0
    %180 = vmatpush1.msra.mxu0 0.0
    %181 = vmatprep.subr.mxu0 0.0
    %182 = vmatpush1.msra.mxu0 0.0
    %183 = vmatprep.subr.mxu0 0.0
    %184 = vmatpush1.msra.mxu0 0.0
    %185 = vmatprep.subr.mxu0 0.0
    %186 = vmatpush1.msra.mxu0 0.0
    %187 = vmatprep.subr.mxu0 0.0
    %188 = vmatpush1.msra.mxu0 0.0
    %189 = vmatprep.subr.mxu0 0.0
    %190 = vmatpush1.msra.mxu0 0.0
    %191 = vmatprep.subr.mxu0 0.0
    %192 = vmatpush1.msra.mxu0 0.0
    %193 = vmatprep.subr.mxu0 0.0
    %194 = vmatpush1.msra.mxu0 0.0
    %195 = vmatprep.subr.mxu0 0.0
    %196 = vmatpush1.msra.mxu0 0.0
    %197 = vmatprep.subr.mxu0 0.0
    %198 = vmatpush1.msra.mxu0 0.0
    %199 = vmatprep.subr.mxu0 0.0
    %200 = vmatpush1.msra.mxu0 0.0
    %201 = vmatprep.subr.mxu0 0.0
    %202 = vmatpush1.msra.mxu0 0.0
    %203 = vmatprep.subr.mxu0 0.0
    %204 = vmatpush1.msra.mxu0 0.0
    %205 = vmatprep.subr.mxu0 0.0
    %206 = vmatpush1.msra.mxu0 0.0
    %207 = vmatprep.subr.mxu0 0.0
    %208 = vmatpush1.msra.mxu0 0.0
    %209 = vmatprep.subr.mxu0 0.0
    %210 = vmatpush1.msra.mxu0 0.0
    %211 = vmatprep.subr.mxu0 0.0
    %212 = vmatpush1.msra.mxu0 0.0
    %213 = vmatprep.mubr.f32.mxu0 0.0
    %214 = vmatmul.mubr.f32.gmra.mrb[0].mxu0 %v76
    %v215 = vpop.f32.mrb[0].mxu0
    %v216 = vadd.f32 0.0, %v215
    %v217 = vpop.f32.mrb[0].mxu0
    %218 = vdwg.mxu0
    %219 = vst [vmem:[#allocation2] sm:$0xff] %v145
    %220 = vst [vmem:[#allocation2 + $0x8] sm:$0xff] %v147
    %vm221 = vcmask 547840
    %222 = vst.msk [vmem:[#allocation2 + $0x10] sm:$0xff] %vm221, %v216
    %226 = vrot.lane.b32.xlu0 %v145, 127
    %v227 = vpop.permute.xlu0 %226
    %228 = vrot.lane.b32.xlu0 %v147, 127
    %v229 = vpop.permute.xlu0 %228
    %230 = vrot.lane.b32.xlu0 %v216, 127
    %v231 = vpop.permute.xlu0 %230
    %vm232 = vcmask 1039360
    %v233 = vsel %vm232, %v227, %v229
    %v234 = vsel %vm232, %v229, %v231
    %238 = vst [vmem:[#allocation2 + $0x20] sm:$0xff] %v233
    %239 = vst [vmem:[#allocation2 + $0x28] sm:$0xff] %v234
    %240 = vst.msk [vmem:[#allocation2 + $0x30] sm:$0xff] %vm221, %v231
    %241 = vrot.lane.b32.xlu0 %v145, 126
    %v242 = vpop.permute.xlu0 %241
    %243 = vrot.lane.b32.xlu0 %v147, 126
    %v244 = vpop.permute.xlu0 %243
    %245 = vrot.lane.b32.xlu0 %v216, 126
    %v246 = vpop.permute.xlu0 %245
    %vm247 = vcmask 1031168
    %v248 = vsel %vm247, %v242, %v244
    %v249 = vsel %vm247, %v244, %v246
    %253 = vst [vmem:[#allocation2 + $0x40] sm:$0xff] %v248
    %254 = vst [vmem:[#allocation2 + $0x48] sm:$0xff] %v249
    %255 = vst.msk [vmem:[#allocation2 + $0x50] sm:$0xff] %vm221, %v246
    %256 = vrot.lane.b32.xlu0 %v145, 109
    %v257 = vpop.permute.xlu0 %256
    %258 = vrot.lane.b32.xlu0 %v147, 109
    %v259 = vpop.permute.xlu0 %258
    %260 = vrot.lane.b32.xlu0 %v216, 109
    %v261 = vpop.permute.xlu0 %260
    %vm262 = vcmask 891904
    %v263 = vsel %vm262, %v257, %v259
    %v264 = vsel %vm262, %v259, %v261
    %268 = vst [vmem:[#allocation2 + $0x60] sm:$0xff] %v263
    %269 = vst [vmem:[#allocation2 + $0x68] sm:$0xff] %v264
    %270 = vst.msk [vmem:[#allocation2 + $0x70] sm:$0xff] %vm221, %v261
    %271 = vrot.lane.b32.xlu0 %v145, 108
    %v272 = vpop.permute.xlu0 %271
    %273 = vrot.lane.b32.xlu0 %v147, 108
    %v274 = vpop.permute.xlu0 %273
    %275 = vrot.lane.b32.xlu0 %v216, 108
    %v276 = vpop.permute.xlu0 %275
    %vm277 = vcmask 883712
    %v278 = vsel %vm277, %v272, %v274
    %v279 = vsel %vm277, %v274, %v276
    %283 = vst [vmem:[#allocation2 + $0x80] sm:$0xff] %v278
    %284 = vst [vmem:[#allocation2 + $0x88] sm:$0xff] %v279
    %285 = vst.msk [vmem:[#allocation2 + $0x90] sm:$0xff] %vm221, %v276
    %286 = vrot.lane.b32.xlu0 %v145, 107
    %v287 = vpop.permute.xlu0 %286
    %288 = vrot.lane.b32.xlu0 %v147, 107
    %v289 = vpop.permute.xlu0 %288
    %290 = vrot.lane.b32.xlu0 %v216, 107
    %v291 = vpop.permute.xlu0 %290
    %vm292 = vcmask 875520
    %v293 = vsel %vm292, %v287, %v289
    %v294 = vsel %vm292, %v289, %v291
    %298 = vst [vmem:[#allocation2 + $0xa0] sm:$0xff] %v293
    %299 = vst [vmem:[#allocation2 + $0xa8] sm:$0xff] %v294
    %300 = vst.msk [vmem:[#allocation2 + $0xb0] sm:$0xff] %vm221, %v291
    %301 = vrot.lane.b32.xlu0 %v145, 90
    %v302 = vpop.permute.xlu0 %301
    %303 = vrot.lane.b32.xlu0 %v147, 90
    %v304 = vpop.permute.xlu0 %303
    %305 = vrot.lane.b32.xlu0 %v216, 90
    %v306 = vpop.permute.xlu0 %305
    %vm307 = vcmask 736256
    %v308 = vsel %vm307, %v302, %v304
    %v309 = vsel %vm307, %v304, %v306
    %313 = vst [vmem:[#allocation2 + $0xc0] sm:$0xff] %v308
    %314 = vst [vmem:[#allocation2 + $0xc8] sm:$0xff] %v309
    %315 = vst.msk [vmem:[#allocation2 + $0xd0] sm:$0xff] %vm221, %v306
    %316 = vrot.lane.b32.xlu0 %v145, 89
    %v317 = vpop.permute.xlu0 %316
    %318 = vrot.lane.b32.xlu0 %v147, 89
    %v319 = vpop.permute.xlu0 %318
    %320 = vrot.lane.b32.xlu0 %v216, 89
    %v321 = vpop.permute.xlu0 %320
    %vm322 = vcmask 728064
    %v323 = vsel %vm322, %v317, %v319
    %v324 = vsel %vm322, %v319, %v321
    %328 = vst [vmem:[#allocation2 + $0xe0] sm:$0xff] %v323
    %329 = vst [vmem:[#allocation2 + $0xe8] sm:$0xff] %v324
    %330 = vst.msk [vmem:[#allocation2 + $0xf0] sm:$0xff] %vm221, %v321
    %331 = vrot.lane.b32.xlu0 %v145, 88
    %v332 = vpop.permute.xlu0 %331
    %333 = vrot.lane.b32.xlu0 %v147, 88
    %v334 = vpop.permute.xlu0 %333
    %335 = vrot.lane.b32.xlu0 %v216, 88
    %v336 = vpop.permute.xlu0 %335
    %vm337 = vcmask 719872
    %v338 = vsel %vm337, %v332, %v334
    %v339 = vsel %vm337, %v334, %v336
    %343 = vst [vmem:[#allocation2 + $0x100] sm:$0xff] %v338
    %344 = vst [vmem:[#allocation2 + $0x108] sm:$0xff] %v339
    %345 = vst.msk [vmem:[#allocation2 + $0x110] sm:$0xff] %vm221, %v336
    %v346 = vld [vmem:[%s2] sm:$0xff]
    %v347 = vld [vmem:[%s2 + $0x8] sm:$0xff]
    %v348 = vld [vmem:[#allocation2] sm:$0xff]
    %v349 = vld [vmem:[#allocation2 + $0x8] sm:$0xff]
    %v350 = vld [vmem:[#allocation2 + $0x10] sm:$0xff]
    %v351 = vld [vmem:[#allocation2 + $0x20] sm:$0xff]
    %v352 = vld [vmem:[#allocation2 + $0x28] sm:$0xff]
    %v353 = vld [vmem:[#allocation2 + $0x30] sm:$0xff]
    %v354 = vld [vmem:[#allocation2 + $0x40] sm:$0xff]
    %v355 = vld [vmem:[#allocation2 + $0x48] sm:$0xff]
    %v356 = vld [vmem:[#allocation2 + $0x50] sm:$0xff]
    %v357 = vld [vmem:[#allocation2 + $0x60] sm:$0xff]
    %v358 = vld [vmem:[#allocation2 + $0x68] sm:$0xff]
    %v359 = vld [vmem:[#allocation2 + $0x70] sm:$0xff]
    %v360 = vld [vmem:[#allocation2 + $0x80] sm:$0xff]
    %v361 = vld [vmem:[#allocation2 + $0x88] sm:$0xff]
    %v362 = vld [vmem:[#allocation2 + $0x90] sm:$0xff]
    %v363 = vld [vmem:[#allocation2 + $0xa0] sm:$0xff]
    %v364 = vld [vmem:[#allocation2 + $0xa8] sm:$0xff]
    %v365 = vld [vmem:[#allocation2 + $0xb0] sm:$0xff]
    %v366 = vld [vmem:[#allocation2 + $0xc0] sm:$0xff]
    %v367 = vld [vmem:[#allocation2 + $0xc8] sm:$0xff]
    %v368 = vld [vmem:[#allocation2 + $0xd0] sm:$0xff]
    %v369 = vld [vmem:[#allocation2 + $0xe0] sm:$0xff]
    %v370 = vld [vmem:[#allocation2 + $0xe8] sm:$0xff]
    %v371 = vld [vmem:[#allocation2 + $0xf0] sm:$0xff]
    %v372 = vld [vmem:[#allocation2 + $0x100] sm:$0xff]
    %v373 = vld [vmem:[#allocation2 + $0x108] sm:$0xff]
    %v374 = vld [vmem:[#allocation2 + $0x110] sm:$0xff]
    %v375 = vld [vmem:[%s3] sm:$0xff]
    %v376 = vld [vmem:[%s3 + $0x8] sm:$0xff]
    %378 = vset.pattern.permute.xlu0 0
    %379 = vperm.xlu0 %378, %v375
    %v380 = vpop.permute.xlu0 %379
    %383 = vset.pattern.permute.xlu0 0
    %384 = vperm.xlu0 %383, %v376
    %v385 = vpop.permute.xlu0 %384
    %vm387 = vcmask 588800
    %v389 = vsel %vm387, %v346, 0
    %v392 = vsel %vm387, %v347, 0
    %394 = vmatprep.subr.mxu0 %v349
    %395 = vmatpush1.msra.mxu0 %v348
    %396 = vmatprep.subr.mxu0 %v352
    %397 = vmatpush1.msra.mxu0 %v351
    %398 = vmatprep.subr.mxu0 %v355
    %399 = vmatpush1.msra.mxu0 %v354
    %400 = vmatprep.subr.mxu0 %v358
    %401 = vmatpush1.msra.mxu0 %v357
    %402 = vmatprep.subr.mxu0 %v361
    %403 = vmatpush1.msra.mxu0 %v360
    %404 = vmatprep.subr.mxu0 %v364
    %405 = vmatpush1.msra.mxu0 %v363
    %406 = vmatprep.subr.mxu0 %v367
    %407 = vmatpush1.msra.mxu0 %v366
    %408 = vmatprep.subr.mxu0 %v370
    %409 = vmatpush1.msra.mxu0 %v369
    %410 = vmatprep.subr.mxu0 %v373
    %411 = vmatpush1.msra.mxu0 %v372
    %412 = vmatprep.subr.mxu0 0.0
    %413 = vmatpush1.msra.mxu0 0.0
    %414 = vmatprep.subr.mxu0 0.0
    %415 = vmatpush1.msra.mxu0 0.0
    %416 = vmatprep.subr.mxu0 0.0
    %417 = vmatpush1.msra.mxu0 0.0
    %418 = vmatprep.subr.mxu0 0.0
    %419 = vmatpush1.msra.mxu0 0.0
    %420 = vmatprep.subr.mxu0 0.0
    %421 = vmatpush1.msra.mxu0 0.0
    %422 = vmatprep.subr.mxu0 0.0
    %423 = vmatpush1.msra.mxu0 0.0
    %424 = vmatprep.subr.mxu0 0.0
    %425 = vmatpush1.msra.mxu0 0.0
    %426 = vmatprep.subr.mxu0 0.0
    %427 = vmatpush1.msra.mxu0 0.0
    %428 = vmatprep.subr.mxu0 0.0
    %429 = vmatpush1.msra.mxu0 0.0
    %430 = vmatprep.subr.mxu0 0.0
    %431 = vmatpush1.msra.mxu0 0.0
    %432 = vmatprep.subr.mxu0 0.0
    %433 = vmatpush1.msra.mxu0 0.0
    %434 = vmatprep.subr.mxu0 0.0
    %435 = vmatpush1.msra.mxu0 0.0
    %436 = vmatprep.subr.mxu0 0.0
    %437 = vmatpush1.msra.mxu0 0.0
    %438 = vmatprep.subr.mxu0 0.0
    %439 = vmatpush1.msra.mxu0 0.0
    %440 = vmatprep.subr.mxu0 0.0
    %441 = vmatpush1.msra.mxu0 0.0
    %442 = vmatprep.subr.mxu0 0.0
    %443 = vmatpush1.msra.mxu0 0.0
    %444 = vmatprep.subr.mxu0 0.0
    %445 = vmatpush1.msra.mxu0 0.0
    %446 = vmatprep.subr.mxu0 0.0
    %447 = vmatpush1.msra.mxu0 0.0
    %448 = vmatprep.subr.mxu0 0.0
    %449 = vmatpush1.msra.mxu0 0.0
    %450 = vmatprep.subr.mxu0 0.0
    %451 = vmatpush1.msra.mxu0 0.0
    %452 = vmatprep.subr.mxu0 0.0
    %453 = vmatpush1.msra.mxu0 0.0
    %454 = vmatprep.subr.mxu0 0.0
    %455 = vmatpush1.msra.mxu0 0.0
    %456 = vmatprep.subr.mxu0 0.0
    %457 = vmatpush1.msra.mxu0 0.0
    %458 = vmatprep.mubr.f32.mxu0 0.0
    %459 = vmatmul.mubr.f32.gmra.mrb[0].mxu0 %v389
    %v460 = vpop.f32.mrb[0].mxu0
    %v461 = vadd.f32 %v380, %v460
    %v462 = vpop.f32.mrb[0].mxu0
    %v463 = vadd.f32 %v380, %v462
    %464 = vmatprep.mubr.f32.mxu0 0.0
    %465 = vmatmul.mubr.f32.gmra.mrb[0].mxu0 %v392
    %v466 = vpop.f32.mrb[0].mxu0
    %v467 = vadd.f32 %v385, %v466
    %v468 = vpop.f32.mrb[0].mxu0
    %v469 = vadd.f32 %v385, %v468
    %470 = vdwg.mxu0
    %471 = vmatprep.subr.mxu0 0.0
    %472 = vmatpush1.msra.mxu0 %v350
    %473 = vmatprep.subr.mxu0 0.0
    %474 = vmatpush1.msra.mxu0 %v353
    %475 = vmatprep.subr.mxu0 0.0
    %476 = vmatpush1.msra.mxu0 %v356
    %477 = vmatprep.subr.mxu0 0.0
    %478 = vmatpush1.msra.mxu0 %v359
    %479 = vmatprep.subr.mxu0 0.0
    %480 = vmatpush1.msra.mxu0 %v362
    %481 = vmatprep.subr.mxu0 0.0
    %482 = vmatpush1.msra.mxu0 %v365
    %483 = vmatprep.subr.mxu0 0.0
    %484 = vmatpush1.msra.mxu0 %v368
    %485 = vmatprep.subr.mxu0 0.0
    %486 = vmatpush1.msra.mxu0 %v371
    %487 = vmatprep.subr.mxu0 0.0
    %488 = vmatpush1.msra.mxu0 %v374
    %489 = vmatprep.subr.mxu0 0.0
    %490 = vmatpush1.msra.mxu0 0.0
    %491 = vmatprep.subr.mxu0 0.0
    %492 = vmatpush1.msra.mxu0 0.0
    %493 = vmatprep.subr.mxu0 0.0
    %494 = vmatpush1.msra.mxu0 0.0
    %495 = vmatprep.subr.mxu0 0.0
    %496 = vmatpush1.msra.mxu0 0.0
    %497 = vmatprep.subr.mxu0 0.0
    %498 = vmatpush1.msra.mxu0 0.0
    %499 = vmatprep.subr.mxu0 0.0
    %500 = vmatpush1.msra.mxu0 0.0
    %501 = vmatprep.subr.mxu0 0.0
    %502 = vmatpush1.msra.mxu0 0.0
    %503 = vmatprep.subr.mxu0 0.0
    %504 = vmatpush1.msra.mxu0 0.0
    %505 = vmatprep.subr.mxu0 0.0
    %506 = vmatpush1.msra.mxu0 0.0
    %507 = vmatprep.subr.mxu0 0.0
    %508 = vmatpush1.msra.mxu0 0.0
    %509 = vmatprep.subr.mxu0 0.0
    %510 = vmatpush1.msra.mxu0 0.0
    %511 = vmatprep.subr.mxu0 0.0
    %512 = vmatpush1.msra.mxu0 0.0
    %513 = vmatprep.subr.mxu0 0.0
    %514 = vmatpush1.msra.mxu0 0.0
    %515 = vmatprep.subr.mxu0 0.0
    %516 = vmatpush1.msra.mxu0 0.0
    %517 = vmatprep.subr.mxu0 0.0
    %518 = vmatpush1.msra.mxu0 0.0
    %519 = vmatprep.subr.mxu0 0.0
    %520 = vmatpush1.msra.mxu0 0.0
    %521 = vmatprep.subr.mxu0 0.0
    %522 = vmatpush1.msra.mxu0 0.0
    %523 = vmatprep.subr.mxu0 0.0
    %524 = vmatpush1.msra.mxu0 0.0
    %525 = vmatprep.subr.mxu0 0.0
    %526 = vmatpush1.msra.mxu0 0.0
    %527 = vmatprep.subr.mxu0 0.0
    %528 = vmatpush1.msra.mxu0 0.0
    %529 = vmatprep.subr.mxu0 0.0
    %530 = vmatpush1.msra.mxu0 0.0
    %531 = vmatprep.subr.mxu0 0.0
    %532 = vmatpush1.msra.mxu0 0.0
    %533 = vmatprep.subr.mxu0 0.0
    %534 = vmatpush1.msra.mxu0 0.0
    %535 = vmatprep.mubr.f32.mxu0 0.0
    %536 = vmatmul.mubr.f32.gmra.mrb[0].mxu0 %v389
    %v537 = vpop.f32.mrb[0].mxu0
    %v538 = vadd.f32 %v380, %v537
    %v539 = vpop.f32.mrb[0].mxu0
    %540 = vmatprep.mubr.f32.mxu0 0.0
    %541 = vmatmul.mubr.f32.gmra.mrb[0].mxu0 %v392
    %v542 = vpop.f32.mrb[0].mxu0
    %v543 = vadd.f32 %v385, %v542
    %v544 = vpop.f32.mrb[0].mxu0
    %545 = vdwg.mxu0
    %vm546 = vcmp.gt.f32.partialorder %v461, 0.0
    %vm547 = vcmp.gt.f32.partialorder %v463, 0.0
    %vm548 = vcmp.gt.f32.partialorder %v538, 0.0
    %vm549 = vcmp.gt.f32.partialorder %v467, 0.0
    %vm550 = vcmp.gt.f32.partialorder %v469, 0.0
    %vm551 = vcmp.gt.f32.partialorder %v543, 0.0
    %v552 = vmul.f32 %v461, 0.01
    %v553 = vmul.f32 %v463, 0.01
    %v554 = vmul.f32 %v538, 0.01
    %v555 = vmul.f32 %v467, 0.01
    %v556 = vmul.f32 %v469, 0.01
    %v557 = vmul.f32 %v543, 0.01
    %v558 = vsel %vm546, %v461, %v552
    %v559 = vsel %vm547, %v463, %v553
    %v560 = vsel %vm548, %v538, %v554
    %v561 = vsel %vm549, %v467, %v555
    %v562 = vsel %vm550, %v469, %v556
    %v563 = vsel %vm551, %v543, %v557
    %v564 = vld [vmem:[#allocation3] sm:$0xff]
    %v565 = vld [vmem:[#allocation3 + $0x8] sm:$0xff]
    %v566 = vld [vmem:[#allocation3 + $0x10] sm:$0xff]
    %v567 = vld [vmem:[#allocation3 + $0x18] sm:$0xff]
    %v568 = vld [vmem:[#allocation3 + $0x20] sm:$0xff]
    %v569 = vld [vmem:[#allocation3 + $0x28] sm:$0xff]
    %v570 = vld [vmem:[#allocation3 + $0x30] sm:$0xff]
    %v571 = vld [vmem:[#allocation3 + $0x38] sm:$0xff]
    %v572 = vld [vmem:[#allocation3 + $0x40] sm:$0xff]
    %v573 = vld [vmem:[#allocation3 + $0x48] sm:$0xff]
    %v574 = vld [vmem:[#allocation3 + $0x50] sm:$0xff]
    %v575 = vld [vmem:[#allocation3 + $0x58] sm:$0xff]
    %v576 = vld [vmem:[#allocation3 + $0x60] sm:$0xff]
    %v577 = vld [vmem:[#allocation3 + $0x68] sm:$0xff]
    %v578 = vld [vmem:[#allocation3 + $0x70] sm:$0xff]
    %v579 = vld [vmem:[#allocation3 + $0x78] sm:$0xff]
    %v580 = vld [vmem:[#allocation3 + $0x80] sm:$0xff]
    %v581 = vld [vmem:[#allocation3 + $0x88] sm:$0xff]
    %v582 = vld [vmem:[#allocation3 + $0x90] sm:$0xff]
    %v583 = vld [vmem:[#allocation3 + $0x98] sm:$0xff]
    %v584 = vld [vmem:[#allocation3 + $0xa0] sm:$0xff]
    %v585 = vld [vmem:[#allocation3 + $0xa8] sm:$0xff]
    %v586 = vld [vmem:[#allocation3 + $0xb0] sm:$0xff]
    %v587 = vld [vmem:[#allocation3 + $0xb8] sm:$0xff]
    %v588 = vld [vmem:[#allocation3 + $0xc0] sm:$0xff]
    %v589 = vld [vmem:[#allocation3 + $0xc8] sm:$0xff]
    %v590 = vld [vmem:[#allocation3 + $0xd0] sm:$0xff]
    %v591 = vld [vmem:[#allocation3 + $0xd8] sm:$0xff]
    %v592 = vld [vmem:[#allocation3 + $0xe0] sm:$0xff]
    %v593 = vld [vmem:[#allocation3 + $0xe8] sm:$0xff]
    %v594 = vld [vmem:[#allocation3 + $0xf0] sm:$0xff]
    %v595 = vld [vmem:[#allocation3 + $0xf8] sm:$0xff]
    %v596 = vld [vmem:[#allocation3 + $0x100] sm:$0xff]
    %v597 = vld [vmem:[#allocation3 + $0x108] sm:$0xff]
    %v598 = vld [vmem:[#allocation3 + $0x110] sm:$0xff]
    %v599 = vld [vmem:[#allocation3 + $0x118] sm:$0xff]
    %v600 = vld [vmem:[#allocation3 + $0x120] sm:$0xff]
    %v601 = vld [vmem:[#allocation3 + $0x128] sm:$0xff]
    %v602 = vld [vmem:[#allocation3 + $0x130] sm:$0xff]
    %v603 = vld [vmem:[#allocation3 + $0x138] sm:$0xff]
    %v604 = vld [vmem:[#allocation3 + $0x140] sm:$0xff]
    %v605 = vld [vmem:[#allocation3 + $0x148] sm:$0xff]
    %v606 = vld [vmem:[#allocation3 + $0x150] sm:$0xff]
    %v607 = vld [vmem:[#allocation3 + $0x158] sm:$0xff]
    %v608 = vld [vmem:[#allocation3 + $0x160] sm:$0xff]
    %v609 = vld [vmem:[#allocation3 + $0x168] sm:$0xff]
    %v610 = vld [vmem:[#allocation3 + $0x170] sm:$0xff]
    %v611 = vld [vmem:[#allocation3 + $0x178] sm:$0xff]
    %v612 = vld [vmem:[#allocation3 + $0x180] sm:$0xff]
    %v613 = vld [vmem:[#allocation3 + $0x188] sm:$0xff]
    %v614 = vld [vmem:[#allocation3 + $0x190] sm:$0xff]
    %v615 = vld [vmem:[#allocation3 + $0x198] sm:$0xff]
    %v616 = vld [vmem:[#allocation3 + $0x1a0] sm:$0xff]
    %v617 = vld [vmem:[#allocation3 + $0x1a8] sm:$0xff]
    %v618 = vld [vmem:[#allocation3 + $0x1b0] sm:$0xff]
    %v619 = vld [vmem:[#allocation3 + $0x1b8] sm:$0xff]
    %v620 = vld [vmem:[#allocation3 + $0x1c0] sm:$0xff]
    %v621 = vld [vmem:[#allocation3 + $0x1c8] sm:$0xff]
    %v622 = vld [vmem:[#allocation3 + $0x1d0] sm:$0xff]
    %v623 = vld [vmem:[#allocation3 + $0x1d8] sm:$0xff]
    %v624 = vld [vmem:[#allocation3 + $0x1e0] sm:$0xff]
    %v625 = vld [vmem:[#allocation3 + $0x1e8] sm:$0xff]
    %v626 = vld [vmem:[#allocation3 + $0x1f0] sm:$0xff]
    %v627 = vld [vmem:[#allocation3 + $0x1f8] sm:$0xff]
    %v628 = vld [vmem:[#allocation3 + $0x200] sm:$0xff]
    %v629 = vld [vmem:[#allocation3 + $0x208] sm:$0xff]
    %v630 = vld [vmem:[#allocation3 + $0x210] sm:$0xff]
    %v631 = vld [vmem:[#allocation3 + $0x218] sm:$0xff]
    %v632 = vld [vmem:[#allocation3 + $0x220] sm:$0xff]
    %v633 = vld [vmem:[#allocation3 + $0x228] sm:$0xff]
    %v634 = vld [vmem:[#allocation3 + $0x230] sm:$0xff]
    %v635 = vld [vmem:[#allocation3 + $0x238] sm:$0xff]
    %v636 = vld [vmem:[#allocation3 + $0x240] sm:$0xff]
    %v637 = vld [vmem:[#allocation3 + $0x248] sm:$0xff]
    %v638 = vld [vmem:[#allocation3 + $0x250] sm:$0xff]
    %v639 = vld [vmem:[#allocation3 + $0x258] sm:$0xff]
    %v640 = vld [vmem:[#allocation3 + $0x260] sm:$0xff]
    %v641 = vld [vmem:[#allocation3 + $0x268] sm:$0xff]
    %v642 = vld [vmem:[#allocation3 + $0x270] sm:$0xff]
    %v643 = vld [vmem:[#allocation3 + $0x278] sm:$0xff]
    %v644 = vld [vmem:[#allocation3 + $0x280] sm:$0xff]
    %v645 = vld [vmem:[#allocation3 + $0x288] sm:$0xff]
    %v646 = vld [vmem:[#allocation3 + $0x290] sm:$0xff]
    %v647 = vld [vmem:[#allocation3 + $0x298] sm:$0xff]
    %v648 = vld [vmem:[#allocation3 + $0x2a0] sm:$0xff]
    %v649 = vld [vmem:[#allocation3 + $0x2a8] sm:$0xff]
    %v650 = vld [vmem:[#allocation3 + $0x2b0] sm:$0xff]
    %v651 = vld [vmem:[#allocation3 + $0x2b8] sm:$0xff]
    %v652 = vld [vmem:[#allocation3 + $0x2c0] sm:$0xff]
    %v653 = vld [vmem:[#allocation3 + $0x2c8] sm:$0xff]
    %v654 = vld [vmem:[#allocation3 + $0x2d0] sm:$0xff]
    %v655 = vld [vmem:[#allocation3 + $0x2d8] sm:$0xff]
    %v656 = vld [vmem:[#allocation3 + $0x2e0] sm:$0xff]
    %v657 = vld [vmem:[#allocation3 + $0x2e8] sm:$0xff]
    %v658 = vld [vmem:[#allocation3 + $0x2f0] sm:$0xff]
    %v659 = vld [vmem:[#allocation3 + $0x2f8] sm:$0xff]
    %v660 = vld [vmem:[#allocation3 + $0x300] sm:$0xff]
    %v661 = vld [vmem:[#allocation3 + $0x308] sm:$0xff]
    %v662 = vld [vmem:[#allocation3 + $0x310] sm:$0xff]
    %v663 = vld [vmem:[#allocation3 + $0x318] sm:$0xff]
    %v664 = vld [vmem:[#allocation3 + $0x320] sm:$0xff]
    %v665 = vld [vmem:[#allocation3 + $0x328] sm:$0xff]
    %v666 = vld [vmem:[#allocation3 + $0x330] sm:$0xff]
    %v667 = vld [vmem:[#allocation3 + $0x338] sm:$0xff]
    %v668 = vld [vmem:[#allocation3 + $0x340] sm:$0xff]
    %v669 = vld [vmem:[#allocation3 + $0x348] sm:$0xff]
    %v670 = vld [vmem:[#allocation3 + $0x350] sm:$0xff]
    %v671 = vld [vmem:[#allocation3 + $0x358] sm:$0xff]
    %v672 = vld [vmem:[#allocation3 + $0x360] sm:$0xff]
    %v673 = vld [vmem:[#allocation3 + $0x368] sm:$0xff]
    %v674 = vld [vmem:[#allocation3 + $0x370] sm:$0xff]
    %v675 = vld [vmem:[#allocation3 + $0x378] sm:$0xff]
    %v676 = vld [vmem:[#allocation3 + $0x380] sm:$0xff]
    %v677 = vld [vmem:[#allocation3 + $0x388] sm:$0xff]
    %v678 = vld [vmem:[#allocation3 + $0x390] sm:$0xff]
    %v679 = vld [vmem:[#allocation3 + $0x398] sm:$0xff]
    %v680 = vld [vmem:[#allocation3 + $0x3a0] sm:$0xff]
    %v681 = vld [vmem:[#allocation3 + $0x3a8] sm:$0xff]
    %v682 = vld [vmem:[#allocation3 + $0x3b0] sm:$0xff]
    %v683 = vld [vmem:[#allocation3 + $0x3b8] sm:$0xff]
    %v684 = vld [vmem:[#allocation3 + $0x3c0] sm:$0xff]
    %v685 = vld [vmem:[#allocation3 + $0x3c8] sm:$0xff]
    %v686 = vld [vmem:[#allocation3 + $0x3d0] sm:$0xff]
    %v687 = vld [vmem:[#allocation3 + $0x3d8] sm:$0xff]
    %v688 = vld [vmem:[#allocation3 + $0x3e0] sm:$0xff]
    %v689 = vld [vmem:[#allocation3 + $0x3e8] sm:$0xff]
    %v690 = vld [vmem:[#allocation3 + $0x3f0] sm:$0xff]
    %v691 = vld [vmem:[#allocation3 + $0x3f8] sm:$0xff]
    %v692 = vld [vmem:[#allocation3 + $0x400] sm:$0xff]
    %v693 = vld [vmem:[#allocation3 + $0x408] sm:$0xff]
    %v694 = vld [vmem:[#allocation3 + $0x410] sm:$0xff]
    %v695 = vld [vmem:[#allocation3 + $0x418] sm:$0xff]
    %v696 = vld [vmem:[#allocation3 + $0x420] sm:$0xff]
    %v697 = vld [vmem:[#allocation3 + $0x428] sm:$0xff]
    %v698 = vld [vmem:[#allocation3 + $0x430] sm:$0xff]
    %v699 = vld [vmem:[#allocation3 + $0x438] sm:$0xff]
    %v700 = vld [vmem:[#allocation3 + $0x440] sm:$0xff]
    %v701 = vld [vmem:[#allocation3 + $0x448] sm:$0xff]
    %v702 = vld [vmem:[#allocation3 + $0x450] sm:$0xff]
    %v703 = vld [vmem:[#allocation3 + $0x458] sm:$0xff]
    %v704 = vld [vmem:[#allocation3 + $0x460] sm:$0xff]
    %v705 = vld [vmem:[#allocation3 + $0x468] sm:$0xff]
    %v706 = vld [vmem:[#allocation3 + $0x470] sm:$0xff]
    %v707 = vld [vmem:[#allocation3 + $0x478] sm:$0xff]
    %v708 = vld [vmem:[#allocation3 + $0x480] sm:$0xff]
    %v709 = vld [vmem:[#allocation3 + $0x488] sm:$0xff]
    %v710 = vld [vmem:[#allocation3 + $0x490] sm:$0xff]
    %v711 = vld [vmem:[#allocation3 + $0x498] sm:$0xff]
    %v712 = vld [vmem:[#allocation3 + $0x4a0] sm:$0xff]
    %v713 = vld [vmem:[#allocation3 + $0x4a8] sm:$0xff]
    %v714 = vld [vmem:[#allocation3 + $0x4b0] sm:$0xff]
    %v715 = vld [vmem:[#allocation3 + $0x4b8] sm:$0xff]
    %v716 = vld [vmem:[#allocation3 + $0x4c0] sm:$0xff]
    %v717 = vld [vmem:[#allocation3 + $0x4c8] sm:$0xff]
    %v718 = vld [vmem:[#allocation3 + $0x4d0] sm:$0xff]
    %v719 = vld [vmem:[#allocation3 + $0x4d8] sm:$0xff]
    %v720 = vld [vmem:[#allocation3 + $0x4e0] sm:$0xff]
    %v721 = vld [vmem:[#allocation3 + $0x4e8] sm:$0xff]
    %v722 = vld [vmem:[#allocation3 + $0x4f0] sm:$0xff]
    %v723 = vld [vmem:[#allocation3 + $0x4f8] sm:$0xff]
    %v724 = vld [vmem:[#allocation3 + $0x500] sm:$0x7]
    %v725 = vld [vmem:[#allocation3 + $0x508] sm:$0x7]
    %v726 = vld [vmem:[#allocation3 + $0x510] sm:$0x7]
    %v727 = vld [vmem:[#allocation3 + $0x518] sm:$0x7]
    %v729 = vsel %vm221, %v560, 0
    %v732 = vsel %vm221, %v563, 0
    %vm734 = vcmask 1042432
    %v736 = vsel %vm734, %v724, 0
    %v739 = vsel %vm734, %v725, 0
    %v742 = vsel %vm734, %v726, 0
    %v745 = vsel %vm734, %v727, 0
    %747 = vmatprep.subr.mxu0 %v565
    %748 = vmatpush1.msra.mxu0 %v564
    %749 = vmatprep.subr.mxu0 %v569
    %750 = vmatpush1.msra.mxu0 %v568
    %751 = vmatprep.subr.mxu0 %v573
    %752 = vmatpush1.msra.mxu0 %v572
    %753 = vmatprep.subr.mxu0 %v577
    %754 = vmatpush1.msra.mxu0 %v576
    %755 = vmatprep.subr.mxu0 %v581
    %756 = vmatpush1.msra.mxu0 %v580
    %757 = vmatprep.subr.mxu0 %v585
    %758 = vmatpush1.msra.mxu0 %v584
    %759 = vmatprep.subr.mxu0 %v589
    %760 = vmatpush1.msra.mxu0 %v588
    %761 = vmatprep.subr.mxu0 %v593
    %762 = vmatpush1.msra.mxu0 %v592
    %763 = vmatprep.subr.mxu0 %v597
    %764 = vmatpush1.msra.mxu0 %v596
    %765 = vmatprep.subr.mxu0 %v601
    %766 = vmatpush1.msra.mxu0 %v600
    %767 = vmatprep.subr.mxu0 %v605
    %768 = vmatpush1.msra.mxu0 %v604
    %769 = vmatprep.subr.mxu0 %v609
    %770 = vmatpush1.msra.mxu0 %v608
    %771 = vmatprep.subr.mxu0 %v613
    %772 = vmatpush1.msra.mxu0 %v612
    %773 = vmatprep.subr.mxu0 %v617
    %774 = vmatpush1.msra.mxu0 %v616
    %775 = vmatprep.subr.mxu0 %v621
    %776 = vmatpush1.msra.mxu0 %v620
    %777 = vmatprep.subr.mxu0 %v625
    %778 = vmatpush1.msra.mxu0 %v624
    %779 = vmatprep.subr.mxu0 %v629
    %780 = vmatpush1.msra.mxu0 %v628
    %781 = vmatprep.subr.mxu0 %v633
    %782 = vmatpush1.msra.mxu0 %v632
    %783 = vmatprep.subr.mxu0 %v637
    %784 = vmatpush1.msra.mxu0 %v636
    %785 = vmatprep.subr.mxu0 %v641
    %786 = vmatpush1.msra.mxu0 %v640
    %787 = vmatprep.subr.mxu0 %v645
    %788 = vmatpush1.msra.mxu0 %v644
    %789 = vmatprep.subr.mxu0 %v649
    %790 = vmatpush1.msra.mxu0 %v648
    %791 = vmatprep.subr.mxu0 %v653
    %792 = vmatpush1.msra.mxu0 %v652
    %793 = vmatprep.subr.mxu0 %v657
    %794 = vmatpush1.msra.mxu0 %v656
    %795 = vmatprep.subr.mxu0 %v661
    %796 = vmatpush1.msra.mxu0 %v660
    %797 = vmatprep.subr.mxu0 %v665
    %798 = vmatpush1.msra.mxu0 %v664
    %799 = vmatprep.subr.mxu0 %v669
    %800 = vmatpush1.msra.mxu0 %v668
    %801 = vmatprep.subr.mxu0 %v673
    %802 = vmatpush1.msra.mxu0 %v672
    %803 = vmatprep.subr.mxu0 %v677
    %804 = vmatpush1.msra.mxu0 %v676
    %805 = vmatprep.subr.mxu0 %v681
    %806 = vmatpush1.msra.mxu0 %v680
    %807 = vmatprep.subr.mxu0 %v685
    %808 = vmatpush1.msra.mxu0 %v684
    %809 = vmatprep.subr.mxu0 %v689
    %810 = vmatpush1.msra.mxu0 %v688
    %811 = vmatprep.mubr.f32.mxu0 %v559
    %812 = vmatmul.mubr.f32.gmra.mrb[0].mxu0 %v558
    %v813 = vpop.f32.mrb[0].mxu0
    %v814 = vadd.f32 0.0, %v813
    %v815 = vpop.f32.mrb[0].mxu0
    %v816 = vadd.f32 0.0, %v815
    %817 = vmatprep.mubr.f32.mxu0 %v562
    %818 = vmatmul.mubr.f32.gmra.mrb[0].mxu0 %v561
    %v819 = vpop.f32.mrb[0].mxu0
    %v820 = vadd.f32 0.0, %v819
    %v821 = vpop.f32.mrb[0].mxu0
    %v822 = vadd.f32 0.0, %v821
    %823 = vdwg.mxu0
    %824 = vmatprep.subr.mxu0 %v693
    %825 = vmatpush1.msra.mxu0 %v692
    %826 = vmatprep.subr.mxu0 %v697
    %827 = vmatpush1.msra.mxu0 %v696
    %828 = vmatprep.subr.mxu0 %v701
    %829 = vmatpush1.msra.mxu0 %v700
    %830 = vmatprep.subr.mxu0 %v705
    %831 = vmatpush1.msra.mxu0 %v704
    %832 = vmatprep.subr.mxu0 %v709
    %833 = vmatpush1.msra.mxu0 %v708
    %834 = vmatprep.subr.mxu0 %v713
    %835 = vmatpush1.msra.mxu0 %v712
    %836 = vmatprep.subr.mxu0 %v717
    %837 = vmatpush1.msra.mxu0 %v716
    %838 = vmatprep.subr.mxu0 %v721
    %839 = vmatpush1.msra.mxu0 %v720
    %840 = vmatprep.subr.mxu0 %v739
    %841 = vmatpush1.msra.mxu0 %v736
    %842 = vmatprep.subr.mxu0 0.0
    %843 = vmatpush1.msra.mxu0 0.0
    %844 = vmatprep.subr.mxu0 0.0
    %845 = vmatpush1.msra.mxu0 0.0
    %846 = vmatprep.subr.mxu0 0.0
    %847 = vmatpush1.msra.mxu0 0.0
    %848 = vmatprep.subr.mxu0 0.0
    %849 = vmatpush1.msra.mxu0 0.0
    %850 = vmatprep.subr.mxu0 0.0
    %851 = vmatpush1.msra.mxu0 0.0
    %852 = vmatprep.subr.mxu0 0.0
    %853 = vmatpush1.msra.mxu0 0.0
    %854 = vmatprep.subr.mxu0 0.0
    %855 = vmatpush1.msra.mxu0 0.0
    %856 = vmatprep.subr.mxu0 0.0
    %857 = vmatpush1.msra.mxu0 0.0
    %858 = vmatprep.subr.mxu0 0.0
    %859 = vmatpush1.msra.mxu0 0.0
    %860 = vmatprep.subr.mxu0 0.0
    %861 = vmatpush1.msra.mxu0 0.0
    %862 = vmatprep.subr.mxu0 0.0
    %863 = vmatpush1.msra.mxu0 0.0
    %864 = vmatprep.subr.mxu0 0.0
    %865 = vmatpush1.msra.mxu0 0.0
    %866 = vmatprep.subr.mxu0 0.0
    %867 = vmatpush1.msra.mxu0 0.0
    %868 = vmatprep.subr.mxu0 0.0
    %869 = vmatpush1.msra.mxu0 0.0
    %870 = vmatprep.subr.mxu0 0.0
    %871 = vmatpush1.msra.mxu0 0.0
    %872 = vmatprep.subr.mxu0 0.0
    %873 = vmatpush1.msra.mxu0 0.0
    %874 = vmatprep.subr.mxu0 0.0
    %875 = vmatpush1.msra.mxu0 0.0
    %876 = vmatprep.subr.mxu0 0.0
    %877 = vmatpush1.msra.mxu0 0.0
    %878 = vmatprep.subr.mxu0 0.0
    %879 = vmatpush1.msra.mxu0 0.0
    %880 = vmatprep.subr.mxu0 0.0
    %881 = vmatpush1.msra.mxu0 0.0
    %882 = vmatprep.subr.mxu0 0.0
    %883 = vmatpush1.msra.mxu0 0.0
    %884 = vmatprep.subr.mxu0 0.0
    %885 = vmatpush1.msra.mxu0 0.0
    %886 = vmatprep.subr.mxu0 0.0
    %887 = vmatpush1.msra.mxu0 0.0
    %888 = vmatprep.mubr.f32.mxu0 0.0
    %889 = vmatmul.mubr.f32.gmra.mrb[0].mxu0 %v729
    %v890 = vpop.f32.mrb[0].mxu0
    %v891 = vadd.f32 %v814, %v890
    %v892 = vpop.f32.mrb[0].mxu0
    %v893 = vadd.f32 %v816, %v892
    %894 = vmatprep.mubr.f32.mxu0 0.0
    %895 = vmatmul.mubr.f32.gmra.mrb[0].mxu0 %v732
    %v896 = vpop.f32.mrb[0].mxu0
    %v897 = vadd.f32 %v820, %v896
    %v898 = vpop.f32.mrb[0].mxu0
    %v899 = vadd.f32 %v822, %v898
    %900 = vdwg.mxu0
    %901 = vmatprep.subr.mxu0 %v567
    %902 = vmatpush1.msra.mxu0 %v566
    %903 = vmatprep.subr.mxu0 %v571
    %904 = vmatpush1.msra.mxu0 %v570
    %905 = vmatprep.subr.mxu0 %v575
    %906 = vmatpush1.msra.mxu0 %v574
    %907 = vmatprep.subr.mxu0 %v579
    %908 = vmatpush1.msra.mxu0 %v578
    %909 = vmatprep.subr.mxu0 %v583
    %910 = vmatpush1.msra.mxu0 %v582
    %911 = vmatprep.subr.mxu0 %v587
    %912 = vmatpush1.msra.mxu0 %v586
    %913 = vmatprep.subr.mxu0 %v591
    %914 = vmatpush1.msra.mxu0 %v590
    %915 = vmatprep.subr.mxu0 %v595
    %916 = vmatpush1.msra.mxu0 %v594
    %917 = vmatprep.subr.mxu0 %v599
    %918 = vmatpush1.msra.mxu0 %v598
    %919 = vmatprep.subr.mxu0 %v603
    %920 = vmatpush1.msra.mxu0 %v602
    %921 = vmatprep.subr.mxu0 %v607
    %922 = vmatpush1.msra.mxu0 %v606
    %923 = vmatprep.subr.mxu0 %v611
    %924 = vmatpush1.msra.mxu0 %v610
    %925 = vmatprep.subr.mxu0 %v615
    %926 = vmatpush1.msra.mxu0 %v614
    %927 = vmatprep.subr.mxu0 %v619
    %928 = vmatpush1.msra.mxu0 %v618
    %929 = vmatprep.subr.mxu0 %v623
    %930 = vmatpush1.msra.mxu0 %v622
    %931 = vmatprep.subr.mxu0 %v627
    %932 = vmatpush1.msra.mxu0 %v626
    %933 = vmatprep.subr.mxu0 %v631
    %934 = vmatpush1.msra.mxu0 %v630
    %935 = vmatprep.subr.mxu0 %v635
    %936 = vmatpush1.msra.mxu0 %v634
    %937 = vmatprep.subr.mxu0 %v639
    %938 = vmatpush1.msra.mxu0 %v638
    %939 = vmatprep.subr.mxu0 %v643
    %940 = vmatpush1.msra.mxu0 %v642
    %941 = vmatprep.subr.mxu0 %v647
    %942 = vmatpush1.msra.mxu0 %v646
    %943 = vmatprep.subr.mxu0 %v651
    %944 = vmatpush1.msra.mxu0 %v650
    %945 = vmatprep.subr.mxu0 %v655
    %946 = vmatpush1.msra.mxu0 %v654
    %947 = vmatprep.subr.mxu0 %v659
    %948 = vmatpush1.msra.mxu0 %v658
    %949 = vmatprep.subr.mxu0 %v663
    %950 = vmatpush1.msra.mxu0 %v662
    %951 = vmatprep.subr.mxu0 %v667
    %952 = vmatpush1.msra.mxu0 %v666
    %953 = vmatprep.subr.mxu0 %v671
    %954 = vmatpush1.msra.mxu0 %v670
    %955 = vmatprep.subr.mxu0 %v675
    %956 = vmatpush1.msra.mxu0 %v674
    %957 = vmatprep.subr.mxu0 %v679
    %958 = vmatpush1.msra.mxu0 %v678
    %959 = vmatprep.subr.mxu0 %v683
    %960 = vmatpush1.msra.mxu0 %v682
    %961 = vmatprep.subr.mxu0 %v687
    %962 = vmatpush1.msra.mxu0 %v686
    %963 = vmatprep.subr.mxu0 %v691
    %964 = vmatpush1.msra.mxu0 %v690
    %965 = vmatprep.mubr.f32.mxu0 %v559
    %966 = vmatmul.mubr.f32.gmra.mrb[0].mxu0 %v558
    %v967 = vpop.f32.mrb[0].mxu0
    %v968 = vadd.f32 0.0, %v967
    %v969 = vpop.f32.mrb[0].mxu0
    %v970 = vadd.f32 0.0, %v969
    %971 = vmatprep.mubr.f32.mxu0 %v562
    %972 = vmatmul.mubr.f32.gmra.mrb[0].mxu0 %v561
    %v973 = vpop.f32.mrb[0].mxu0
    %v974 = vadd.f32 0.0, %v973
    %v975 = vpop.f32.mrb[0].mxu0
    %v976 = vadd.f32 0.0, %v975
    %977 = vdwg.mxu0
    %978 = vmatprep.subr.mxu0 %v695
    %979 = vmatpush1.msra.mxu0 %v694
    %980 = vmatprep.subr.mxu0 %v699
    %981 = vmatpush1.msra.mxu0 %v698
    %982 = vmatprep.subr.mxu0 %v703
    %983 = vmatpush1.msra.mxu0 %v702
    %984 = vmatprep.subr.mxu0 %v707
    %985 = vmatpush1.msra.mxu0 %v706
    %986 = vmatprep.subr.mxu0 %v711
    %987 = vmatpush1.msra.mxu0 %v710
    %988 = vmatprep.subr.mxu0 %v715
    %989 = vmatpush1.msra.mxu0 %v714
    %990 = vmatprep.subr.mxu0 %v719
    %991 = vmatpush1.msra.mxu0 %v718
    %992 = vmatprep.subr.mxu0 %v723
    %993 = vmatpush1.msra.mxu0 %v722
    %994 = vmatprep.subr.mxu0 %v745
    %995 = vmatpush1.msra.mxu0 %v742
    %996 = vmatprep.subr.mxu0 0.0
    %997 = vmatpush1.msra.mxu0 0.0
    %998 = vmatprep.subr.mxu0 0.0
    %999 = vmatpush1.msra.mxu0 0.0
    %1000 = vmatprep.subr.mxu0 0.0
    %1001 = vmatpush1.msra.mxu0 0.0
    %1002 = vmatprep.subr.mxu0 0.0
    %1003 = vmatpush1.msra.mxu0 0.0
    %1004 = vmatprep.subr.mxu0 0.0
    %1005 = vmatpush1.msra.mxu0 0.0
    %1006 = vmatprep.subr.mxu0 0.0
    %1007 = vmatpush1.msra.mxu0 0.0
    %1008 = vmatprep.subr.mxu0 0.0
    %1009 = vmatpush1.msra.mxu0 0.0
    %1010 = vmatprep.subr.mxu0 0.0
    %1011 = vmatpush1.msra.mxu0 0.0
    %1012 = vmatprep.subr.mxu0 0.0
    %1013 = vmatpush1.msra.mxu0 0.0
    %1014 = vmatprep.subr.mxu0 0.0
    %1015 = vmatpush1.msra.mxu0 0.0
    %1016 = vmatprep.subr.mxu0 0.0
    %1017 = vmatpush1.msra.mxu0 0.0
    %1018 = vmatprep.subr.mxu0 0.0
    %1019 = vmatpush1.msra.mxu0 0.0
    %1020 = vmatprep.subr.mxu0 0.0
    %1021 = vmatpush1.msra.mxu0 0.0
    %1022 = vmatprep.subr.mxu0 0.0
    %1023 = vmatpush1.msra.mxu0 0.0
    %1024 = vmatprep.subr.mxu0 0.0
    %1025 = vmatpush1.msra.mxu0 0.0
    %1026 = vmatprep.subr.mxu0 0.0
    %1027 = vmatpush1.msra.mxu0 0.0
    %1028 = vmatprep.subr.mxu0 0.0
    %1029 = vmatpush1.msra.mxu0 0.0
    %1030 = vmatprep.subr.mxu0 0.0
    %1031 = vmatpush1.msra.mxu0 0.0
    %1032 = vmatprep.subr.mxu0 0.0
    %1033 = vmatpush1.msra.mxu0 0.0
    %1034 = vmatprep.subr.mxu0 0.0
    %1035 = vmatpush1.msra.mxu0 0.0
    %1036 = vmatprep.subr.mxu0 0.0
    %1037 = vmatpush1.msra.mxu0 0.0
    %1038 = vmatprep.subr.mxu0 0.0
    %1039 = vmatpush1.msra.mxu0 0.0
    %1040 = vmatprep.subr.mxu0 0.0
    %1041 = vmatpush1.msra.mxu0 0.0
    %1042 = vmatprep.mubr.f32.mxu0 0.0
    %1043 = vmatmul.mubr.f32.gmra.mrb[0].mxu0 %v729
    %v1044 = vpop.f32.mrb[0].mxu0
    %v1045 = vadd.f32 %v968, %v1044
    %v1046 = vpop.f32.mrb[0].mxu0
    %v1047 = vadd.f32 %v970, %v1046
    %1048 = vmatprep.mubr.f32.mxu0 0.0
    %1049 = vmatmul.mubr.f32.gmra.mrb[0].mxu0 %v732
    %v1050 = vpop.f32.mrb[0].mxu0
    %v1051 = vadd.f32 %v974, %v1050
    %v1052 = vpop.f32.mrb[0].mxu0
    %v1053 = vadd.f32 %v976, %v1052
    %1054 = vdwg.mxu0
    %1055 = vst [vmem:[#allocation2] sm:$0xff] %v891
    %1056 = vst [vmem:[#allocation2 + $0x8] sm:$0xff] %v893
    %1057 = vst [vmem:[#allocation2 + $0x10] sm:$0xff] %v1045
    %vm1058 = vcmask 121856
    %1059 = vst.msk [vmem:[#allocation2 + $0x18] sm:$0xff] %vm1058, %v1047
    %1060 = vst [vmem:[#allocation2 + $0x20] sm:$0xff] %v897
    %1061 = vst [vmem:[#allocation2 + $0x28] sm:$0xff] %v899
    %1062 = vst [vmem:[#allocation2 + $0x30] sm:$0xff] %v1051
    %1063 = vst.msk [vmem:[#allocation2 + $0x38] sm:$0xff] %vm1058, %v1053
    %1072 = vrot.lane.b32.xlu0 %v891, 127
    %v1073 = vpop.permute.xlu0 %1072
    %1074 = vrot.lane.b32.xlu0 %v893, 127
    %v1075 = vpop.permute.xlu0 %1074
    %1076 = vrot.lane.b32.xlu0 %v1045, 127
    %v1077 = vpop.permute.xlu0 %1076
    %1078 = vrot.lane.b32.xlu0 %v1047, 127
    %v1079 = vpop.permute.xlu0 %1078
    %1080 = vrot.lane.b32.xlu0 %v897, 127
    %v1081 = vpop.permute.xlu0 %1080
    %1082 = vrot.lane.b32.xlu0 %v899, 127
    %v1083 = vpop.permute.xlu0 %1082
    %1084 = vrot.lane.b32.xlu0 %v1051, 127
    %v1085 = vpop.permute.xlu0 %1084
    %1086 = vrot.lane.b32.xlu0 %v1053, 127
    %v1087 = vpop.permute.xlu0 %1086
    %v1088 = vsel %vm232, %v1073, %v1075
    %v1089 = vsel %vm232, %v1075, %v1077
    %v1090 = vsel %vm232, %v1077, %v1079
    %v1091 = vsel %vm232, %v1081, %v1083
    %v1092 = vsel %vm232, %v1083, %v1085
    %v1093 = vsel %vm232, %v1085, %v1087
    %1102 = vst [vmem:[#allocation2 + $0x40] sm:$0xff] %v1088
    %1103 = vst [vmem:[#allocation2 + $0x48] sm:$0xff] %v1089
    %1104 = vst [vmem:[#allocation2 + $0x50] sm:$0xff] %v1090
    %1105 = vst.msk [vmem:[#allocation2 + $0x58] sm:$0xff] %vm1058, %v1079
    %1106 = vst [vmem:[#allocation2 + $0x60] sm:$0xff] %v1091
    %1107 = vst [vmem:[#allocation2 + $0x68] sm:$0xff] %v1092
    %1108 = vst [vmem:[#allocation2 + $0x70] sm:$0xff] %v1093
    %1109 = vst.msk [vmem:[#allocation2 + $0x78] sm:$0xff] %vm1058, %v1087
    %1110 = vrot.lane.b32.xlu0 %v891, 126
    %v1111 = vpop.permute.xlu0 %1110
    %1112 = vrot.lane.b32.xlu0 %v893, 126
    %v1113 = vpop.permute.xlu0 %1112
    %1114 = vrot.lane.b32.xlu0 %v1045, 126
    %v1115 = vpop.permute.xlu0 %1114
    %1116 = vrot.lane.b32.xlu0 %v1047, 126
    %v1117 = vpop.permute.xlu0 %1116
    %1118 = vrot.lane.b32.xlu0 %v897, 126
    %v1119 = vpop.permute.xlu0 %1118
    %1120 = vrot.lane.b32.xlu0 %v899, 126
    %v1121 = vpop.permute.xlu0 %1120
    %1122 = vrot.lane.b32.xlu0 %v1051, 126
    %v1123 = vpop.permute.xlu0 %1122
    %1124 = vrot.lane.b32.xlu0 %v1053, 126
    %v1125 = vpop.permute.xlu0 %1124
    %v1126 = vsel %vm247, %v1111, %v1113
    %v1127 = vsel %vm247, %v1113, %v1115
    %v1128 = vsel %vm247, %v1115, %v1117
    %v1129 = vsel %vm247, %v1119, %v1121
    %v1130 = vsel %vm247, %v1121, %v1123
    %v1131 = vsel %vm247, %v1123, %v1125
    %1140 = vst [vmem:[#allocation2 + $0x80] sm:$0xff] %v1126
    %1141 = vst [vmem:[#allocation2 + $0x88] sm:$0xff] %v1127
    %1142 = vst [vmem:[#allocation2 + $0x90] sm:$0xff] %v1128
    %1143 = vst.msk [vmem:[#allocation2 + $0x98] sm:$0xff] %vm1058, %v1117
    %1144 = vst [vmem:[#allocation2 + $0xa0] sm:$0xff] %v1129
    %1145 = vst [vmem:[#allocation2 + $0xa8] sm:$0xff] %v1130
    %1146 = vst [vmem:[#allocation2 + $0xb0] sm:$0xff] %v1131
    %1147 = vst.msk [vmem:[#allocation2 + $0xb8] sm:$0xff] %vm1058, %v1125
    %1148 = vrot.lane.b32.xlu0 %v891, 107
    %v1149 = vpop.permute.xlu0 %1148
    %1150 = vrot.lane.b32.xlu0 %v893, 107
    %v1151 = vpop.permute.xlu0 %1150
    %1152 = vrot.lane.b32.xlu0 %v1045, 107
    %v1153 = vpop.permute.xlu0 %1152
    %1154 = vrot.lane.b32.xlu0 %v1047, 107
    %v1155 = vpop.permute.xlu0 %1154
    %1156 = vrot.lane.b32.xlu0 %v897, 107
    %v1157 = vpop.permute.xlu0 %1156
    %1158 = vrot.lane.b32.xlu0 %v899, 107
    %v1159 = vpop.permute.xlu0 %1158
    %1160 = vrot.lane.b32.xlu0 %v1051, 107
    %v1161 = vpop.permute.xlu0 %1160
    %1162 = vrot.lane.b32.xlu0 %v1053, 107
    %v1163 = vpop.permute.xlu0 %1162
    %v1164 = vsel %vm292, %v1149, %v1151
    %v1165 = vsel %vm292, %v1151, %v1153
    %v1166 = vsel %vm292, %v1153, %v1155
    %v1167 = vsel %vm292, %v1157, %v1159
    %v1168 = vsel %vm292, %v1159, %v1161
    %v1169 = vsel %vm292, %v1161, %v1163
    %1178 = vst [vmem:[#allocation2 + $0xc0] sm:$0xff] %v1164
    %1179 = vst [vmem:[#allocation2 + $0xc8] sm:$0xff] %v1165
    %1180 = vst [vmem:[#allocation2 + $0xd0] sm:$0xff] %v1166
    %1181 = vst.msk [vmem:[#allocation2 + $0xd8] sm:$0xff] %vm1058, %v1155
    %1182 = vst [vmem:[#allocation2 + $0xe0] sm:$0xff] %v1167
    %1183 = vst [vmem:[#allocation2 + $0xe8] sm:$0xff] %v1168
    %1184 = vst [vmem:[#allocation2 + $0xf0] sm:$0xff] %v1169
    %1185 = vst.msk [vmem:[#allocation2 + $0xf8] sm:$0xff] %vm1058, %v1163
    %1186 = vrot.lane.b32.xlu0 %v891, 106
    %v1187 = vpop.permute.xlu0 %1186
    %1188 = vrot.lane.b32.xlu0 %v893, 106
    %v1189 = vpop.permute.xlu0 %1188
    %1190 = vrot.lane.b32.xlu0 %v1045, 106
    %v1191 = vpop.permute.xlu0 %1190
    %1192 = vrot.lane.b32.xlu0 %v1047, 106
    %v1193 = vpop.permute.xlu0 %1192
    %1194 = vrot.lane.b32.xlu0 %v897, 106
    %v1195 = vpop.permute.xlu0 %1194
    %1196 = vrot.lane.b32.xlu0 %v899, 106
    %v1197 = vpop.permute.xlu0 %1196
    %1198 = vrot.lane.b32.xlu0 %v1051, 106
    %v1199 = vpop.permute.xlu0 %1198
    %1200 = vrot.lane.b32.xlu0 %v1053, 106
    %v1201 = vpop.permute.xlu0 %1200
    %vm1202 = vcmask 867328
    %v1203 = vsel %vm1202, %v1187, %v1189
    %v1204 = vsel %vm1202, %v1189, %v1191
    %v1205 = vsel %vm1202, %v1191, %v1193
    %v1206 = vsel %vm1202, %v1195, %v1197
    %v1207 = vsel %vm1202, %v1197, %v1199
    %v1208 = vsel %vm1202, %v1199, %v1201
    %1217 = vst [vmem:[#allocation2 + $0x100] sm:$0xff] %v1203
    %1218 = vst [vmem:[#allocation2 + $0x108] sm:$0xff] %v1204
    %1219 = vst [vmem:[#allocation2 + $0x110] sm:$0xff] %v1205
    %1220 = vst.msk [vmem:[#allocation2 + $0x118] sm:$0xff] %vm1058, %v1193
    %1221 = vst [vmem:[#allocation2 + $0x120] sm:$0xff] %v1206
    %1222 = vst [vmem:[#allocation2 + $0x128] sm:$0xff] %v1207
    %1223 = vst [vmem:[#allocation2 + $0x130] sm:$0xff] %v1208
    %1224 = vst.msk [vmem:[#allocation2 + $0x138] sm:$0xff] %vm1058, %v1201
    %1225 = vrot.lane.b32.xlu0 %v891, 105
    %v1226 = vpop.permute.xlu0 %1225
    %1227 = vrot.lane.b32.xlu0 %v893, 105
    %v1228 = vpop.permute.xlu0 %1227
    %1229 = vrot.lane.b32.xlu0 %v1045, 105
    %v1230 = vpop.permute.xlu0 %1229
    %1231 = vrot.lane.b32.xlu0 %v1047, 105
    %v1232 = vpop.permute.xlu0 %1231
    %1233 = vrot.lane.b32.xlu0 %v897, 105
    %v1234 = vpop.permute.xlu0 %1233
    %1235 = vrot.lane.b32.xlu0 %v899, 105
    %v1236 = vpop.permute.xlu0 %1235
    %1237 = vrot.lane.b32.xlu0 %v1051, 105
    %v1238 = vpop.permute.xlu0 %1237
    %1239 = vrot.lane.b32.xlu0 %v1053, 105
    %v1240 = vpop.permute.xlu0 %1239
    %vm1241 = vcmask 859136
    %v1242 = vsel %vm1241, %v1226, %v1228
    %v1243 = vsel %vm1241, %v1228, %v1230
    %v1244 = vsel %vm1241, %v1230, %v1232
    %v1245 = vsel %vm1241, %v1234, %v1236
    %v1246 = vsel %vm1241, %v1236, %v1238
    %v1247 = vsel %vm1241, %v1238, %v1240
    %1256 = vst [vmem:[#allocation2 + $0x140] sm:$0xff] %v1242
    %1257 = vst [vmem:[#allocation2 + $0x148] sm:$0xff] %v1243
    %1258 = vst [vmem:[#allocation2 + $0x150] sm:$0xff] %v1244
    %1259 = vst.msk [vmem:[#allocation2 + $0x158] sm:$0xff] %vm1058, %v1232
    %1260 = vst [vmem:[#allocation2 + $0x160] sm:$0xff] %v1245
    %1261 = vst [vmem:[#allocation2 + $0x168] sm:$0xff] %v1246
    %1262 = vst [vmem:[#allocation2 + $0x170] sm:$0xff] %v1247
    %1263 = vst.msk [vmem:[#allocation2 + $0x178] sm:$0xff] %vm1058, %v1240
    %1264 = vrot.lane.b32.xlu0 %v891, 86
    %v1265 = vpop.permute.xlu0 %1264
    %1266 = vrot.lane.b32.xlu0 %v893, 86
    %v1267 = vpop.permute.xlu0 %1266
    %1268 = vrot.lane.b32.xlu0 %v1045, 86
    %v1269 = vpop.permute.xlu0 %1268
    %1270 = vrot.lane.b32.xlu0 %v1047, 86
    %v1271 = vpop.permute.xlu0 %1270
    %1272 = vrot.lane.b32.xlu0 %v897, 86
    %v1273 = vpop.permute.xlu0 %1272
    %1274 = vrot.lane.b32.xlu0 %v899, 86
    %v1275 = vpop.permute.xlu0 %1274
    %1276 = vrot.lane.b32.xlu0 %v1051, 86
    %v1277 = vpop.permute.xlu0 %1276
    %1278 = vrot.lane.b32.xlu0 %v1053, 86
    %v1279 = vpop.permute.xlu0 %1278
    %vm1280 = vcmask 703488
    %v1281 = vsel %vm1280, %v1265, %v1267
    %v1282 = vsel %vm1280, %v1267, %v1269
    %v1283 = vsel %vm1280, %v1269, %v1271
    %v1284 = vsel %vm1280, %v1273, %v1275
    %v1285 = vsel %vm1280, %v1275, %v1277
    %v1286 = vsel %vm1280, %v1277, %v1279
    %1295 = vst [vmem:[#allocation2 + $0x180] sm:$0xff] %v1281
    %1296 = vst [vmem:[#allocation2 + $0x188] sm:$0xff] %v1282
    %1297 = vst [vmem:[#allocation2 + $0x190] sm:$0xff] %v1283
    %1298 = vst.msk [vmem:[#allocation2 + $0x198] sm:$0xff] %vm1058, %v1271
    %1299 = vst [vmem:[#allocation2 + $0x1a0] sm:$0xff] %v1284
    %1300 = vst [vmem:[#allocation2 + $0x1a8] sm:$0xff] %v1285
    %1301 = vst [vmem:[#allocation2 + $0x1b0] sm:$0xff] %v1286
    %1302 = vst.msk [vmem:[#allocation2 + $0x1b8] sm:$0xff] %vm1058, %v1279
    %1303 = vrot.lane.b32.xlu0 %v891, 85
    %v1304 = vpop.permute.xlu0 %1303
    %1305 = vrot.lane.b32.xlu0 %v893, 85
    %v1306 = vpop.permute.xlu0 %1305
    %1307 = vrot.lane.b32.xlu0 %v1045, 85
    %v1308 = vpop.permute.xlu0 %1307
    %1309 = vrot.lane.b32.xlu0 %v1047, 85
    %v1310 = vpop.permute.xlu0 %1309
    %1311 = vrot.lane.b32.xlu0 %v897, 85
    %v1312 = vpop.permute.xlu0 %1311
    %1313 = vrot.lane.b32.xlu0 %v899, 85
    %v1314 = vpop.permute.xlu0 %1313
    %1315 = vrot.lane.b32.xlu0 %v1051, 85
    %v1316 = vpop.permute.xlu0 %1315
    %1317 = vrot.lane.b32.xlu0 %v1053, 85
    %v1318 = vpop.permute.xlu0 %1317
    %vm1319 = vcmask 695296
    %v1320 = vsel %vm1319, %v1304, %v1306
    %v1321 = vsel %vm1319, %v1306, %v1308
    %v1322 = vsel %vm1319, %v1308, %v1310
    %v1323 = vsel %vm1319, %v1312, %v1314
    %v1324 = vsel %vm1319, %v1314, %v1316
    %v1325 = vsel %vm1319, %v1316, %v1318
    %1334 = vst [vmem:[#allocation2 + $0x1c0] sm:$0xff] %v1320
    %1335 = vst [vmem:[#allocation2 + $0x1c8] sm:$0xff] %v1321
    %1336 = vst [vmem:[#allocation2 + $0x1d0] sm:$0xff] %v1322
    %1337 = vst.msk [vmem:[#allocation2 + $0x1d8] sm:$0xff] %vm1058, %v1310
    %1338 = vst [vmem:[#allocation2 + $0x1e0] sm:$0xff] %v1323
    %1339 = vst [vmem:[#allocation2 + $0x1e8] sm:$0xff] %v1324
    %1340 = vst [vmem:[#allocation2 + $0x1f0] sm:$0xff] %v1325
    %1341 = vst.msk [vmem:[#allocation2 + $0x1f8] sm:$0xff] %vm1058, %v1318
    %1342 = vrot.lane.b32.xlu0 %v891, 84
    %v1343 = vpop.permute.xlu0 %1342
    %1344 = vrot.lane.b32.xlu0 %v893, 84
    %v1345 = vpop.permute.xlu0 %1344
    %1346 = vrot.lane.b32.xlu0 %v1045, 84
    %v1347 = vpop.permute.xlu0 %1346
    %1348 = vrot.lane.b32.xlu0 %v1047, 84
    %v1349 = vpop.permute.xlu0 %1348
    %1350 = vrot.lane.b32.xlu0 %v897, 84
    %v1351 = vpop.permute.xlu0 %1350
    %1352 = vrot.lane.b32.xlu0 %v899, 84
    %v1353 = vpop.permute.xlu0 %1352
    %1354 = vrot.lane.b32.xlu0 %v1051, 84
    %v1355 = vpop.permute.xlu0 %1354
    %1356 = vrot.lane.b32.xlu0 %v1053, 84
    %v1357 = vpop.permute.xlu0 %1356
    %vm1358 = vcmask 687104
    %v1359 = vsel %vm1358, %v1343, %v1345
    %v1360 = vsel %vm1358, %v1345, %v1347
    %v1361 = vsel %vm1358, %v1347, %v1349
    %v1362 = vsel %vm1358, %v1351, %v1353
    %v1363 = vsel %vm1358, %v1353, %v1355
    %v1364 = vsel %vm1358, %v1355, %v1357
    %1373 = vst [vmem:[#allocation2 + $0x200] sm:$0xff] %v1359
    %1374 = vst [vmem:[#allocation2 + $0x208] sm:$0xff] %v1360
    %1375 = vst [vmem:[#allocation2 + $0x210] sm:$0xff] %v1361
    %1376 = vst.msk [vmem:[#allocation2 + $0x218] sm:$0xff] %vm1058, %v1349
    %1377 = vst [vmem:[#allocation2 + $0x220] sm:$0xff] %v1362
    %1378 = vst [vmem:[#allocation2 + $0x228] sm:$0xff] %v1363
    %1379 = vst [vmem:[#allocation2 + $0x230] sm:$0xff] %v1364
    %1380 = vst.msk [vmem:[#allocation2 + $0x238] sm:$0xff] %vm1058, %v1357
    %v1381 = vld [vmem:[%s5] sm:$0xff]
    %v1382 = vld [vmem:[%s5 + $0x8] sm:$0xff]
    %v1383 = vld [vmem:[%s5 + $0x10] sm:$0xff]
    %v1384 = vld [vmem:[%s5 + $0x18] sm:$0xff]
    %v1385 = vld [vmem:[#allocation2] sm:$0xff]
    %v1386 = vld [vmem:[#allocation2 + $0x8] sm:$0xff]
    %v1387 = vld [vmem:[#allocation2 + $0x10] sm:$0xff]
    %v1388 = vld [vmem:[#allocation2 + $0x18] sm:$0xff]
    %v1389 = vld [vmem:[#allocation2 + $0x20] sm:$0xff]
    %v1390 = vld [vmem:[#allocation2 + $0x28] sm:$0xff]
    %v1391 = vld [vmem:[#allocation2 + $0x30] sm:$0xff]
    %v1392 = vld [vmem:[#allocation2 + $0x38] sm:$0xff]
    %v1393 = vld [vmem:[#allocation2 + $0x40] sm:$0xff]
    %v1394 = vld [vmem:[#allocation2 + $0x48] sm:$0xff]
    %v1395 = vld [vmem:[#allocation2 + $0x50] sm:$0xff]
    %v1396 = vld [vmem:[#allocation2 + $0x58] sm:$0xff]
    %v1397 = vld [vmem:[#allocation2 + $0x60] sm:$0xff]
    %v1398 = vld [vmem:[#allocation2 + $0x68] sm:$0xff]
    %v1399 = vld [vmem:[#allocation2 + $0x70] sm:$0xff]
    %v1400 = vld [vmem:[#allocation2 + $0x78] sm:$0xff]
    %v1401 = vld [vmem:[#allocation2 + $0x80] sm:$0xff]
    %v1402 = vld [vmem:[#allocation2 + $0x88] sm:$0xff]
    %v1403 = vld [vmem:[#allocation2 + $0x90] sm:$0xff]
    %v1404 = vld [vmem:[#allocation2 + $0x98] sm:$0xff]
    %v1405 = vld [vmem:[#allocation2 + $0xa0] sm:$0xff]
    %v1406 = vld [vmem:[#allocation2 + $0xa8] sm:$0xff]
    %v1407 = vld [vmem:[#allocation2 + $0xb0] sm:$0xff]
    %v1408 = vld [vmem:[#allocation2 + $0xb8] sm:$0xff]
    %v1409 = vld [vmem:[#allocation2 + $0xc0] sm:$0xff]
    %v1410 = vld [vmem:[#allocation2 + $0xc8] sm:$0xff]
    %v1411 = vld [vmem:[#allocation2 + $0xd0] sm:$0xff]
    %v1412 = vld [vmem:[#allocation2 + $0xd8] sm:$0xff]
    %v1413 = vld [vmem:[#allocation2 + $0xe0] sm:$0xff]
    %v1414 = vld [vmem:[#allocation2 + $0xe8] sm:$0xff]
    %v1415 = vld [vmem:[#allocation2 + $0xf0] sm:$0xff]
    %v1416 = vld [vmem:[#allocation2 + $0xf8] sm:$0xff]
    %v1417 = vld [vmem:[#allocation2 + $0x100] sm:$0xff]
    %v1418 = vld [vmem:[#allocation2 + $0x108] sm:$0xff]
    %v1419 = vld [vmem:[#allocation2 + $0x110] sm:$0xff]
    %v1420 = vld [vmem:[#allocation2 + $0x118] sm:$0xff]
    %v1421 = vld [vmem:[#allocation2 + $0x120] sm:$0xff]
    %v1422 = vld [vmem:[#allocation2 + $0x128] sm:$0xff]
    %v1423 = vld [vmem:[#allocation2 + $0x130] sm:$0xff]
    %v1424 = vld [vmem:[#allocation2 + $0x138] sm:$0xff]
    %v1425 = vld [vmem:[#allocation2 + $0x140] sm:$0xff]
    %v1426 = vld [vmem:[#allocation2 + $0x148] sm:$0xff]
    %v1427 = vld [vmem:[#allocation2 + $0x150] sm:$0xff]
    %v1428 = vld [vmem:[#allocation2 + $0x158] sm:$0xff]
    %v1429 = vld [vmem:[#allocation2 + $0x160] sm:$0xff]
    %v1430 = vld [vmem:[#allocation2 + $0x168] sm:$0xff]
    %v1431 = vld [vmem:[#allocation2 + $0x170] sm:$0xff]
    %v1432 = vld [vmem:[#allocation2 + $0x178] sm:$0xff]
    %v1433 = vld [vmem:[#allocation2 + $0x180] sm:$0xff]
    %v1434 = vld [vmem:[#allocation2 + $0x188] sm:$0xff]
    %v1435 = vld [vmem:[#allocation2 + $0x190] sm:$0xff]
    %v1436 = vld [vmem:[#allocation2 + $0x198] sm:$0xff]
    %v1437 = vld [vmem:[#allocation2 + $0x1a0] sm:$0xff]
    %v1438 = vld [vmem:[#allocation2 + $0x1a8] sm:$0xff]
    %v1439 = vld [vmem:[#allocation2 + $0x1b0] sm:$0xff]
    %v1440 = vld [vmem:[#allocation2 + $0x1b8] sm:$0xff]
    %v1441 = vld [vmem:[#allocation2 + $0x1c0] sm:$0xff]
    %v1442 = vld [vmem:[#allocation2 + $0x1c8] sm:$0xff]
    %v1443 = vld [vmem:[#allocation2 + $0x1d0] sm:$0xff]
    %v1444 = vld [vmem:[#allocation2 + $0x1d8] sm:$0xff]
    %v1445 = vld [vmem:[#allocation2 + $0x1e0] sm:$0xff]
    %v1446 = vld [vmem:[#allocation2 + $0x1e8] sm:$0xff]
    %v1447 = vld [vmem:[#allocation2 + $0x1f0] sm:$0xff]
    %v1448 = vld [vmem:[#allocation2 + $0x1f8] sm:$0xff]
    %v1449 = vld [vmem:[#allocation2 + $0x200] sm:$0xff]
    %v1450 = vld [vmem:[#allocation2 + $0x208] sm:$0xff]
    %v1451 = vld [vmem:[#allocation2 + $0x210] sm:$0xff]
    %v1452 = vld [vmem:[#allocation2 + $0x218] sm:$0xff]
    %v1453 = vld [vmem:[#allocation2 + $0x220] sm:$0xff]
    %v1454 = vld [vmem:[#allocation2 + $0x228] sm:$0xff]
    %v1455 = vld [vmem:[#allocation2 + $0x230] sm:$0xff]
    %v1456 = vld [vmem:[#allocation2 + $0x238] sm:$0xff]
    %v1457 = vld [vmem:[%s6] sm:$0xff]
    %v1458 = vld [vmem:[%s6 + $0x8] sm:$0xff]
    %1460 = vset.pattern.permute.xlu0 0
    %1461 = vperm.xlu0 %1460, %v1457
    %v1462 = vpop.permute.xlu0 %1461
    %1465 = vset.pattern.permute.xlu0 0
    %1466 = vperm.xlu0 %1465, %v1458
    %v1467 = vpop.permute.xlu0 %1466
    %vm1469 = vcmask 130048
    %v1471 = vsel %vm1469, %v1382, 0
    %v1474 = vsel %vm1469, %v1384, 0
    %1476 = vmatprep.subr.mxu0 %v1386
    %1477 = vmatpush1.msra.mxu0 %v1385
    %1478 = vmatprep.subr.mxu0 %v1390
    %1479 = vmatpush1.msra.mxu0 %v1389
    %1480 = vmatprep.subr.mxu0 %v1394
    %1481 = vmatpush1.msra.mxu0 %v1393
    %1482 = vmatprep.subr.mxu0 %v1398
    %1483 = vmatpush1.msra.mxu0 %v1397
    %1484 = vmatprep.subr.mxu0 %v1402
    %1485 = vmatpush1.msra.mxu0 %v1401
    %1486 = vmatprep.subr.mxu0 %v1406
    %1487 = vmatpush1.msra.mxu0 %v1405
    %1488 = vmatprep.subr.mxu0 %v1410
    %1489 = vmatpush1.msra.mxu0 %v1409
    %1490 = vmatprep.subr.mxu0 %v1414
    %1491 = vmatpush1.msra.mxu0 %v1413
    %1492 = vmatprep.subr.mxu0 %v1418
    %1493 = vmatpush1.msra.mxu0 %v1417
    %1494 = vmatprep.subr.mxu0 %v1422
    %1495 = vmatpush1.msra.mxu0 %v1421
    %1496 = vmatprep.subr.mxu0 %v1426
    %1497 = vmatpush1.msra.mxu0 %v1425
    %1498 = vmatprep.subr.mxu0 %v1430
    %1499 = vmatpush1.msra.mxu0 %v1429
    %1500 = vmatprep.subr.mxu0 %v1434
    %1501 = vmatpush1.msra.mxu0 %v1433
    %1502 = vmatprep.subr.mxu0 %v1438
    %1503 = vmatpush1.msra.mxu0 %v1437
    %1504 = vmatprep.subr.mxu0 %v1442
    %1505 = vmatpush1.msra.mxu0 %v1441
    %1506 = vmatprep.subr.mxu0 %v1446
    %1507 = vmatpush1.msra.mxu0 %v1445
    %1508 = vmatprep.subr.mxu0 %v1450
    %1509 = vmatpush1.msra.mxu0 %v1449
    %1510 = vmatprep.subr.mxu0 %v1454
    %1511 = vmatpush1.msra.mxu0 %v1453
    %1512 = vmatprep.subr.mxu0 0.0
    %1513 = vmatpush1.msra.mxu0 0.0
    %1514 = vmatprep.subr.mxu0 0.0
    %1515 = vmatpush1.msra.mxu0 0.0
    %1516 = vmatprep.subr.mxu0 0.0
    %1517 = vmatpush1.msra.mxu0 0.0
    %1518 = vmatprep.subr.mxu0 0.0
    %1519 = vmatpush1.msra.mxu0 0.0
    %1520 = vmatprep.subr.mxu0 0.0
    %1521 = vmatpush1.msra.mxu0 0.0
    %1522 = vmatprep.subr.mxu0 0.0
    %1523 = vmatpush1.msra.mxu0 0.0
    %1524 = vmatprep.subr.mxu0 0.0
    %1525 = vmatpush1.msra.mxu0 0.0
    %1526 = vmatprep.subr.mxu0 0.0
    %1527 = vmatpush1.msra.mxu0 0.0
    %1528 = vmatprep.subr.mxu0 0.0
    %1529 = vmatpush1.msra.mxu0 0.0
    %1530 = vmatprep.subr.mxu0 0.0
    %1531 = vmatpush1.msra.mxu0 0.0
    %1532 = vmatprep.subr.mxu0 0.0
    %1533 = vmatpush1.msra.mxu0 0.0
    %1534 = vmatprep.subr.mxu0 0.0
    %1535 = vmatpush1.msra.mxu0 0.0
    %1536 = vmatprep.subr.mxu0 0.0
    %1537 = vmatpush1.msra.mxu0 0.0
    %1538 = vmatprep.subr.mxu0 0.0
    %1539 = vmatpush1.msra.mxu0 0.0
    %1540 = vmatprep.mubr.f32.mxu0 %v1471
    %1541 = vmatmul.mubr.f32.gmra.mrb[0].mxu0 %v1381
    %v1542 = vpop.f32.mrb[0].mxu0
    %v1543 = vadd.f32 %v1462, %v1542
    %v1544 = vpop.f32.mrb[0].mxu0
    %v1545 = vadd.f32 %v1462, %v1544
    %1546 = vmatprep.mubr.f32.mxu0 %v1474
    %1547 = vmatmul.mubr.f32.gmra.mrb[0].mxu0 %v1383
    %v1548 = vpop.f32.mrb[0].mxu0
    %v1549 = vadd.f32 %v1467, %v1548
    %v1550 = vpop.f32.mrb[0].mxu0
    %v1551 = vadd.f32 %v1467, %v1550
    %1552 = vdwg.mxu0
    %1553 = vmatprep.subr.mxu0 %v1388
    %1554 = vmatpush1.msra.mxu0 %v1387
    %1555 = vmatprep.subr.mxu0 %v1392
    %1556 = vmatpush1.msra.mxu0 %v1391
    %1557 = vmatprep.subr.mxu0 %v1396
    %1558 = vmatpush1.msra.mxu0 %v1395
    %1559 = vmatprep.subr.mxu0 %v1400
    %1560 = vmatpush1.msra.mxu0 %v1399
    %1561 = vmatprep.subr.mxu0 %v1404
    %1562 = vmatpush1.msra.mxu0 %v1403
    %1563 = vmatprep.subr.mxu0 %v1408
    %1564 = vmatpush1.msra.mxu0 %v1407
    %1565 = vmatprep.subr.mxu0 %v1412
    %1566 = vmatpush1.msra.mxu0 %v1411
    %1567 = vmatprep.subr.mxu0 %v1416
    %1568 = vmatpush1.msra.mxu0 %v1415
    %1569 = vmatprep.subr.mxu0 %v1420
    %1570 = vmatpush1.msra.mxu0 %v1419
    %1571 = vmatprep.subr.mxu0 %v1424
    %1572 = vmatpush1.msra.mxu0 %v1423
    %1573 = vmatprep.subr.mxu0 %v1428
    %1574 = vmatpush1.msra.mxu0 %v1427
    %1575 = vmatprep.subr.mxu0 %v1432
    %1576 = vmatpush1.msra.mxu0 %v1431
    %1577 = vmatprep.subr.mxu0 %v1436
    %1578 = vmatpush1.msra.mxu0 %v1435
    %1579 = vmatprep.subr.mxu0 %v1440
    %1580 = vmatpush1.msra.mxu0 %v1439
    %1581 = vmatprep.subr.mxu0 %v1444
    %1582 = vmatpush1.msra.mxu0 %v1443
    %1583 = vmatprep.subr.mxu0 %v1448
    %1584 = vmatpush1.msra.mxu0 %v1447
    %1585 = vmatprep.subr.mxu0 %v1452
    %1586 = vmatpush1.msra.mxu0 %v1451
    %1587 = vmatprep.subr.mxu0 %v1456
    %1588 = vmatpush1.msra.mxu0 %v1455
    %1589 = vmatprep.subr.mxu0 0.0
    %1590 = vmatpush1.msra.mxu0 0.0
    %1591 = vmatprep.subr.mxu0 0.0
    %1592 = vmatpush1.msra.mxu0 0.0
    %1593 = vmatprep.subr.mxu0 0.0
    %1594 = vmatpush1.msra.mxu0 0.0
    %1595 = vmatprep.subr.mxu0 0.0
    %1596 = vmatpush1.msra.mxu0 0.0
    %1597 = vmatprep.subr.mxu0 0.0
    %1598 = vmatpush1.msra.mxu0 0.0
    %1599 = vmatprep.subr.mxu0 0.0
    %1600 = vmatpush1.msra.mxu0 0.0
    %1601 = vmatprep.subr.mxu0 0.0
    %1602 = vmatpush1.msra.mxu0 0.0
    %1603 = vmatprep.subr.mxu0 0.0
    %1604 = vmatpush1.msra.mxu0 0.0
    %1605 = vmatprep.subr.mxu0 0.0
    %1606 = vmatpush1.msra.mxu0 0.0
    %1607 = vmatprep.subr.mxu0 0.0
    %1608 = vmatpush1.msra.mxu0 0.0
    %1609 = vmatprep.subr.mxu0 0.0
    %1610 = vmatpush1.msra.mxu0 0.0
    %1611 = vmatprep.subr.mxu0 0.0
    %1612 = vmatpush1.msra.mxu0 0.0
    %1613 = vmatprep.subr.mxu0 0.0
    %1614 = vmatpush1.msra.mxu0 0.0
    %1615 = vmatprep.subr.mxu0 0.0
    %1616 = vmatpush1.msra.mxu0 0.0
    %1617 = vmatprep.mubr.f32.mxu0 %v1471
    %1618 = vmatmul.mubr.f32.gmra.mrb[0].mxu0 %v1381
    %v1619 = vpop.f32.mrb[0].mxu0
    %v1620 = vadd.f32 %v1462, %v1619
    %v1621 = vpop.f32.mrb[0].mxu0
    %v1622 = vadd.f32 %v1462, %v1621
    %1623 = vmatprep.mubr.f32.mxu0 %v1474
    %1624 = vmatmul.mubr.f32.gmra.mrb[0].mxu0 %v1383
    %v1625 = vpop.f32.mrb[0].mxu0
    %v1626 = vadd.f32 %v1467, %v1625
    %v1627 = vpop.f32.mrb[0].mxu0
    %v1628 = vadd.f32 %v1467, %v1627
    %1629 = vdwg.mxu0
    %vm1630 = vcmp.gt.f32.partialorder %v1543, 0.0
    %vm1631 = vcmp.gt.f32.partialorder %v1545, 0.0
    %vm1632 = vcmp.gt.f32.partialorder %v1620, 0.0
    %vm1633 = vcmp.gt.f32.partialorder %v1622, 0.0
    %vm1634 = vcmp.gt.f32.partialorder %v1549, 0.0
    %vm1635 = vcmp.gt.f32.partialorder %v1551, 0.0
    %vm1636 = vcmp.gt.f32.partialorder %v1626, 0.0
    %vm1637 = vcmp.gt.f32.partialorder %v1628, 0.0
    %v1638 = vmul.f32 %v1543, 0.01
    %v1639 = vmul.f32 %v1545, 0.01
    %v1640 = vmul.f32 %v1620, 0.01
    %v1641 = vmul.f32 %v1622, 0.01
    %v1642 = vmul.f32 %v1549, 0.01
    %v1643 = vmul.f32 %v1551, 0.01
    %v1644 = vmul.f32 %v1626, 0.01
    %v1645 = vmul.f32 %v1628, 0.01
    %v1646 = vsel %vm1630, %v1543, %v1638
    %v1647 = vsel %vm1631, %v1545, %v1639
    %v1648 = vsel %vm1632, %v1620, %v1640
    %v1649 = vsel %vm1633, %v1622, %v1641
    %v1650 = vsel %vm1634, %v1549, %v1642
    %v1651 = vsel %vm1635, %v1551, %v1643
    %v1652 = vsel %vm1636, %v1626, %v1644
    %v1653 = vsel %vm1637, %v1628, %v1645
    %v1654 = vld [vmem:[%s7] sm:$0xff]
    %v1655 = vld [vmem:[%s7 + $0x8] sm:$0xff]
    %v1656 = vld [vmem:[%s7 + $0x10] sm:$0xff]
    %v1657 = vld [vmem:[%s7 + $0x18] sm:$0xff]
    %v1658 = vld [vmem:[%s7 + $0x20] sm:$0xff]
    %v1659 = vld [vmem:[%s7 + $0x28] sm:$0xff]
    %v1660 = vld [vmem:[%s7 + $0x30] sm:$0xff]
    %v1661 = vld [vmem:[%s7 + $0x38] sm:$0xff]
    %v1662 = vld [vmem:[%s7 + $0x40] sm:$0xff]
    %v1663 = vld [vmem:[%s7 + $0x48] sm:$0xff]
    %v1664 = vld [vmem:[%s7 + $0x50] sm:$0xff]
    %v1665 = vld [vmem:[%s7 + $0x58] sm:$0xff]
    %v1666 = vld [vmem:[%s7 + $0x60] sm:$0xff]
    %v1667 = vld [vmem:[%s7 + $0x68] sm:$0xff]
    %v1668 = vld [vmem:[%s7 + $0x70] sm:$0xff]
    %v1669 = vld [vmem:[%s7 + $0x78] sm:$0xff]
    %v1670 = vld [vmem:[%s7 + $0x80] sm:$0xff]
    %v1671 = vld [vmem:[%s7 + $0x88] sm:$0xff]
    %v1672 = vld [vmem:[%s7 + $0x90] sm:$0xff]
    %v1673 = vld [vmem:[%s7 + $0x98] sm:$0xff]
    %v1674 = vld [vmem:[%s7 + $0xa0] sm:$0xff]
    %v1675 = vld [vmem:[%s7 + $0xa8] sm:$0xff]
    %v1676 = vld [vmem:[%s7 + $0xb0] sm:$0xff]
    %v1677 = vld [vmem:[%s7 + $0xb8] sm:$0xff]
    %v1678 = vld [vmem:[%s7 + $0xc0] sm:$0xff]
    %v1679 = vld [vmem:[%s7 + $0xc8] sm:$0xff]
    %v1680 = vld [vmem:[%s7 + $0xd0] sm:$0xff]
    %v1681 = vld [vmem:[%s7 + $0xd8] sm:$0xff]
    %v1682 = vld [vmem:[%s7 + $0xe0] sm:$0xff]
    %v1683 = vld [vmem:[%s7 + $0xe8] sm:$0xff]
    %v1684 = vld [vmem:[%s7 + $0xf0] sm:$0xff]
    %v1685 = vld [vmem:[%s7 + $0xf8] sm:$0xff]
    %v1686 = vld [vmem:[%s7 + $0x100] sm:$0xff]
    %v1687 = vld [vmem:[%s7 + $0x108] sm:$0xff]
    %v1688 = vld [vmem:[%s7 + $0x110] sm:$0xff]
    %v1689 = vld [vmem:[%s7 + $0x118] sm:$0xff]
    %v1690 = vld [vmem:[%s7 + $0x120] sm:$0xff]
    %v1691 = vld [vmem:[%s7 + $0x128] sm:$0xff]
    %v1692 = vld [vmem:[%s7 + $0x130] sm:$0xff]
    %v1693 = vld [vmem:[%s7 + $0x138] sm:$0xff]
    %v1694 = vld [vmem:[%s7 + $0x140] sm:$0xff]
    %v1695 = vld [vmem:[%s7 + $0x148] sm:$0xff]
    %v1696 = vld [vmem:[%s7 + $0x150] sm:$0xff]
    %v1697 = vld [vmem:[%s7 + $0x158] sm:$0xff]
    %v1698 = vld [vmem:[%s7 + $0x160] sm:$0xff]
    %v1699 = vld [vmem:[%s7 + $0x168] sm:$0xff]
    %v1700 = vld [vmem:[%s7 + $0x170] sm:$0xff]
    %v1701 = vld [vmem:[%s7 + $0x178] sm:$0xff]
    %v1702 = vld [vmem:[%s7 + $0x180] sm:$0xff]
    %v1703 = vld [vmem:[%s7 + $0x188] sm:$0xff]
    %v1704 = vld [vmem:[%s7 + $0x190] sm:$0xff]
    %v1705 = vld [vmem:[%s7 + $0x198] sm:$0xff]
    %v1706 = vld [vmem:[%s7 + $0x1a0] sm:$0xff]
    %v1707 = vld [vmem:[%s7 + $0x1a8] sm:$0xff]
    %v1708 = vld [vmem:[%s7 + $0x1b0] sm:$0xff]
    %v1709 = vld [vmem:[%s7 + $0x1b8] sm:$0xff]
    %v1710 = vld [vmem:[%s7 + $0x1c0] sm:$0xff]
    %v1711 = vld [vmem:[%s7 + $0x1c8] sm:$0xff]
    %v1712 = vld [vmem:[%s7 + $0x1d0] sm:$0xff]
    %v1713 = vld [vmem:[%s7 + $0x1d8] sm:$0xff]
    %v1714 = vld [vmem:[%s7 + $0x1e0] sm:$0xff]
    %v1715 = vld [vmem:[%s7 + $0x1e8] sm:$0xff]
    %v1716 = vld [vmem:[%s7 + $0x1f0] sm:$0xff]
    %v1717 = vld [vmem:[%s7 + $0x1f8] sm:$0xff]
    %v1718 = vld [vmem:[%s7 + $0x200] sm:$0xff]
    %v1719 = vld [vmem:[%s7 + $0x208] sm:$0xff]
    %v1720 = vld [vmem:[%s7 + $0x210] sm:$0xff]
    %v1721 = vld [vmem:[%s7 + $0x218] sm:$0xff]
    %v1722 = vld [vmem:[%s7 + $0x220] sm:$0xff]
    %v1723 = vld [vmem:[%s7 + $0x228] sm:$0xff]
    %v1724 = vld [vmem:[%s7 + $0x230] sm:$0xff]
    %v1725 = vld [vmem:[%s7 + $0x238] sm:$0xff]
    %v1726 = vld [vmem:[%s7 + $0x240] sm:$0xff]
    %v1727 = vld [vmem:[%s7 + $0x248] sm:$0xff]
    %v1728 = vld [vmem:[%s7 + $0x250] sm:$0xff]
    %v1729 = vld [vmem:[%s7 + $0x258] sm:$0xff]
    %v1730 = vld [vmem:[%s7 + $0x260] sm:$0xff]
    %v1731 = vld [vmem:[%s7 + $0x268] sm:$0xff]
    %v1732 = vld [vmem:[%s7 + $0x270] sm:$0xff]
    %v1733 = vld [vmem:[%s7 + $0x278] sm:$0xff]
    %v1734 = vld [vmem:[%s7 + $0x280] sm:$0xff]
    %v1735 = vld [vmem:[%s7 + $0x288] sm:$0xff]
    %v1736 = vld [vmem:[%s7 + $0x290] sm:$0xff]
    %v1737 = vld [vmem:[%s7 + $0x298] sm:$0xff]
    %v1738 = vld [vmem:[%s7 + $0x2a0] sm:$0xff]
    %v1739 = vld [vmem:[%s7 + $0x2a8] sm:$0xff]
    %v1740 = vld [vmem:[%s7 + $0x2b0] sm:$0xff]
    %v1741 = vld [vmem:[%s7 + $0x2b8] sm:$0xff]
    %v1742 = vld [vmem:[%s7 + $0x2c0] sm:$0xff]
    %v1743 = vld [vmem:[%s7 + $0x2c8] sm:$0xff]
    %v1744 = vld [vmem:[%s7 + $0x2d0] sm:$0xff]
    %v1745 = vld [vmem:[%s7 + $0x2d8] sm:$0xff]
    %v1746 = vld [vmem:[%s7 + $0x2e0] sm:$0xff]
    %v1747 = vld [vmem:[%s7 + $0x2e8] sm:$0xff]
    %v1748 = vld [vmem:[%s7 + $0x2f0] sm:$0xff]
    %v1749 = vld [vmem:[%s7 + $0x2f8] sm:$0xff]
    %v1750 = vld [vmem:[%s7 + $0x300] sm:$0xff]
    %v1751 = vld [vmem:[%s7 + $0x308] sm:$0xff]
    %v1752 = vld [vmem:[%s7 + $0x310] sm:$0xff]
    %v1753 = vld [vmem:[%s7 + $0x318] sm:$0xff]
    %v1754 = vld [vmem:[%s7 + $0x320] sm:$0xff]
    %v1755 = vld [vmem:[%s7 + $0x328] sm:$0xff]
    %v1756 = vld [vmem:[%s7 + $0x330] sm:$0xff]
    %v1757 = vld [vmem:[%s7 + $0x338] sm:$0xff]
    %v1758 = vld [vmem:[%s7 + $0x340] sm:$0xff]
    %v1759 = vld [vmem:[%s7 + $0x348] sm:$0xff]
    %v1760 = vld [vmem:[%s7 + $0x350] sm:$0xff]
    %v1761 = vld [vmem:[%s7 + $0x358] sm:$0xff]
    %v1762 = vld [vmem:[%s7 + $0x360] sm:$0xff]
    %v1763 = vld [vmem:[%s7 + $0x368] sm:$0xff]
    %v1764 = vld [vmem:[%s7 + $0x370] sm:$0xff]
    %v1765 = vld [vmem:[%s7 + $0x378] sm:$0xff]
    %v1766 = vld [vmem:[%s7 + $0x380] sm:$0xff]
    %v1767 = vld [vmem:[%s7 + $0x388] sm:$0xff]
    %v1768 = vld [vmem:[%s7 + $0x390] sm:$0xff]
    %v1769 = vld [vmem:[%s7 + $0x398] sm:$0xff]
    %v1770 = vld [vmem:[%s7 + $0x3a0] sm:$0xff]
    %v1771 = vld [vmem:[%s7 + $0x3a8] sm:$0xff]
    %v1772 = vld [vmem:[%s7 + $0x3b0] sm:$0xff]
    %v1773 = vld [vmem:[%s7 + $0x3b8] sm:$0xff]
    %v1774 = vld [vmem:[%s7 + $0x3c0] sm:$0xff]
    %v1775 = vld [vmem:[%s7 + $0x3c8] sm:$0xff]
    %v1776 = vld [vmem:[%s7 + $0x3d0] sm:$0xff]
    %v1777 = vld [vmem:[%s7 + $0x3d8] sm:$0xff]
    %v1778 = vld [vmem:[%s7 + $0x3e0] sm:$0xff]
    %v1779 = vld [vmem:[%s7 + $0x3e8] sm:$0xff]
    %v1780 = vld [vmem:[%s7 + $0x3f0] sm:$0xff]
    %v1781 = vld [vmem:[%s7 + $0x3f8] sm:$0xff]
    %v1782 = vld [vmem:[%s7 + $0x400] sm:$0xff]
    %v1783 = vld [vmem:[%s7 + $0x408] sm:$0xff]
    %v1784 = vld [vmem:[%s7 + $0x410] sm:$0xff]
    %v1785 = vld [vmem:[%s7 + $0x418] sm:$0xff]
    %v1786 = vld [vmem:[%s7 + $0x420] sm:$0xff]
    %v1787 = vld [vmem:[%s7 + $0x428] sm:$0xff]
    %v1788 = vld [vmem:[%s7 + $0x430] sm:$0xff]
    %v1789 = vld [vmem:[%s7 + $0x438] sm:$0xff]
    %v1790 = vld [vmem:[%s7 + $0x440] sm:$0xff]
    %v1791 = vld [vmem:[%s7 + $0x448] sm:$0xff]
    %v1792 = vld [vmem:[%s7 + $0x450] sm:$0xff]
    %v1793 = vld [vmem:[%s7 + $0x458] sm:$0xff]
    %v1794 = vld [vmem:[%s7 + $0x460] sm:$0xff]
    %v1795 = vld [vmem:[%s7 + $0x468] sm:$0xff]
    %v1796 = vld [vmem:[%s7 + $0x470] sm:$0xff]
    %v1797 = vld [vmem:[%s7 + $0x478] sm:$0xff]
    %v1798 = vld [vmem:[%s7 + $0x480] sm:$0xff]
    %v1799 = vld [vmem:[%s7 + $0x488] sm:$0xff]
    %v1800 = vld [vmem:[%s7 + $0x490] sm:$0xff]
    %v1801 = vld [vmem:[%s7 + $0x498] sm:$0xff]
    %v1802 = vld [vmem:[%s7 + $0x4a0] sm:$0xff]
    %v1803 = vld [vmem:[%s7 + $0x4a8] sm:$0xff]
    %v1804 = vld [vmem:[%s7 + $0x4b0] sm:$0xff]
    %v1805 = vld [vmem:[%s7 + $0x4b8] sm:$0xff]
    %v1806 = vld [vmem:[%s7 + $0x4c0] sm:$0xff]
    %v1807 = vld [vmem:[%s7 + $0x4c8] sm:$0xff]
    %v1808 = vld [vmem:[%s7 + $0x4d0] sm:$0xff]
    %v1809 = vld [vmem:[%s7 + $0x4d8] sm:$0xff]
    %v1810 = vld [vmem:[%s7 + $0x4e0] sm:$0xff]
    %v1811 = vld [vmem:[%s7 + $0x4e8] sm:$0xff]
    %v1812 = vld [vmem:[%s7 + $0x4f0] sm:$0xff]
    %v1813 = vld [vmem:[%s7 + $0x4f8] sm:$0xff]
    %v1814 = vld [vmem:[%s7 + $0x500] sm:$0xff]
    %v1815 = vld [vmem:[%s7 + $0x508] sm:$0xff]
    %v1816 = vld [vmem:[%s7 + $0x510] sm:$0xff]
    %v1817 = vld [vmem:[%s7 + $0x518] sm:$0xff]
    %v1818 = vld [vmem:[%s7 + $0x520] sm:$0xff]
    %v1819 = vld [vmem:[%s7 + $0x528] sm:$0xff]
    %v1820 = vld [vmem:[%s7 + $0x530] sm:$0xff]
    %v1821 = vld [vmem:[%s7 + $0x538] sm:$0xff]
    %v1822 = vld [vmem:[%s7 + $0x540] sm:$0xff]
    %v1823 = vld [vmem:[%s7 + $0x548] sm:$0xff]
    %v1824 = vld [vmem:[%s7 + $0x550] sm:$0xff]
    %v1825 = vld [vmem:[%s7 + $0x558] sm:$0xff]
    %v1826 = vld [vmem:[%s7 + $0x560] sm:$0xff]
    %v1827 = vld [vmem:[%s7 + $0x568] sm:$0xff]
    %v1828 = vld [vmem:[%s7 + $0x570] sm:$0xff]
    %v1829 = vld [vmem:[%s7 + $0x578] sm:$0xff]
    %v1830 = vld [vmem:[%s7 + $0x580] sm:$0xff]
    %v1831 = vld [vmem:[%s7 + $0x588] sm:$0xff]
    %v1832 = vld [vmem:[%s7 + $0x590] sm:$0xff]
    %v1833 = vld [vmem:[%s7 + $0x598] sm:$0xff]
    %v1834 = vld [vmem:[%s7 + $0x5a0] sm:$0xff]
    %v1835 = vld [vmem:[%s7 + $0x5a8] sm:$0xff]
    %v1836 = vld [vmem:[%s7 + $0x5b0] sm:$0xff]
    %v1837 = vld [vmem:[%s7 + $0x5b8] sm:$0xff]
    %v1838 = vld [vmem:[%s7 + $0x5c0] sm:$0xff]
    %v1839 = vld [vmem:[%s7 + $0x5c8] sm:$0xff]
    %v1840 = vld [vmem:[%s7 + $0x5d0] sm:$0xff]
    %v1841 = vld [vmem:[%s7 + $0x5d8] sm:$0xff]
    %v1842 = vld [vmem:[%s7 + $0x5e0] sm:$0xff]
    %v1843 = vld [vmem:[%s7 + $0x5e8] sm:$0xff]
    %v1844 = vld [vmem:[%s7 + $0x5f0] sm:$0xff]
    %v1845 = vld [vmem:[%s7 + $0x5f8] sm:$0xff]
    %v1846 = vld [vmem:[%s7 + $0x600] sm:$0xff]
    %v1847 = vld [vmem:[%s7 + $0x608] sm:$0xff]
    %v1848 = vld [vmem:[%s7 + $0x610] sm:$0xff]
    %v1849 = vld [vmem:[%s7 + $0x618] sm:$0xff]
    %v1850 = vld [vmem:[%s7 + $0x620] sm:$0x7f]
    %v1851 = vld [vmem:[%s7 + $0x628] sm:$0x7f]
    %v1852 = vld [vmem:[%s7 + $0x630] sm:$0x7f]
    %v1853 = vld [vmem:[%s7 + $0x638] sm:$0x7f]
    %v1855 = vsel %vm1058, %v1649, 0
    %v1858 = vsel %vm1058, %v1653, 0
    %vm1860 = vcmask 1046528
    %v1862 = vsel %vm1860, %v1850, 0
    %v1865 = vsel %vm1860, %v1851, 0
    %v1868 = vsel %vm1860, %v1852, 0
    %v1871 = vsel %vm1860, %v1853, 0
    %1873 = vmatprep.subr.mxu0 %v1655
    %1874 = vmatpush1.msra.mxu0 %v1654
    %1875 = vmatprep.subr.mxu0 %v1659
    %1876 = vmatpush1.msra.mxu0 %v1658
    %1877 = vmatprep.subr.mxu0 %v1663
    %1878 = vmatpush1.msra.mxu0 %v1662
    %1879 = vmatprep.subr.mxu0 %v1667
    %1880 = vmatpush1.msra.mxu0 %v1666
    %1881 = vmatprep.subr.mxu0 %v1671
    %1882 = vmatpush1.msra.mxu0 %v1670
    %1883 = vmatprep.subr.mxu0 %v1675
    %1884 = vmatpush1.msra.mxu0 %v1674
    %1885 = vmatprep.subr.mxu0 %v1679
    %1886 = vmatpush1.msra.mxu0 %v1678
    %1887 = vmatprep.subr.mxu0 %v1683
    %1888 = vmatpush1.msra.mxu0 %v1682
    %1889 = vmatprep.subr.mxu0 %v1687
    %1890 = vmatpush1.msra.mxu0 %v1686
    %1891 = vmatprep.subr.mxu0 %v1691
    %1892 = vmatpush1.msra.mxu0 %v1690
    %1893 = vmatprep.subr.mxu0 %v1695
    %1894 = vmatpush1.msra.mxu0 %v1694
    %1895 = vmatprep.subr.mxu0 %v1699
    %1896 = vmatpush1.msra.mxu0 %v1698
    %1897 = vmatprep.subr.mxu0 %v1703
    %1898 = vmatpush1.msra.mxu0 %v1702
    %1899 = vmatprep.subr.mxu0 %v1707
    %1900 = vmatpush1.msra.mxu0 %v1706
    %1901 = vmatprep.subr.mxu0 %v1711
    %1902 = vmatpush1.msra.mxu0 %v1710
    %1903 = vmatprep.subr.mxu0 %v1715
    %1904 = vmatpush1.msra.mxu0 %v1714
    %1905 = vmatprep.subr.mxu0 %v1719
    %1906 = vmatpush1.msra.mxu0 %v1718
    %1907 = vmatprep.subr.mxu0 %v1723
    %1908 = vmatpush1.msra.mxu0 %v1722
    %1909 = vmatprep.subr.mxu0 %v1727
    %1910 = vmatpush1.msra.mxu0 %v1726
    %1911 = vmatprep.subr.mxu0 %v1731
    %1912 = vmatpush1.msra.mxu0 %v1730
    %1913 = vmatprep.subr.mxu0 %v1735
    %1914 = vmatpush1.msra.mxu0 %v1734
    %1915 = vmatprep.subr.mxu0 %v1739
    %1916 = vmatpush1.msra.mxu0 %v1738
    %1917 = vmatprep.subr.mxu0 %v1743
    %1918 = vmatpush1.msra.mxu0 %v1742
    %1919 = vmatprep.subr.mxu0 %v1747
    %1920 = vmatpush1.msra.mxu0 %v1746
    %1921 = vmatprep.subr.mxu0 %v1751
    %1922 = vmatpush1.msra.mxu0 %v1750
    %1923 = vmatprep.subr.mxu0 %v1755
    %1924 = vmatpush1.msra.mxu0 %v1754
    %1925 = vmatprep.subr.mxu0 %v1759
    %1926 = vmatpush1.msra.mxu0 %v1758
    %1927 = vmatprep.subr.mxu0 %v1763
    %1928 = vmatpush1.msra.mxu0 %v1762
    %1929 = vmatprep.subr.mxu0 %v1767
    %1930 = vmatpush1.msra.mxu0 %v1766
    %1931 = vmatprep.subr.mxu0 %v1771
    %1932 = vmatpush1.msra.mxu0 %v1770
    %1933 = vmatprep.subr.mxu0 %v1775
    %1934 = vmatpush1.msra.mxu0 %v1774
    %1935 = vmatprep.subr.mxu0 %v1779
    %1936 = vmatpush1.msra.mxu0 %v1778
    %1937 = vmatprep.mubr.f32.mxu0 %v1647
    %1938 = vmatmul.mubr.f32.gmra.mrb[0].mxu0 %v1646
    %v1939 = vpop.f32.mrb[0].mxu0
    %v1940 = vadd.f32 0.0, %v1939
    %v1941 = vpop.f32.mrb[0].mxu0
    %v1942 = vadd.f32 0.0, %v1941
    %1943 = vmatprep.mubr.f32.mxu0 %v1651
    %1944 = vmatmul.mubr.f32.gmra.mrb[0].mxu0 %v1650
    %v1945 = vpop.f32.mrb[0].mxu0
    %v1946 = vadd.f32 0.0, %v1945
    %v1947 = vpop.f32.mrb[0].mxu0
    %v1948 = vadd.f32 0.0, %v1947
    %1949 = vdwg.mxu0
    %1950 = vmatprep.subr.mxu0 %v1783
    %1951 = vmatpush1.msra.mxu0 %v1782
    %1952 = vmatprep.subr.mxu0 %v1787
    %1953 = vmatpush1.msra.mxu0 %v1786
    %1954 = vmatprep.subr.mxu0 %v1791
    %1955 = vmatpush1.msra.mxu0 %v1790
    %1956 = vmatprep.subr.mxu0 %v1795
    %1957 = vmatpush1.msra.mxu0 %v1794
    %1958 = vmatprep.subr.mxu0 %v1799
    %1959 = vmatpush1.msra.mxu0 %v1798
    %1960 = vmatprep.subr.mxu0 %v1803
    %1961 = vmatpush1.msra.mxu0 %v1802
    %1962 = vmatprep.subr.mxu0 %v1807
    %1963 = vmatpush1.msra.mxu0 %v1806
    %1964 = vmatprep.subr.mxu0 %v1811
    %1965 = vmatpush1.msra.mxu0 %v1810
    %1966 = vmatprep.subr.mxu0 %v1815
    %1967 = vmatpush1.msra.mxu0 %v1814
    %1968 = vmatprep.subr.mxu0 %v1819
    %1969 = vmatpush1.msra.mxu0 %v1818
    %1970 = vmatprep.subr.mxu0 %v1823
    %1971 = vmatpush1.msra.mxu0 %v1822
    %1972 = vmatprep.subr.mxu0 %v1827
    %1973 = vmatpush1.msra.mxu0 %v1826
    %1974 = vmatprep.subr.mxu0 %v1831
    %1975 = vmatpush1.msra.mxu0 %v1830
    %1976 = vmatprep.subr.mxu0 %v1835
    %1977 = vmatpush1.msra.mxu0 %v1834
    %1978 = vmatprep.subr.mxu0 %v1839
    %1979 = vmatpush1.msra.mxu0 %v1838
    %1980 = vmatprep.subr.mxu0 %v1843
    %1981 = vmatpush1.msra.mxu0 %v1842
    %1982 = vmatprep.subr.mxu0 %v1847
    %1983 = vmatpush1.msra.mxu0 %v1846
    %1984 = vmatprep.subr.mxu0 %v1865
    %1985 = vmatpush1.msra.mxu0 %v1862
    %1986 = vmatprep.subr.mxu0 0.0
    %1987 = vmatpush1.msra.mxu0 0.0
    %1988 = vmatprep.subr.mxu0 0.0
    %1989 = vmatpush1.msra.mxu0 0.0
    %1990 = vmatprep.subr.mxu0 0.0
    %1991 = vmatpush1.msra.mxu0 0.0
    %1992 = vmatprep.subr.mxu0 0.0
    %1993 = vmatpush1.msra.mxu0 0.0
    %1994 = vmatprep.subr.mxu0 0.0
    %1995 = vmatpush1.msra.mxu0 0.0
    %1996 = vmatprep.subr.mxu0 0.0
    %1997 = vmatpush1.msra.mxu0 0.0
    %1998 = vmatprep.subr.mxu0 0.0
    %1999 = vmatpush1.msra.mxu0 0.0
    %2000 = vmatprep.subr.mxu0 0.0
    %2001 = vmatpush1.msra.mxu0 0.0
    %2002 = vmatprep.subr.mxu0 0.0
    %2003 = vmatpush1.msra.mxu0 0.0
    %2004 = vmatprep.subr.mxu0 0.0
    %2005 = vmatpush1.msra.mxu0 0.0
    %2006 = vmatprep.subr.mxu0 0.0
    %2007 = vmatpush1.msra.mxu0 0.0
    %2008 = vmatprep.subr.mxu0 0.0
    %2009 = vmatpush1.msra.mxu0 0.0
    %2010 = vmatprep.subr.mxu0 0.0
    %2011 = vmatpush1.msra.mxu0 0.0
    %2012 = vmatprep.subr.mxu0 0.0
    %2013 = vmatpush1.msra.mxu0 0.0
    %2014 = vmatprep.mubr.f32.mxu0 %v1855
    %2015 = vmatmul.mubr.f32.gmra.mrb[0].mxu0 %v1648
    %v2016 = vpop.f32.mrb[0].mxu0
    %v2017 = vadd.f32 %v1940, %v2016
    %v2018 = vpop.f32.mrb[0].mxu0
    %v2019 = vadd.f32 %v1942, %v2018
    %2020 = vmatprep.mubr.f32.mxu0 %v1858
    %2021 = vmatmul.mubr.f32.gmra.mrb[0].mxu0 %v1652
    %v2022 = vpop.f32.mrb[0].mxu0
    %v2023 = vadd.f32 %v1946, %v2022
    %v2024 = vpop.f32.mrb[0].mxu0
    %v2025 = vadd.f32 %v1948, %v2024
    %2026 = vdwg.mxu0
    %2027 = vmatprep.subr.mxu0 %v1657
    %2028 = vmatpush1.msra.mxu0 %v1656
    %2029 = vmatprep.subr.mxu0 %v1661
    %2030 = vmatpush1.msra.mxu0 %v1660
    %2031 = vmatprep.subr.mxu0 %v1665
    %2032 = vmatpush1.msra.mxu0 %v1664
    %2033 = vmatprep.subr.mxu0 %v1669
    %2034 = vmatpush1.msra.mxu0 %v1668
    %2035 = vmatprep.subr.mxu0 %v1673
    %2036 = vmatpush1.msra.mxu0 %v1672
    %2037 = vmatprep.subr.mxu0 %v1677
    %2038 = vmatpush1.msra.mxu0 %v1676
    %2039 = vmatprep.subr.mxu0 %v1681
    %2040 = vmatpush1.msra.mxu0 %v1680
    %2041 = vmatprep.subr.mxu0 %v1685
    %2042 = vmatpush1.msra.mxu0 %v1684
    %2043 = vmatprep.subr.mxu0 %v1689
    %2044 = vmatpush1.msra.mxu0 %v1688
    %2045 = vmatprep.subr.mxu0 %v1693
    %2046 = vmatpush1.msra.mxu0 %v1692
    %2047 = vmatprep.subr.mxu0 %v1697
    %2048 = vmatpush1.msra.mxu0 %v1696
    %2049 = vmatprep.subr.mxu0 %v1701
    %2050 = vmatpush1.msra.mxu0 %v1700
    %2051 = vmatprep.subr.mxu0 %v1705
    %2052 = vmatpush1.msra.mxu0 %v1704
    %2053 = vmatprep.subr.mxu0 %v1709
    %2054 = vmatpush1.msra.mxu0 %v1708
    %2055 = vmatprep.subr.mxu0 %v1713
    %2056 = vmatpush1.msra.mxu0 %v1712
    %2057 = vmatprep.subr.mxu0 %v1717
    %2058 = vmatpush1.msra.mxu0 %v1716
    %2059 = vmatprep.subr.mxu0 %v1721
    %2060 = vmatpush1.msra.mxu0 %v1720
    %2061 = vmatprep.subr.mxu0 %v1725
    %2062 = vmatpush1.msra.mxu0 %v1724
    %2063 = vmatprep.subr.mxu0 %v1729
    %2064 = vmatpush1.msra.mxu0 %v1728
    %2065 = vmatprep.subr.mxu0 %v1733
    %2066 = vmatpush1.msra.mxu0 %v1732
    %2067 = vmatprep.subr.mxu0 %v1737
    %2068 = vmatpush1.msra.mxu0 %v1736
    %2069 = vmatprep.subr.mxu0 %v1741
    %2070 = vmatpush1.msra.mxu0 %v1740
    %2071 = vmatprep.subr.mxu0 %v1745
    %2072 = vmatpush1.msra.mxu0 %v1744
    %2073 = vmatprep.subr.mxu0 %v1749
    %2074 = vmatpush1.msra.mxu0 %v1748
    %2075 = vmatprep.subr.mxu0 %v1753
    %2076 = vmatpush1.msra.mxu0 %v1752
    %2077 = vmatprep.subr.mxu0 %v1757
    %2078 = vmatpush1.msra.mxu0 %v1756
    %2079 = vmatprep.subr.mxu0 %v1761
    %2080 = vmatpush1.msra.mxu0 %v1760
    %2081 = vmatprep.subr.mxu0 %v1765
    %2082 = vmatpush1.msra.mxu0 %v1764
    %2083 = vmatprep.subr.mxu0 %v1769
    %2084 = vmatpush1.msra.mxu0 %v1768
    %2085 = vmatprep.subr.mxu0 %v1773
    %2086 = vmatpush1.msra.mxu0 %v1772
    %2087 = vmatprep.subr.mxu0 %v1777
    %2088 = vmatpush1.msra.mxu0 %v1776
    %2089 = vmatprep.subr.mxu0 %v1781
    %2090 = vmatpush1.msra.mxu0 %v1780
    %2091 = vmatprep.mubr.f32.mxu0 %v1647
    %2092 = vmatmul.mubr.f32.gmra.mrb[0].mxu0 %v1646
    %v2093 = vpop.f32.mrb[0].mxu0
    %v2094 = vadd.f32 0.0, %v2093
    %v2095 = vpop.f32.mrb[0].mxu0
    %v2096 = vadd.f32 0.0, %v2095
    %2097 = vmatprep.mubr.f32.mxu0 %v1651
    %2098 = vmatmul.mubr.f32.gmra.mrb[0].mxu0 %v1650
    %v2099 = vpop.f32.mrb[0].mxu0
    %v2100 = vadd.f32 0.0, %v2099
    %v2101 = vpop.f32.mrb[0].mxu0
    %v2102 = vadd.f32 0.0, %v2101
    %2103 = vdwg.mxu0
    %2104 = vmatprep.subr.mxu0 %v1785
    %2105 = vmatpush1.msra.mxu0 %v1784
    %2106 = vmatprep.subr.mxu0 %v1789
    %2107 = vmatpush1.msra.mxu0 %v1788
    %2108 = vmatprep.subr.mxu0 %v1793
    %2109 = vmatpush1.msra.mxu0 %v1792
    %2110 = vmatprep.subr.mxu0 %v1797
    %2111 = vmatpush1.msra.mxu0 %v1796
    %2112 = vmatprep.subr.mxu0 %v1801
    %2113 = vmatpush1.msra.mxu0 %v1800
    %2114 = vmatprep.subr.mxu0 %v1805
    %2115 = vmatpush1.msra.mxu0 %v1804
    %2116 = vmatprep.subr.mxu0 %v1809
    %2117 = vmatpush1.msra.mxu0 %v1808
    %2118 = vmatprep.subr.mxu0 %v1813
    %2119 = vmatpush1.msra.mxu0 %v1812
    %2120 = vmatprep.subr.mxu0 %v1817
    %2121 = vmatpush1.msra.mxu0 %v1816
    %2122 = vmatprep.subr.mxu0 %v1821
    %2123 = vmatpush1.msra.mxu0 %v1820
    %2124 = vmatprep.subr.mxu0 %v1825
    %2125 = vmatpush1.msra.mxu0 %v1824
    %2126 = vmatprep.subr.mxu0 %v1829
    %2127 = vmatpush1.msra.mxu0 %v1828
    %2128 = vmatprep.subr.mxu0 %v1833
    %2129 = vmatpush1.msra.mxu0 %v1832
    %2130 = vmatprep.subr.mxu0 %v1837
    %2131 = vmatpush1.msra.mxu0 %v1836
    %2132 = vmatprep.subr.mxu0 %v1841
    %2133 = vmatpush1.msra.mxu0 %v1840
    %2134 = vmatprep.subr.mxu0 %v1845
    %2135 = vmatpush1.msra.mxu0 %v1844
    %2136 = vmatprep.subr.mxu0 %v1849
    %2137 = vmatpush1.msra.mxu0 %v1848
    %2138 = vmatprep.subr.mxu0 %v1871
    %2139 = vmatpush1.msra.mxu0 %v1868
    %2140 = vmatprep.subr.mxu0 0.0
    %2141 = vmatpush1.msra.mxu0 0.0
    %2142 = vmatprep.subr.mxu0 0.0
    %2143 = vmatpush1.msra.mxu0 0.0
    %2144 = vmatprep.subr.mxu0 0.0
    %2145 = vmatpush1.msra.mxu0 0.0
    %2146 = vmatprep.subr.mxu0 0.0
    %2147 = vmatpush1.msra.mxu0 0.0
    %2148 = vmatprep.subr.mxu0 0.0
    %2149 = vmatpush1.msra.mxu0 0.0
    %2150 = vmatprep.subr.mxu0 0.0
    %2151 = vmatpush1.msra.mxu0 0.0
    %2152 = vmatprep.subr.mxu0 0.0
    %2153 = vmatpush1.msra.mxu0 0.0
    %2154 = vmatprep.subr.mxu0 0.0
    %2155 = vmatpush1.msra.mxu0 0.0
    %2156 = vmatprep.subr.mxu0 0.0
    %2157 = vmatpush1.msra.mxu0 0.0
    %2158 = vmatprep.subr.mxu0 0.0
    %2159 = vmatpush1.msra.mxu0 0.0
    %2160 = vmatprep.subr.mxu0 0.0
    %2161 = vmatpush1.msra.mxu0 0.0
    %2162 = vmatprep.subr.mxu0 0.0
    %2163 = vmatpush1.msra.mxu0 0.0
    %2164 = vmatprep.subr.mxu0 0.0
    %2165 = vmatpush1.msra.mxu0 0.0
    %2166 = vmatprep.subr.mxu0 0.0
    %2167 = vmatpush1.msra.mxu0 0.0
    %2168 = vmatprep.mubr.f32.mxu0 %v1855
    %2169 = vmatmul.mubr.f32.gmra.mrb[0].mxu0 %v1648
    %v2170 = vpop.f32.mrb[0].mxu0
    %v2171 = vadd.f32 %v2094, %v2170
    %v2172 = vpop.f32.mrb[0].mxu0
    %v2173 = vadd.f32 %v2096, %v2172
    %2174 = vmatprep.mubr.f32.mxu0 %v1858
    %2175 = vmatmul.mubr.f32.gmra.mrb[0].mxu0 %v1652
    %v2176 = vpop.f32.mrb[0].mxu0
    %v2177 = vadd.f32 %v2100, %v2176
    %v2178 = vpop.f32.mrb[0].mxu0
    %v2179 = vadd.f32 %v2102, %v2178
    %2180 = vdwg.mxu0
    %2181 = vst [vmem:[#allocation2] sm:$0xff] %v2017
    %2182 = vst [vmem:[#allocation2 + $0x8] sm:$0xff] %v2019
    %2183 = vst [vmem:[#allocation2 + $0x10] sm:$0xff] %v2171
    %2184 = vst.msk [vmem:[#allocation2 + $0x18] sm:$0xff] %vm1058, %v2173
    %2185 = vst [vmem:[#allocation2 + $0x20] sm:$0xff] %v2023
    %2186 = vst [vmem:[#allocation2 + $0x28] sm:$0xff] %v2025
    %2187 = vst [vmem:[#allocation2 + $0x30] sm:$0xff] %v2177
    %2188 = vst.msk [vmem:[#allocation2 + $0x38] sm:$0xff] %vm1058, %v2179
    %2197 = vrot.lane.b32.xlu0 %v2017, 127
    %v2198 = vpop.permute.xlu0 %2197
    %2199 = vrot.lane.b32.xlu0 %v2019, 127
    %v2200 = vpop.permute.xlu0 %2199
    %2201 = vrot.lane.b32.xlu0 %v2171, 127
    %v2202 = vpop.permute.xlu0 %2201
    %2203 = vrot.lane.b32.xlu0 %v2173, 127
    %v2204 = vpop.permute.xlu0 %2203
    %2205 = vrot.lane.b32.xlu0 %v2023, 127
    %v2206 = vpop.permute.xlu0 %2205
    %2207 = vrot.lane.b32.xlu0 %v2025, 127
    %v2208 = vpop.permute.xlu0 %2207
    %2209 = vrot.lane.b32.xlu0 %v2177, 127
    %v2210 = vpop.permute.xlu0 %2209
    %2211 = vrot.lane.b32.xlu0 %v2179, 127
    %v2212 = vpop.permute.xlu0 %2211
    %v2213 = vsel %vm232, %v2198, %v2200
    %v2214 = vsel %vm232, %v2200, %v2202
    %v2215 = vsel %vm232, %v2202, %v2204
    %v2216 = vsel %vm232, %v2206, %v2208
    %v2217 = vsel %vm232, %v2208, %v2210
    %v2218 = vsel %vm232, %v2210, %v2212
    %2227 = vst [vmem:[#allocation2 + $0x40] sm:$0xff] %v2213
    %2228 = vst [vmem:[#allocation2 + $0x48] sm:$0xff] %v2214
    %2229 = vst [vmem:[#allocation2 + $0x50] sm:$0xff] %v2215
    %2230 = vst.msk [vmem:[#allocation2 + $0x58] sm:$0xff] %vm1058, %v2204
    %2231 = vst [vmem:[#allocation2 + $0x60] sm:$0xff] %v2216
    %2232 = vst [vmem:[#allocation2 + $0x68] sm:$0xff] %v2217
    %2233 = vst [vmem:[#allocation2 + $0x70] sm:$0xff] %v2218
    %2234 = vst.msk [vmem:[#allocation2 + $0x78] sm:$0xff] %vm1058, %v2212
    %2235 = vrot.lane.b32.xlu0 %v2017, 126
    %v2236 = vpop.permute.xlu0 %2235
    %2237 = vrot.lane.b32.xlu0 %v2019, 126
    %v2238 = vpop.permute.xlu0 %2237
    %2239 = vrot.lane.b32.xlu0 %v2171, 126
    %v2240 = vpop.permute.xlu0 %2239
    %2241 = vrot.lane.b32.xlu0 %v2173, 126
    %v2242 = vpop.permute.xlu0 %2241
    %2243 = vrot.lane.b32.xlu0 %v2023, 126
    %v2244 = vpop.permute.xlu0 %2243
    %2245 = vrot.lane.b32.xlu0 %v2025, 126
    %v2246 = vpop.permute.xlu0 %2245
    %2247 = vrot.lane.b32.xlu0 %v2177, 126
    %v2248 = vpop.permute.xlu0 %2247
    %2249 = vrot.lane.b32.xlu0 %v2179, 126
    %v2250 = vpop.permute.xlu0 %2249
    %v2251 = vsel %vm247, %v2236, %v2238
    %v2252 = vsel %vm247, %v2238, %v2240
    %v2253 = vsel %vm247, %v2240, %v2242
    %v2254 = vsel %vm247, %v2244, %v2246
    %v2255 = vsel %vm247, %v2246, %v2248
    %v2256 = vsel %vm247, %v2248, %v2250
    %2265 = vst [vmem:[#allocation2 + $0x80] sm:$0xff] %v2251
    %2266 = vst [vmem:[#allocation2 + $0x88] sm:$0xff] %v2252
    %2267 = vst [vmem:[#allocation2 + $0x90] sm:$0xff] %v2253
    %2268 = vst.msk [vmem:[#allocation2 + $0x98] sm:$0xff] %vm1058, %v2242
    %2269 = vst [vmem:[#allocation2 + $0xa0] sm:$0xff] %v2254
    %2270 = vst [vmem:[#allocation2 + $0xa8] sm:$0xff] %v2255
    %2271 = vst [vmem:[#allocation2 + $0xb0] sm:$0xff] %v2256
    %2272 = vst.msk [vmem:[#allocation2 + $0xb8] sm:$0xff] %vm1058, %v2250
    %2273 = vrot.lane.b32.xlu0 %v2017, 107
    %v2274 = vpop.permute.xlu0 %2273
    %2275 = vrot.lane.b32.xlu0 %v2019, 107
    %v2276 = vpop.permute.xlu0 %2275
    %2277 = vrot.lane.b32.xlu0 %v2171, 107
    %v2278 = vpop.permute.xlu0 %2277
    %2279 = vrot.lane.b32.xlu0 %v2173, 107
    %v2280 = vpop.permute.xlu0 %2279
    %2281 = vrot.lane.b32.xlu0 %v2023, 107
    %v2282 = vpop.permute.xlu0 %2281
    %2283 = vrot.lane.b32.xlu0 %v2025, 107
    %v2284 = vpop.permute.xlu0 %2283
    %2285 = vrot.lane.b32.xlu0 %v2177, 107
    %v2286 = vpop.permute.xlu0 %2285
    %2287 = vrot.lane.b32.xlu0 %v2179, 107
    %v2288 = vpop.permute.xlu0 %2287
    %v2289 = vsel %vm292, %v2274, %v2276
    %v2290 = vsel %vm292, %v2276, %v2278
    %v2291 = vsel %vm292, %v2278, %v2280
    %v2292 = vsel %vm292, %v2282, %v2284
    %v2293 = vsel %vm292, %v2284, %v2286
    %v2294 = vsel %vm292, %v2286, %v2288
    %2303 = vst [vmem:[#allocation2 + $0xc0] sm:$0xff] %v2289
    %2304 = vst [vmem:[#allocation2 + $0xc8] sm:$0xff] %v2290
    %2305 = vst [vmem:[#allocation2 + $0xd0] sm:$0xff] %v2291
    %2306 = vst.msk [vmem:[#allocation2 + $0xd8] sm:$0xff] %vm1058, %v2280
    %2307 = vst [vmem:[#allocation2 + $0xe0] sm:$0xff] %v2292
    %2308 = vst [vmem:[#allocation2 + $0xe8] sm:$0xff] %v2293
    %2309 = vst [vmem:[#allocation2 + $0xf0] sm:$0xff] %v2294
    %2310 = vst.msk [vmem:[#allocation2 + $0xf8] sm:$0xff] %vm1058, %v2288
    %2311 = vrot.lane.b32.xlu0 %v2017, 106
    %v2312 = vpop.permute.xlu0 %2311
    %2313 = vrot.lane.b32.xlu0 %v2019, 106
    %v2314 = vpop.permute.xlu0 %2313
    %2315 = vrot.lane.b32.xlu0 %v2171, 106
    %v2316 = vpop.permute.xlu0 %2315
    %2317 = vrot.lane.b32.xlu0 %v2173, 106
    %v2318 = vpop.permute.xlu0 %2317
    %2319 = vrot.lane.b32.xlu0 %v2023, 106
    %v2320 = vpop.permute.xlu0 %2319
    %2321 = vrot.lane.b32.xlu0 %v2025, 106
    %v2322 = vpop.permute.xlu0 %2321
    %2323 = vrot.lane.b32.xlu0 %v2177, 106
    %v2324 = vpop.permute.xlu0 %2323
    %2325 = vrot.lane.b32.xlu0 %v2179, 106
    %v2326 = vpop.permute.xlu0 %2325
    %v2327 = vsel %vm1202, %v2312, %v2314
    %v2328 = vsel %vm1202, %v2314, %v2316
    %v2329 = vsel %vm1202, %v2316, %v2318
    %v2330 = vsel %vm1202, %v2320, %v2322
    %v2331 = vsel %vm1202, %v2322, %v2324
    %v2332 = vsel %vm1202, %v2324, %v2326
    %2341 = vst [vmem:[#allocation2 + $0x100] sm:$0xff] %v2327
    %2342 = vst [vmem:[#allocation2 + $0x108] sm:$0xff] %v2328
    %2343 = vst [vmem:[#allocation2 + $0x110] sm:$0xff] %v2329
    %2344 = vst.msk [vmem:[#allocation2 + $0x118] sm:$0xff] %vm1058, %v2318
    %2345 = vst [vmem:[#allocation2 + $0x120] sm:$0xff] %v2330
    %2346 = vst [vmem:[#allocation2 + $0x128] sm:$0xff] %v2331
    %2347 = vst [vmem:[#allocation2 + $0x130] sm:$0xff] %v2332
    %2348 = vst.msk [vmem:[#allocation2 + $0x138] sm:$0xff] %vm1058, %v2326
    %2349 = vrot.lane.b32.xlu0 %v2017, 105
    %v2350 = vpop.permute.xlu0 %2349
    %2351 = vrot.lane.b32.xlu0 %v2019, 105
    %v2352 = vpop.permute.xlu0 %2351
    %2353 = vrot.lane.b32.xlu0 %v2171, 105
    %v2354 = vpop.permute.xlu0 %2353
    %2355 = vrot.lane.b32.xlu0 %v2173, 105
    %v2356 = vpop.permute.xlu0 %2355
    %2357 = vrot.lane.b32.xlu0 %v2023, 105
    %v2358 = vpop.permute.xlu0 %2357
    %2359 = vrot.lane.b32.xlu0 %v2025, 105
    %v2360 = vpop.permute.xlu0 %2359
    %2361 = vrot.lane.b32.xlu0 %v2177, 105
    %v2362 = vpop.permute.xlu0 %2361
    %2363 = vrot.lane.b32.xlu0 %v2179, 105
    %v2364 = vpop.permute.xlu0 %2363
    %v2365 = vsel %vm1241, %v2350, %v2352
    %v2366 = vsel %vm1241, %v2352, %v2354
    %v2367 = vsel %vm1241, %v2354, %v2356
    %v2368 = vsel %vm1241, %v2358, %v2360
    %v2369 = vsel %vm1241, %v2360, %v2362
    %v2370 = vsel %vm1241, %v2362, %v2364
    %2379 = vst [vmem:[#allocation2 + $0x140] sm:$0xff] %v2365
    %2380 = vst [vmem:[#allocation2 + $0x148] sm:$0xff] %v2366
    %2381 = vst [vmem:[#allocation2 + $0x150] sm:$0xff] %v2367
    %2382 = vst.msk [vmem:[#allocation2 + $0x158] sm:$0xff] %vm1058, %v2356
    %2383 = vst [vmem:[#allocation2 + $0x160] sm:$0xff] %v2368
    %2384 = vst [vmem:[#allocation2 + $0x168] sm:$0xff] %v2369
    %2385 = vst [vmem:[#allocation2 + $0x170] sm:$0xff] %v2370
    %2386 = vst.msk [vmem:[#allocation2 + $0x178] sm:$0xff] %vm1058, %v2364
    %2387 = vrot.lane.b32.xlu0 %v2017, 86
    %v2388 = vpop.permute.xlu0 %2387
    %2389 = vrot.lane.b32.xlu0 %v2019, 86
    %v2390 = vpop.permute.xlu0 %2389
    %2391 = vrot.lane.b32.xlu0 %v2171, 86
    %v2392 = vpop.permute.xlu0 %2391
    %2393 = vrot.lane.b32.xlu0 %v2173, 86
    %v2394 = vpop.permute.xlu0 %2393
    %2395 = vrot.lane.b32.xlu0 %v2023, 86
    %v2396 = vpop.permute.xlu0 %2395
    %2397 = vrot.lane.b32.xlu0 %v2025, 86
    %v2398 = vpop.permute.xlu0 %2397
    %2399 = vrot.lane.b32.xlu0 %v2177, 86
    %v2400 = vpop.permute.xlu0 %2399
    %2401 = vrot.lane.b32.xlu0 %v2179, 86
    %v2402 = vpop.permute.xlu0 %2401
    %v2403 = vsel %vm1280, %v2388, %v2390
    %v2404 = vsel %vm1280, %v2390, %v2392
    %v2405 = vsel %vm1280, %v2392, %v2394
    %v2406 = vsel %vm1280, %v2396, %v2398
    %v2407 = vsel %vm1280, %v2398, %v2400
    %v2408 = vsel %vm1280, %v2400, %v2402
    %2417 = vst [vmem:[#allocation2 + $0x180] sm:$0xff] %v2403
    %2418 = vst [vmem:[#allocation2 + $0x188] sm:$0xff] %v2404
    %2419 = vst [vmem:[#allocation2 + $0x190] sm:$0xff] %v2405
    %2420 = vst.msk [vmem:[#allocation2 + $0x198] sm:$0xff] %vm1058, %v2394
    %2421 = vst [vmem:[#allocation2 + $0x1a0] sm:$0xff] %v2406
    %2422 = vst [vmem:[#allocation2 + $0x1a8] sm:$0xff] %v2407
    %2423 = vst [vmem:[#allocation2 + $0x1b0] sm:$0xff] %v2408
    %2424 = vst.msk [vmem:[#allocation2 + $0x1b8] sm:$0xff] %vm1058, %v2402
    %2425 = vrot.lane.b32.xlu0 %v2017, 85
    %v2426 = vpop.permute.xlu0 %2425
    %2427 = vrot.lane.b32.xlu0 %v2019, 85
    %v2428 = vpop.permute.xlu0 %2427
    %2429 = vrot.lane.b32.xlu0 %v2171, 85
    %v2430 = vpop.permute.xlu0 %2429
    %2431 = vrot.lane.b32.xlu0 %v2173, 85
    %v2432 = vpop.permute.xlu0 %2431
    %2433 = vrot.lane.b32.xlu0 %v2023, 85
    %v2434 = vpop.permute.xlu0 %2433
    %2435 = vrot.lane.b32.xlu0 %v2025, 85
    %v2436 = vpop.permute.xlu0 %2435
    %2437 = vrot.lane.b32.xlu0 %v2177, 85
    %v2438 = vpop.permute.xlu0 %2437
    %2439 = vrot.lane.b32.xlu0 %v2179, 85
    %v2440 = vpop.permute.xlu0 %2439
    %v2441 = vsel %vm1319, %v2426, %v2428
    %v2442 = vsel %vm1319, %v2428, %v2430
    %v2443 = vsel %vm1319, %v2430, %v2432
    %v2444 = vsel %vm1319, %v2434, %v2436
    %v2445 = vsel %vm1319, %v2436, %v2438
    %v2446 = vsel %vm1319, %v2438, %v2440
    %2455 = vst [vmem:[#allocation2 + $0x1c0] sm:$0xff] %v2441
    %2456 = vst [vmem:[#allocation2 + $0x1c8] sm:$0xff] %v2442
    %2457 = vst [vmem:[#allocation2 + $0x1d0] sm:$0xff] %v2443
    %2458 = vst.msk [vmem:[#allocation2 + $0x1d8] sm:$0xff] %vm1058, %v2432
    %2459 = vst [vmem:[#allocation2 + $0x1e0] sm:$0xff] %v2444
    %2460 = vst [vmem:[#allocation2 + $0x1e8] sm:$0xff] %v2445
    %2461 = vst [vmem:[#allocation2 + $0x1f0] sm:$0xff] %v2446
    %2462 = vst.msk [vmem:[#allocation2 + $0x1f8] sm:$0xff] %vm1058, %v2440
    %2463 = vrot.lane.b32.xlu0 %v2017, 84
    %v2464 = vpop.permute.xlu0 %2463
    %2465 = vrot.lane.b32.xlu0 %v2019, 84
    %v2466 = vpop.permute.xlu0 %2465
    %2467 = vrot.lane.b32.xlu0 %v2171, 84
    %v2468 = vpop.permute.xlu0 %2467
    %2469 = vrot.lane.b32.xlu0 %v2173, 84
    %v2470 = vpop.permute.xlu0 %2469
    %2471 = vrot.lane.b32.xlu0 %v2023, 84
    %v2472 = vpop.permute.xlu0 %2471
    %2473 = vrot.lane.b32.xlu0 %v2025, 84
    %v2474 = vpop.permute.xlu0 %2473
    %2475 = vrot.lane.b32.xlu0 %v2177, 84
    %v2476 = vpop.permute.xlu0 %2475
    %2477 = vrot.lane.b32.xlu0 %v2179, 84
    %v2478 = vpop.permute.xlu0 %2477
    %v2479 = vsel %vm1358, %v2464, %v2466
    %v2480 = vsel %vm1358, %v2466, %v2468
    %v2481 = vsel %vm1358, %v2468, %v2470
    %v2482 = vsel %vm1358, %v2472, %v2474
    %v2483 = vsel %vm1358, %v2474, %v2476
    %v2484 = vsel %vm1358, %v2476, %v2478
    %2493 = vst [vmem:[#allocation2 + $0x200] sm:$0xff] %v2479
    %2494 = vst [vmem:[#allocation2 + $0x208] sm:$0xff] %v2480
    %2495 = vst [vmem:[#allocation2 + $0x210] sm:$0xff] %v2481
    %2496 = vst.msk [vmem:[#allocation2 + $0x218] sm:$0xff] %vm1058, %v2470
    %2497 = vst [vmem:[#allocation2 + $0x220] sm:$0xff] %v2482
    %2498 = vst [vmem:[#allocation2 + $0x228] sm:$0xff] %v2483
    %2499 = vst [vmem:[#allocation2 + $0x230] sm:$0xff] %v2484
    %2500 = vst.msk [vmem:[#allocation2 + $0x238] sm:$0xff] %vm1058, %v2478
    %v2501 = vld [vmem:[%s8] sm:$0x3f]
    %v2502 = vld [vmem:[%s8 + $0x8] sm:$0x3f]
    %v2503 = vld [vmem:[#allocation2] sm:$0xff]
    %v2504 = vld [vmem:[#allocation2 + $0x8] sm:$0xff]
    %v2505 = vld [vmem:[#allocation2 + $0x10] sm:$0xff]
    %v2506 = vld [vmem:[#allocation2 + $0x18] sm:$0xff]
    %v2507 = vld [vmem:[#allocation2 + $0x20] sm:$0xff]
    %v2508 = vld [vmem:[#allocation2 + $0x28] sm:$0xff]
    %v2509 = vld [vmem:[#allocation2 + $0x30] sm:$0xff]
    %v2510 = vld [vmem:[#allocation2 + $0x38] sm:$0xff]
    %v2511 = vld [vmem:[#allocation2 + $0x40] sm:$0xff]
    %v2512 = vld [vmem:[#allocation2 + $0x48] sm:$0xff]
    %v2513 = vld [vmem:[#allocation2 + $0x50] sm:$0xff]
    %v2514 = vld [vmem:[#allocation2 + $0x58] sm:$0xff]
    %v2515 = vld [vmem:[#allocation2 + $0x60] sm:$0xff]
    %v2516 = vld [vmem:[#allocation2 + $0x68] sm:$0xff]
    %v2517 = vld [vmem:[#allocation2 + $0x70] sm:$0xff]
    %v2518 = vld [vmem:[#allocation2 + $0x78] sm:$0xff]
    %v2519 = vld [vmem:[#allocation2 + $0x80] sm:$0xff]
    %v2520 = vld [vmem:[#allocation2 + $0x88] sm:$0xff]
    %v2521 = vld [vmem:[#allocation2 + $0x90] sm:$0xff]
    %v2522 = vld [vmem:[#allocation2 + $0x98] sm:$0xff]
    %v2523 = vld [vmem:[#allocation2 + $0xa0] sm:$0xff]
    %v2524 = vld [vmem:[#allocation2 + $0xa8] sm:$0xff]
    %v2525 = vld [vmem:[#allocation2 + $0xb0] sm:$0xff]
    %v2526 = vld [vmem:[#allocation2 + $0xb8] sm:$0xff]
    %v2527 = vld [vmem:[#allocation2 + $0xc0] sm:$0xff]
    %v2528 = vld [vmem:[#allocation2 + $0xc8] sm:$0xff]
    %v2529 = vld [vmem:[#allocation2 + $0xd0] sm:$0xff]
    %v2530 = vld [vmem:[#allocation2 + $0xd8] sm:$0xff]
    %v2531 = vld [vmem:[#allocation2 + $0xe0] sm:$0xff]
    %v2532 = vld [vmem:[#allocation2 + $0xe8] sm:$0xff]
    %v2533 = vld [vmem:[#allocation2 + $0xf0] sm:$0xff]
    %v2534 = vld [vmem:[#allocation2 + $0xf8] sm:$0xff]
    %v2535 = vld [vmem:[#allocation2 + $0x100] sm:$0xff]
    %v2536 = vld [vmem:[#allocation2 + $0x108] sm:$0xff]
    %v2537 = vld [vmem:[#allocation2 + $0x110] sm:$0xff]
    %v2538 = vld [vmem:[#allocation2 + $0x118] sm:$0xff]
    %v2539 = vld [vmem:[#allocation2 + $0x120] sm:$0xff]
    %v2540 = vld [vmem:[#allocation2 + $0x128] sm:$0xff]
    %v2541 = vld [vmem:[#allocation2 + $0x130] sm:$0xff]
    %v2542 = vld [vmem:[#allocation2 + $0x138] sm:$0xff]
    %v2543 = vld [vmem:[#allocation2 + $0x140] sm:$0xff]
    %v2544 = vld [vmem:[#allocation2 + $0x148] sm:$0xff]
    %v2545 = vld [vmem:[#allocation2 + $0x150] sm:$0xff]
    %v2546 = vld [vmem:[#allocation2 + $0x158] sm:$0xff]
    %v2547 = vld [vmem:[#allocation2 + $0x160] sm:$0xff]
    %v2548 = vld [vmem:[#allocation2 + $0x168] sm:$0xff]
    %v2549 = vld [vmem:[#allocation2 + $0x170] sm:$0xff]
    %v2550 = vld [vmem:[#allocation2 + $0x178] sm:$0xff]
    %v2551 = vld [vmem:[#allocation2 + $0x180] sm:$0xff]
    %v2552 = vld [vmem:[#allocation2 + $0x188] sm:$0xff]
    %v2553 = vld [vmem:[#allocation2 + $0x190] sm:$0xff]
    %v2554 = vld [vmem:[#allocation2 + $0x198] sm:$0xff]
    %v2555 = vld [vmem:[#allocation2 + $0x1a0] sm:$0xff]
    %v2556 = vld [vmem:[#allocation2 + $0x1a8] sm:$0xff]
    %v2557 = vld [vmem:[#allocation2 + $0x1b0] sm:$0xff]
    %v2558 = vld [vmem:[#allocation2 + $0x1b8] sm:$0xff]
    %v2559 = vld [vmem:[#allocation2 + $0x1c0] sm:$0xff]
    %v2560 = vld [vmem:[#allocation2 + $0x1c8] sm:$0xff]
    %v2561 = vld [vmem:[#allocation2 + $0x1d0] sm:$0xff]
    %v2562 = vld [vmem:[#allocation2 + $0x1d8] sm:$0xff]
    %v2563 = vld [vmem:[#allocation2 + $0x1e0] sm:$0xff]
    %v2564 = vld [vmem:[#allocation2 + $0x1e8] sm:$0xff]
    %v2565 = vld [vmem:[#allocation2 + $0x1f0] sm:$0xff]
    %v2566 = vld [vmem:[#allocation2 + $0x1f8] sm:$0xff]
    %v2567 = vld [vmem:[#allocation2 + $0x200] sm:$0xff]
    %v2568 = vld [vmem:[#allocation2 + $0x208] sm:$0xff]
    %v2569 = vld [vmem:[#allocation2 + $0x210] sm:$0xff]
    %v2570 = vld [vmem:[#allocation2 + $0x218] sm:$0xff]
    %v2571 = vld [vmem:[#allocation2 + $0x220] sm:$0xff]
    %v2572 = vld [vmem:[#allocation2 + $0x228] sm:$0xff]
    %v2573 = vld [vmem:[#allocation2 + $0x230] sm:$0xff]
    %v2574 = vld [vmem:[#allocation2 + $0x238] sm:$0xff]
    %v2575 = vld [vmem:[%s9] sm:$0x3f]
    %2577 = vset.pattern.permute.xlu0 0
    %2578 = vperm.xlu0 %2577, %v2575
    %v2579 = vpop.permute.xlu0 %2578
    %v2582 = vsel %vm1469, %v2502, 0
    %2584 = vmatprep.subr.mxu0 %v2504
    %2585 = vmatpush1.msra.mxu0 %v2503
    %2586 = vmatprep.subr.mxu0 %v2508
    %2587 = vmatpush1.msra.mxu0 %v2507
    %2588 = vmatprep.subr.mxu0 %v2512
    %2589 = vmatpush1.msra.mxu0 %v2511
    %2590 = vmatprep.subr.mxu0 %v2516
    %2591 = vmatpush1.msra.mxu0 %v2515
    %2592 = vmatprep.subr.mxu0 %v2520
    %2593 = vmatpush1.msra.mxu0 %v2519
    %2594 = vmatprep.subr.mxu0 %v2524
    %2595 = vmatpush1.msra.mxu0 %v2523
    %2596 = vmatprep.subr.mxu0 %v2528
    %2597 = vmatpush1.msra.mxu0 %v2527
    %2598 = vmatprep.subr.mxu0 %v2532
    %2599 = vmatpush1.msra.mxu0 %v2531
    %2600 = vmatprep.subr.mxu0 %v2536
    %2601 = vmatpush1.msra.mxu0 %v2535
    %2602 = vmatprep.subr.mxu0 %v2540
    %2603 = vmatpush1.msra.mxu0 %v2539
    %2604 = vmatprep.subr.mxu0 %v2544
    %2605 = vmatpush1.msra.mxu0 %v2543
    %2606 = vmatprep.subr.mxu0 %v2548
    %2607 = vmatpush1.msra.mxu0 %v2547
    %2608 = vmatprep.subr.mxu0 %v2552
    %2609 = vmatpush1.msra.mxu0 %v2551
    %2610 = vmatprep.subr.mxu0 %v2556
    %2611 = vmatpush1.msra.mxu0 %v2555
    %2612 = vmatprep.subr.mxu0 %v2560
    %2613 = vmatpush1.msra.mxu0 %v2559
    %2614 = vmatprep.subr.mxu0 %v2564
    %2615 = vmatpush1.msra.mxu0 %v2563
    %2616 = vmatprep.subr.mxu0 %v2568
    %2617 = vmatpush1.msra.mxu0 %v2567
    %2618 = vmatprep.subr.mxu0 %v2572
    %2619 = vmatpush1.msra.mxu0 %v2571
    %2620 = vmatprep.subr.mxu0 0.0
    %2621 = vmatpush1.msra.mxu0 0.0
    %2622 = vmatprep.subr.mxu0 0.0
    %2623 = vmatpush1.msra.mxu0 0.0
    %2624 = vmatprep.subr.mxu0 0.0
    %2625 = vmatpush1.msra.mxu0 0.0
    %2626 = vmatprep.subr.mxu0 0.0
    %2627 = vmatpush1.msra.mxu0 0.0
    %2628 = vmatprep.subr.mxu0 0.0
    %2629 = vmatpush1.msra.mxu0 0.0
    %2630 = vmatprep.subr.mxu0 0.0
    %2631 = vmatpush1.msra.mxu0 0.0
    %2632 = vmatprep.subr.mxu0 0.0
    %2633 = vmatpush1.msra.mxu0 0.0
    %2634 = vmatprep.subr.mxu0 0.0
    %2635 = vmatpush1.msra.mxu0 0.0
    %2636 = vmatprep.subr.mxu0 0.0
    %2637 = vmatpush1.msra.mxu0 0.0
    %2638 = vmatprep.subr.mxu0 0.0
    %2639 = vmatpush1.msra.mxu0 0.0
    %2640 = vmatprep.subr.mxu0 0.0
    %2641 = vmatpush1.msra.mxu0 0.0
    %2642 = vmatprep.subr.mxu0 0.0
    %2643 = vmatpush1.msra.mxu0 0.0
    %2644 = vmatprep.subr.mxu0 0.0
    %2645 = vmatpush1.msra.mxu0 0.0
    %2646 = vmatprep.subr.mxu0 0.0
    %2647 = vmatpush1.msra.mxu0 0.0
    %2648 = vmatprep.mubr.f32.mxu0 %v2582
    %2649 = vmatmul.mubr.f32.gmra.mrb[0].mxu0 %v2501
    %v2650 = vpop.f32.mrb[0].mxu0
    %v2651 = vadd.f32 %v2579, %v2650
    %v2652 = vpop.f32.mrb[0].mxu0
    %v2653 = vadd.f32 %v2579, %v2652
    %2654 = vdwg.mxu0
    %2655 = vmatprep.subr.mxu0 %v2506
    %2656 = vmatpush1.msra.mxu0 %v2505
    %2657 = vmatprep.subr.mxu0 %v2510
    %2658 = vmatpush1.msra.mxu0 %v2509
    %2659 = vmatprep.subr.mxu0 %v2514
    %2660 = vmatpush1.msra.mxu0 %v2513
    %2661 = vmatprep.subr.mxu0 %v2518
    %2662 = vmatpush1.msra.mxu0 %v2517
    %2663 = vmatprep.subr.mxu0 %v2522
    %2664 = vmatpush1.msra.mxu0 %v2521
    %2665 = vmatprep.subr.mxu0 %v2526
    %2666 = vmatpush1.msra.mxu0 %v2525
    %2667 = vmatprep.subr.mxu0 %v2530
    %2668 = vmatpush1.msra.mxu0 %v2529
    %2669 = vmatprep.subr.mxu0 %v2534
    %2670 = vmatpush1.msra.mxu0 %v2533
    %2671 = vmatprep.subr.mxu0 %v2538
    %2672 = vmatpush1.msra.mxu0 %v2537
    %2673 = vmatprep.subr.mxu0 %v2542
    %2674 = vmatpush1.msra.mxu0 %v2541
    %2675 = vmatprep.subr.mxu0 %v2546
    %2676 = vmatpush1.msra.mxu0 %v2545
    %2677 = vmatprep.subr.mxu0 %v2550
    %2678 = vmatpush1.msra.mxu0 %v2549
    %2679 = vmatprep.subr.mxu0 %v2554
    %2680 = vmatpush1.msra.mxu0 %v2553
    %2681 = vmatprep.subr.mxu0 %v2558
    %2682 = vmatpush1.msra.mxu0 %v2557
    %2683 = vmatprep.subr.mxu0 %v2562
    %2684 = vmatpush1.msra.mxu0 %v2561
    %2685 = vmatprep.subr.mxu0 %v2566
    %2686 = vmatpush1.msra.mxu0 %v2565
    %2687 = vmatprep.subr.mxu0 %v2570
    %2688 = vmatpush1.msra.mxu0 %v2569
    %2689 = vmatprep.subr.mxu0 %v2574
    %2690 = vmatpush1.msra.mxu0 %v2573
    %2691 = vmatprep.subr.mxu0 0.0
    %2692 = vmatpush1.msra.mxu0 0.0
    %2693 = vmatprep.subr.mxu0 0.0
    %2694 = vmatpush1.msra.mxu0 0.0
    %2695 = vmatprep.subr.mxu0 0.0
    %2696 = vmatpush1.msra.mxu0 0.0
    %2697 = vmatprep.subr.mxu0 0.0
    %2698 = vmatpush1.msra.mxu0 0.0
    %2699 = vmatprep.subr.mxu0 0.0
    %2700 = vmatpush1.msra.mxu0 0.0
    %2701 = vmatprep.subr.mxu0 0.0
    %2702 = vmatpush1.msra.mxu0 0.0
    %2703 = vmatprep.subr.mxu0 0.0
    %2704 = vmatpush1.msra.mxu0 0.0
    %2705 = vmatprep.subr.mxu0 0.0
    %2706 = vmatpush1.msra.mxu0 0.0
    %2707 = vmatprep.subr.mxu0 0.0
    %2708 = vmatpush1.msra.mxu0 0.0
    %2709 = vmatprep.subr.mxu0 0.0
    %2710 = vmatpush1.msra.mxu0 0.0
    %2711 = vmatprep.subr.mxu0 0.0
    %2712 = vmatpush1.msra.mxu0 0.0
    %2713 = vmatprep.subr.mxu0 0.0
    %2714 = vmatpush1.msra.mxu0 0.0
    %2715 = vmatprep.subr.mxu0 0.0
    %2716 = vmatpush1.msra.mxu0 0.0
    %2717 = vmatprep.subr.mxu0 0.0
    %2718 = vmatpush1.msra.mxu0 0.0
    %2719 = vmatprep.mubr.f32.mxu0 %v2582
    %2720 = vmatmul.mubr.f32.gmra.mrb[0].mxu0 %v2501
    %v2721 = vpop.f32.mrb[0].mxu0
    %v2722 = vadd.f32 %v2579, %v2721
    %v2723 = vpop.f32.mrb[0].mxu0
    %v2724 = vadd.f32 %v2579, %v2723
    %2725 = vdwg.mxu0
    %v2726 = vtanh.pop %v2651
    %v2727 = vtanh.pop %v2653
    %v2728 = vtanh.pop %v2722
    %v2729 = vtanh.pop %v2724
    %2730 = vst [vmem:[%s10] sm:$0x3f] %v2726
    %2731 = vst [vmem:[%s10 + $0x8] sm:$0x3f] %v2727
    %2732 = vst [vmem:[%s10 + $0x10] sm:$0x3f] %v2728
    %vm2733 = vcmask 119808
    %2734 = vst.msk [vmem:[%s10 + $0x18] sm:$0x3f] %vm2733, %v2729
    // Predicated region
    $region46: #{deconv2d_model_forward.1} parent=1 // pred_check
      _
    $region47: #{deconv2d_model_forward.1} parent=1 // pred_check_branch
      %2736 = sbr.rel (0) target = $region49
    $region48: #{deconv2d_model_forward.1} parent=1 // pred_region
      _
    $region49: #{deconv2d_model_forward.1} parent=1 // pred_fallthru
      _
    // Predicated region
    $region50: #{deconv2d_model_forward.1} parent=1 // pred_check
      _
    $region51: #{deconv2d_model_forward.1} parent=1 // pred_check_branch
      %2738 = sbr.rel (0) target = $region53
    $region52: #{deconv2d_model_forward.1} parent=1 // pred_region
      _
    $region53: #{deconv2d_model_forward.1} parent=1 // pred_fallthru
      _
    %2739 = vsyncpa [#allocation4], 1

</llo_original>
